<compile_context>
chip_gen: v6e
topology: v6e:2x2x1
jax: 0.10.0
libtpu: 0.0.40
codegen_flags: <defaults>
</compile_context>

<pallas_src>
import math

import numpy as np
import jax
import jax.numpy as jnp
from jax.experimental import pallas as pl
from jax.experimental.pallas import tpu as pltpu

# ----------------------- small ViT configuration ---------------------------
IMAGE_SIZE = 16
PATCH_SIZE = 4
NUM_LAYERS = 2
NUM_HEADS = 4
EMBED_DIM = 32
MLP_DIM = 64
CHANNELS = 3
BATCH = 2

NUM_PATCHES = (IMAGE_SIZE // PATCH_SIZE) ** 2      # 16
SEQ = NUM_PATCHES + 1                              # 17 (cls token + patches)
HEAD_DIM = EMBED_DIM // NUM_HEADS                  # 8
PATCH_DIM = PATCH_SIZE * PATCH_SIZE * CHANNELS     # 48
LN_EPS = 1e-5

VMEM_SPEC = pl.BlockSpec(memory_space=pltpu.MemorySpace.VMEM)

# block-diagonal "same head" matrix: HMASK[e, e'] = 1 iff e, e' in same head.
# (q_i * k_j) @ HMASK gives each head's dot product replicated across that
# head's lanes -> no per-head slicing / reshapes / concat needed.
_HEAD_MASK = jnp.asarray(
    np.kron(np.eye(NUM_HEADS, dtype=np.float32),
            np.ones((HEAD_DIM, HEAD_DIM), dtype=np.float32)))


def _gelu_exact(x):
    # nn.GELU() default (erf-based, not tanh approximation)
    return 0.5 * x * (1.0 + jax.lax.erf(x * (1.0 / math.sqrt(2.0))))


def _layer_norm(x, g, b):
    mu = jnp.mean(x, axis=-1, keepdims=True)
    var = jnp.mean((x - mu) ** 2, axis=-1, keepdims=True)
    return (x - mu) * jax.lax.rsqrt(var + LN_EPS) * g + b


# --------------------------- fused forward kernel ---------------------------
def _vit_kernel(xp_ref, patch_w_ref, patch_b_ref, cls_ref, pos_ref, hmask_ref,
                ln1_g_ref, ln1_b_ref, wq_ref, bq_ref, wk_ref, bk_ref,
                wv_ref, bv_ref, wo_ref, bo_ref, ln2_g_ref, ln2_b_ref,
                w1_ref, b1_ref, w2_ref, b2_ref, lnf_g_ref, lnf_b_ref,
                out_ref):
    f32 = jnp.float32
    scale = 1.0 / math.sqrt(HEAD_DIM)

    patch_w = patch_w_ref[...]
    pos = pos_ref[...]
    hmask = hmask_ref[...]

    # Row 0 of each sequence gets the cls token, other rows get the patch
    # embedding bias (the cls-slot rows of xp are zeros, so the matmul
    # contributes nothing there).  Positional embedding added to every row.
    row_idx = jax.lax.broadcasted_iota(jnp.int32, (SEQ, EMBED_DIM), 0)
    tok_bias = jnp.where(row_idx == 0, cls_ref[...], patch_b_ref[...]) + pos

    # Patch embedding; keep activations as B per-image (S, E) slabs in vregs.
    h = [jnp.dot(xp_ref[b], patch_w, preferred_element_type=f32) + tok_bias
         for b in range(BATCH)]
    # TODO(synk): all nn.Dropout layers act as identity (eval semantics);
    # PyTorch training-mode dropout RNG cannot be reproduced.

    for l in range(NUM_LAYERS):
        ln1_g, ln1_b = ln1_g_ref[l], ln1_b_ref[l]
        wq, bq = wq_ref[l], bq_ref[l]
        wk, bk = wk_ref[l], bk_ref[l]
        wv, bv = wv_ref[l], bv_ref[l]
        wo, bo = wo_ref[l], bo_ref[l]
        ln2_g, ln2_b = ln2_g_ref[l], ln2_b_ref[l]
        w1, b1 = w1_ref[l], b1_ref[l]
        w2, b2 = w2_ref[l], b2_ref[l]

        # ---- multi-head self-attention (torch batch_first=False semantics:
        # queries/keys indexed by the *original batch* axis, "batch" = tokens)
        ln1 = [_layer_norm(h[b], ln1_g, ln1_b) for b in range(BATCH)]
        q = [jnp.dot(ln1[b], wq, preferred_element_type=f32) + bq for b in range(BATCH)]
        k = [jnp.dot(ln1[b], wk, preferred_element_type=f32) + bk for b in range(BATCH)]
        v = [jnp.dot(ln1[b], wv, preferred_element_type=f32) + bv for b in range(BATCH)]

        # scores s[i][j]: (S, E), per-head q_i . k_j replicated over head lanes
        s = [[jnp.dot(q[i] * k[j], hmask, preferred_element_type=f32) * scale
              for j in range(BATCH)] for i in range(BATCH)]

        attn = []
        for i in range(BATCH):
            m = s[i][0]
            for j in range(1, BATCH):
                m = jnp.maximum(m, s[i][j])
            e = [jnp.exp(s[i][j] - m) for j in range(BATCH)]
            z = e[0]
            for j in range(1, BATCH):
                z = z + e[j]
            inv = pl.reciprocal(z, approx=True)        # EUP, ~free
            o = (e[0] * inv) * v[0]
            for j in range(1, BATCH):
                o = o + (e[j] * inv) * v[j]
            attn.append(o)

        # out projection + residual
        h = [h[b] + jnp.dot(attn[b], wo, preferred_element_type=f32) + bo
             for b in range(BATCH)]

        # ---- MLP + residual
        ln2 = [_layer_norm(h[b], ln2_g, ln2_b) for b in range(BATCH)]
        hid = [_gelu_exact(jnp.dot(ln2[b], w1, preferred_element_type=f32) + b1)
               for b in range(BATCH)]
        h = [h[b] + jnp.dot(hid[b], w2, preferred_element_type=f32) + b2
             for b in range(BATCH)]

    # final LayerNorm on the cls token of each image
    lnf_g, lnf_b = lnf_g_ref[...], lnf_b_ref[...]
    for b in range(BATCH):
        cls_out = _layer_norm(h[b][0:1, :], lnf_g, lnf_b)        # (1, E)
        out_ref[pl.ds(b, 1), :] = cls_out.astype(out_ref.dtype)


_NUM_INPUTS = 24
_vit_call = pl.pallas_call(
    _vit_kernel,
    out_shape=jax.ShapeDtypeStruct((BATCH, EMBED_DIM), jnp.float32),
    in_specs=[VMEM_SPEC] * _NUM_INPUTS,
    out_specs=VMEM_SPEC,
)


# ------------------------------ parameters ----------------------------------
def init_params(key):
    def nrm(k, shape, scale=0.02):
        return scale * jax.random.normal(k, shape, dtype=jnp.float32)

    ki = iter(jax.random.split(key, 16))
    L = NUM_LAYERS
    params = {
        "patch_w": nrm(next(ki), (PATCH_DIM, EMBED_DIM)),   # patch_embed.weight.T
        "patch_b": nrm(next(ki), (1, EMBED_DIM)),
        "cls":     nrm(next(ki), (1, EMBED_DIM), scale=1.0),      # cls_token
        "pos":     nrm(next(ki), (SEQ, EMBED_DIM), scale=1.0),    # pos_embed
        "lnf_g":   jnp.ones((1, EMBED_DIM), jnp.float32),
        "lnf_b":   jnp.zeros((1, EMBED_DIM), jnp.float32),
        "blocks": {   # per-layer params stacked along a leading layer axis
            "ln1_g": jnp.ones((L, 1, EMBED_DIM), jnp.float32),
            "ln1_b": jnp.zeros((L, 1, EMBED_DIM), jnp.float32),
            # wq/wk/wv + bq/bk/bv == in_proj_weight.T / in_proj_bias split in 3
            "wq": nrm(next(ki), (L, EMBED_DIM, EMBED_DIM)),
            "wk": nrm(next(ki), (L, EMBED_DIM, EMBED_DIM)),
            "wv": nrm(next(ki), (L, EMBED_DIM, EMBED_DIM)),
            "bq": nrm(next(ki), (L, 1, EMBED_DIM)),
            "bk": nrm(next(ki), (L, 1, EMBED_DIM)),
            "bv": nrm(next(ki), (L, 1, EMBED_DIM)),
            "wo": nrm(next(ki), (L, EMBED_DIM, EMBED_DIM)),       # out_proj.weight.T
            "bo": nrm(next(ki), (L, 1, EMBED_DIM)),
            "ln2_g": jnp.ones((L, 1, EMBED_DIM), jnp.float32),
            "ln2_b": jnp.zeros((L, 1, EMBED_DIM), jnp.float32),
            "w1": nrm(next(ki), (L, EMBED_DIM, MLP_DIM)),
            "b1": nrm(next(ki), (L, 1, MLP_DIM)),
            "w2": nrm(next(ki), (L, MLP_DIM, EMBED_DIM)),
            "b2": nrm(next(ki), (L, 1, EMBED_DIM)),
        },
    }
    return params


# ------------------------------ forward pass --------------------------------
def vit_forward(params, x):
    B, C, H, W = x.shape
    p = PATCH_SIZE
    # patchify exactly like the PyTorch view/permute/view sequence
    xp = x.reshape(B, C, H // p, p, W // p, p)
    xp = jnp.transpose(xp, (0, 2, 4, 1, 3, 5)).reshape(B, -1, p * p * C)
    # prepend one zero row per image as the cls slot; the fused kernel adds
    # the cls token / patch bias / positional embedding itself.
    xp_tok = jnp.concatenate(
        [jnp.zeros((B, 1, p * p * C), xp.dtype), xp], axis=1)    # (B, S, PATCH_DIM)

    blk = params["blocks"]
    return _vit_call(
        xp_tok, params["patch_w"], params["patch_b"], params["cls"],
        params["pos"], _HEAD_MASK,
        blk["ln1_g"], blk["ln1_b"], blk["wq"], blk["bq"], blk["wk"], blk["bk"],
        blk["wv"], blk["bv"], blk["wo"], blk["bo"], blk["ln2_g"], blk["ln2_b"],
        blk["w1"], blk["b1"], blk["w2"], blk["b2"],
        params["lnf_g"], params["lnf_b"])


if __name__ == "__main__":
    key = jax.random.PRNGKey(0)
    k_params, k_x = jax.random.split(key)
    params = init_params(k_params)
    x = jax.random.normal(
        k_x, (BATCH, CHANNELS, IMAGE_SIZE, IMAGE_SIZE), dtype=jnp.float32)

    out = jax.jit(vit_forward)(params, x)
    out = jax.block_until_ready(out)
    assert out.shape == (BATCH, EMBED_DIM)
    assert bool(jnp.all(jnp.isfinite(out)))
    print("KERNEL_OK")
</pallas_src>

<mosaic_0001>
module attributes {stable_mosaic.version = 11 : i64} {
  func.func @_vit_kernel(%arg0: memref<2x17x48xf32, #tpu.memory_space<vmem>>, %arg1: memref<48x32xf32, #tpu.memory_space<vmem>>, %arg2: memref<1x32xf32, #tpu.memory_space<vmem>>, %arg3: memref<1x32xf32, #tpu.memory_space<vmem>>, %arg4: memref<17x32xf32, #tpu.memory_space<vmem>>, %arg5: memref<32x32xf32, #tpu.memory_space<vmem>>, %arg6: memref<2x1x32xf32, #tpu.memory_space<vmem>>, %arg7: memref<2x1x32xf32, #tpu.memory_space<vmem>>, %arg8: memref<2x32x32xf32, #tpu.memory_space<vmem>>, %arg9: memref<2x1x32xf32, #tpu.memory_space<vmem>>, %arg10: memref<2x32x32xf32, #tpu.memory_space<vmem>>, %arg11: memref<2x1x32xf32, #tpu.memory_space<vmem>>, %arg12: memref<2x32x32xf32, #tpu.memory_space<vmem>>, %arg13: memref<2x1x32xf32, #tpu.memory_space<vmem>>, %arg14: memref<2x32x32xf32, #tpu.memory_space<vmem>>, %arg15: memref<2x1x32xf32, #tpu.memory_space<vmem>>, %arg16: memref<2x1x32xf32, #tpu.memory_space<vmem>>, %arg17: memref<2x1x32xf32, #tpu.memory_space<vmem>>, %arg18: memref<2x32x64xf32, #tpu.memory_space<vmem>>, %arg19: memref<2x1x64xf32, #tpu.memory_space<vmem>>, %arg20: memref<2x64x32xf32, #tpu.memory_space<vmem>>, %arg21: memref<2x1x32xf32, #tpu.memory_space<vmem>>, %arg22: memref<1x32xf32, #tpu.memory_space<vmem>>, %arg23: memref<1x32xf32, #tpu.memory_space<vmem>>, %arg24: memref<2x32xf32, #tpu.memory_space<vmem>>) attributes {dimension_semantics = [], scalar_prefetch = 0 : i64, scratch_operands = 0 : i64, tpu.core_type = #tpu.core_type<tc>} {
    %c0 = arith.constant 0 : index
    %c0_0 = arith.constant 0 : index
    %0 = vector.load %arg1[%c0, %c0_0] : memref<48x32xf32, #tpu.memory_space<vmem>>, vector<48x32xf32>
    %c0_1 = arith.constant 0 : index
    %c0_2 = arith.constant 0 : index
    %1 = vector.load %arg4[%c0_1, %c0_2] : memref<17x32xf32, #tpu.memory_space<vmem>>, vector<17x32xf32>
    %c0_3 = arith.constant 0 : index
    %c0_4 = arith.constant 0 : index
    %2 = vector.load %arg5[%c0_3, %c0_4] : memref<32x32xf32, #tpu.memory_space<vmem>>, vector<32x32xf32>
    %3 = tpu.iota {dimensions = array<i32: 0>} : vector<17x32xi32>
    %c0_i32 = arith.constant 0 : i32
    %4 = vector.broadcast %c0_i32 : i32 to vector<17x32xi32>
    %5 = arith.cmpi eq, %3, %4 : vector<17x32xi32>
    %c0_5 = arith.constant 0 : index
    %c0_6 = arith.constant 0 : index
    %6 = vector.load %arg3[%c0_5, %c0_6] : memref<1x32xf32, #tpu.memory_space<vmem>>, vector<1x32xf32>
    %c0_7 = arith.constant 0 : index
    %c0_8 = arith.constant 0 : index
    %7 = vector.load %arg2[%c0_7, %c0_8] : memref<1x32xf32, #tpu.memory_space<vmem>>, vector<1x32xf32>
    %8 = vector.shape_cast %6 : vector<1x32xf32> to vector<1x32xf32>
    %9 = vector.broadcast %8 : vector<1x32xf32> to vector<17x32xf32>
    %10 = vector.shape_cast %7 : vector<1x32xf32> to vector<1x32xf32>
    %11 = vector.broadcast %10 : vector<1x32xf32> to vector<17x32xf32>
    %12 = arith.select %5, %9, %11 : vector<17x32xi1>, vector<17x32xf32>
    %13 = arith.addf %12, %1 : vector<17x32xf32>
    %c0_9 = arith.constant 0 : index
    %c0_10 = arith.constant 0 : index
    %c0_11 = arith.constant 0 : index
    %14 = vector.load %arg0[%c0_9, %c0_10, %c0_11] : memref<2x17x48xf32, #tpu.memory_space<vmem>>, vector<1x17x48xf32>
    %15 = vector.shape_cast %14 : vector<1x17x48xf32> to vector<17x48xf32>
    %cst = arith.constant dense<0.000000e+00> : vector<17x32xf32>
    %16 = tpu.matmul %15, %0, %cst {dimension_numbers = #tpu.dot_dimension_numbers<[1], [0], [0], [1], [0, 0, 1, 1], [], []>} : vector<17x48xf32>, vector<48x32xf32>, vector<17x32xf32> -> vector<17x32xf32>
    %17 = arith.addf %16, %13 : vector<17x32xf32>
    %c1 = arith.constant 1 : index
    %c0_12 = arith.constant 0 : index
    %c0_13 = arith.constant 0 : index
    %18 = vector.load %arg0[%c1, %c0_12, %c0_13] : memref<2x17x48xf32, #tpu.memory_space<vmem>>, vector<1x17x48xf32>
    %19 = vector.shape_cast %18 : vector<1x17x48xf32> to vector<17x48xf32>
    %cst_14 = arith.constant dense<0.000000e+00> : vector<17x32xf32>
    %20 = tpu.matmul %19, %0, %cst_14 {dimension_numbers = #tpu.dot_dimension_numbers<[1], [0], [0], [1], [0, 0, 1, 1], [], []>} : vector<17x48xf32>, vector<48x32xf32>, vector<17x32xf32> -> vector<17x32xf32>
    %21 = arith.addf %20, %13 : vector<17x32xf32>
    %c0_15 = arith.constant 0 : index
    %c0_16 = arith.constant 0 : index
    %c0_17 = arith.constant 0 : index
    %22 = vector.load %arg6[%c0_15, %c0_16, %c0_17] : memref<2x1x32xf32, #tpu.memory_space<vmem>>, vector<1x1x32xf32>
    %23 = vector.shape_cast %22 : vector<1x1x32xf32> to vector<1x32xf32>
    %c0_18 = arith.constant 0 : index
    %c0_19 = arith.constant 0 : index
    %c0_20 = arith.constant 0 : index
    %24 = vector.load %arg7[%c0_18, %c0_19, %c0_20] : memref<2x1x32xf32, #tpu.memory_space<vmem>>, vector<1x1x32xf32>
    %25 = vector.shape_cast %24 : vector<1x1x32xf32> to vector<1x32xf32>
    %c0_21 = arith.constant 0 : index
    %c0_22 = arith.constant 0 : index
    %c0_23 = arith.constant 0 : index
    %26 = vector.load %arg8[%c0_21, %c0_22, %c0_23] : memref<2x32x32xf32, #tpu.memory_space<vmem>>, vector<1x32x32xf32>
    %27 = vector.shape_cast %26 : vector<1x32x32xf32> to vector<32x32xf32>
    %c0_24 = arith.constant 0 : index
    %c0_25 = arith.constant 0 : index
    %c0_26 = arith.constant 0 : index
    %28 = vector.load %arg9[%c0_24, %c0_25, %c0_26] : memref<2x1x32xf32, #tpu.memory_space<vmem>>, vector<1x1x32xf32>
    %29 = vector.shape_cast %28 : vector<1x1x32xf32> to vector<1x32xf32>
    %c0_27 = arith.constant 0 : index
    %c0_28 = arith.constant 0 : index
    %c0_29 = arith.constant 0 : index
    %30 = vector.load %arg10[%c0_27, %c0_28, %c0_29] : memref<2x32x32xf32, #tpu.memory_space<vmem>>, vector<1x32x32xf32>
    %31 = vector.shape_cast %30 : vector<1x32x32xf32> to vector<32x32xf32>
    %c0_30 = arith.constant 0 : index
    %c0_31 = arith.constant 0 : index
    %c0_32 = arith.constant 0 : index
    %32 = vector.load %arg11[%c0_30, %c0_31, %c0_32] : memref<2x1x32xf32, #tpu.memory_space<vmem>>, vector<1x1x32xf32>
    %33 = vector.shape_cast %32 : vector<1x1x32xf32> to vector<1x32xf32>
    %c0_33 = arith.constant 0 : index
    %c0_34 = arith.constant 0 : index
    %c0_35 = arith.constant 0 : index
    %34 = vector.load %arg12[%c0_33, %c0_34, %c0_35] : memref<2x32x32xf32, #tpu.memory_space<vmem>>, vector<1x32x32xf32>
    %35 = vector.shape_cast %34 : vector<1x32x32xf32> to vector<32x32xf32>
    %c0_36 = arith.constant 0 : index
    %c0_37 = arith.constant 0 : index
    %c0_38 = arith.constant 0 : index
    %36 = vector.load %arg13[%c0_36, %c0_37, %c0_38] : memref<2x1x32xf32, #tpu.memory_space<vmem>>, vector<1x1x32xf32>
    %37 = vector.shape_cast %36 : vector<1x1x32xf32> to vector<1x32xf32>
    %c0_39 = arith.constant 0 : index
    %c0_40 = arith.constant 0 : index
    %c0_41 = arith.constant 0 : index
    %38 = vector.load %arg14[%c0_39, %c0_40, %c0_41] : memref<2x32x32xf32, #tpu.memory_space<vmem>>, vector<1x32x32xf32>
    %39 = vector.shape_cast %38 : vector<1x32x32xf32> to vector<32x32xf32>
    %c0_42 = arith.constant 0 : index
    %c0_43 = arith.constant 0 : index
    %c0_44 = arith.constant 0 : index
    %40 = vector.load %arg15[%c0_42, %c0_43, %c0_44] : memref<2x1x32xf32, #tpu.memory_space<vmem>>, vector<1x1x32xf32>
    %41 = vector.shape_cast %40 : vector<1x1x32xf32> to vector<1x32xf32>
    %c0_45 = arith.constant 0 : index
    %c0_46 = arith.constant 0 : index
    %c0_47 = arith.constant 0 : index
    %42 = vector.load %arg16[%c0_45, %c0_46, %c0_47] : memref<2x1x32xf32, #tpu.memory_space<vmem>>, vector<1x1x32xf32>
    %43 = vector.shape_cast %42 : vector<1x1x32xf32> to vector<1x32xf32>
    %c0_48 = arith.constant 0 : index
    %c0_49 = arith.constant 0 : index
    %c0_50 = arith.constant 0 : index
    %44 = vector.load %arg17[%c0_48, %c0_49, %c0_50] : memref<2x1x32xf32, #tpu.memory_space<vmem>>, vector<1x1x32xf32>
    %45 = vector.shape_cast %44 : vector<1x1x32xf32> to vector<1x32xf32>
    %c0_51 = arith.constant 0 : index
    %c0_52 = arith.constant 0 : index
    %c0_53 = arith.constant 0 : index
    %46 = vector.load %arg18[%c0_51, %c0_52, %c0_53] : memref<2x32x64xf32, #tpu.memory_space<vmem>>, vector<1x32x64xf32>
    %47 = vector.shape_cast %46 : vector<1x32x64xf32> to vector<32x64xf32>
    %c0_54 = arith.constant 0 : index
    %c0_55 = arith.constant 0 : index
    %c0_56 = arith.constant 0 : index
    %48 = vector.load %arg19[%c0_54, %c0_55, %c0_56] : memref<2x1x64xf32, #tpu.memory_space<vmem>>, vector<1x1x64xf32>
    %49 = vector.shape_cast %48 : vector<1x1x64xf32> to vector<1x64xf32>
    %c0_57 = arith.constant 0 : index
    %c0_58 = arith.constant 0 : index
    %c0_59 = arith.constant 0 : index
    %50 = vector.load %arg20[%c0_57, %c0_58, %c0_59] : memref<2x64x32xf32, #tpu.memory_space<vmem>>, vector<1x64x32xf32>
    %51 = vector.shape_cast %50 : vector<1x64x32xf32> to vector<64x32xf32>
    %c0_60 = arith.constant 0 : index
    %c0_61 = arith.constant 0 : index
    %c0_62 = arith.constant 0 : index
    %52 = vector.load %arg21[%c0_60, %c0_61, %c0_62] : memref<2x1x32xf32, #tpu.memory_space<vmem>>, vector<1x1x32xf32>
    %53 = vector.shape_cast %52 : vector<1x1x32xf32> to vector<1x32xf32>
    %cst_63 = arith.constant dense<0.000000e+00> : vector<17xf32>
    %54 = vector.multi_reduction <add>, %17, %cst_63 [1] : vector<17x32xf32> to vector<17xf32>
    %55 = vector.shape_cast %54 : vector<17xf32> to vector<17x1xf32>
    %cst_64 = arith.constant 3.200000e+01 : f32
    %56 = vector.broadcast %cst_64 : f32 to vector<17x1xf32>
    %57 = arith.divf %55, %56 : vector<17x1xf32>
    %58 = vector.broadcast %57 : vector<17x1xf32> to vector<17x32xf32>
    %59 = arith.subf %17, %58 : vector<17x32xf32>
    %60 = arith.mulf %59, %59 : vector<17x32xf32>
    %cst_65 = arith.constant dense<0.000000e+00> : vector<17xf32>
    %61 = vector.multi_reduction <add>, %60, %cst_65 [1] : vector<17x32xf32> to vector<17xf32>
    %62 = vector.shape_cast %61 : vector<17xf32> to vector<17x1xf32>
    %cst_66 = arith.constant 3.200000e+01 : f32
    %63 = vector.broadcast %cst_66 : f32 to vector<17x1xf32>
    %64 = arith.divf %62, %63 : vector<17x1xf32>
    %65 = vector.broadcast %57 : vector<17x1xf32> to vector<17x32xf32>
    %66 = arith.subf %17, %65 : vector<17x32xf32>
    %cst_67 = arith.constant 9.99999974E-6 : f32
    %67 = vector.broadcast %cst_67 : f32 to vector<17x1xf32>
    %68 = arith.addf %64, %67 : vector<17x1xf32>
    %69 = math.rsqrt %68 : vector<17x1xf32>
    %70 = vector.broadcast %69 : vector<17x1xf32> to vector<17x32xf32>
    %71 = arith.mulf %66, %70 : vector<17x32xf32>
    %72 = vector.broadcast %23 : vector<1x32xf32> to vector<17x32xf32>
    %73 = arith.mulf %71, %72 : vector<17x32xf32>
    %74 = vector.broadcast %25 : vector<1x32xf32> to vector<17x32xf32>
    %75 = arith.addf %73, %74 : vector<17x32xf32>
    %cst_68 = arith.constant dense<0.000000e+00> : vector<17xf32>
    %76 = vector.multi_reduction <add>, %21, %cst_68 [1] : vector<17x32xf32> to vector<17xf32>
    %77 = vector.shape_cast %76 : vector<17xf32> to vector<17x1xf32>
    %cst_69 = arith.constant 3.200000e+01 : f32
    %78 = vector.broadcast %cst_69 : f32 to vector<17x1xf32>
    %79 = arith.divf %77, %78 : vector<17x1xf32>
    %80 = vector.broadcast %79 : vector<17x1xf32> to vector<17x32xf32>
    %81 = arith.subf %21, %80 : vector<17x32xf32>
    %82 = arith.mulf %81, %81 : vector<17x32xf32>
    %cst_70 = arith.constant dense<0.000000e+00> : vector<17xf32>
    %83 = vector.multi_reduction <add>, %82, %cst_70 [1] : vector<17x32xf32> to vector<17xf32>
    %84 = vector.shape_cast %83 : vector<17xf32> to vector<17x1xf32>
    %cst_71 = arith.constant 3.200000e+01 : f32
    %85 = vector.broadcast %cst_71 : f32 to vector<17x1xf32>
    %86 = arith.divf %84, %85 : vector<17x1xf32>
    %87 = vector.broadcast %79 : vector<17x1xf32> to vector<17x32xf32>
    %88 = arith.subf %21, %87 : vector<17x32xf32>
    %cst_72 = arith.constant 9.99999974E-6 : f32
    %89 = vector.broadcast %cst_72 : f32 to vector<17x1xf32>
    %90 = arith.addf %86, %89 : vector<17x1xf32>
    %91 = math.rsqrt %90 : vector<17x1xf32>
    %92 = vector.broadcast %91 : vector<17x1xf32> to vector<17x32xf32>
    %93 = arith.mulf %88, %92 : vector<17x32xf32>
    %94 = vector.broadcast %23 : vector<1x32xf32> to vector<17x32xf32>
    %95 = arith.mulf %93, %94 : vector<17x32xf32>
    %96 = vector.broadcast %25 : vector<1x32xf32> to vector<17x32xf32>
    %97 = arith.addf %95, %96 : vector<17x32xf32>
    %cst_73 = arith.constant dense<0.000000e+00> : vector<17x32xf32>
    %98 = tpu.matmul %75, %27, %cst_73 {dimension_numbers = #tpu.dot_dimension_numbers<[1], [0], [0], [1], [0, 0, 1, 1], [], []>} : vector<17x32xf32>, vector<32x32xf32>, vector<17x32xf32> -> vector<17x32xf32>
    %99 = vector.broadcast %29 : vector<1x32xf32> to vector<17x32xf32>
    %100 = arith.addf %98, %99 : vector<17x32xf32>
    %cst_74 = arith.constant dense<0.000000e+00> : vector<17x32xf32>
    %101 = tpu.matmul %97, %27, %cst_74 {dimension_numbers = #tpu.dot_dimension_numbers<[1], [0], [0], [1], [0, 0, 1, 1], [], []>} : vector<17x32xf32>, vector<32x32xf32>, vector<17x32xf32> -> vector<17x32xf32>
    %102 = vector.broadcast %29 : vector<1x32xf32> to vector<17x32xf32>
    %103 = arith.addf %101, %102 : vector<17x32xf32>
    %cst_75 = arith.constant dense<0.000000e+00> : vector<17x32xf32>
    %104 = tpu.matmul %75, %31, %cst_75 {dimension_numbers = #tpu.dot_dimension_numbers<[1], [0], [0], [1], [0, 0, 1, 1], [], []>} : vector<17x32xf32>, vector<32x32xf32>, vector<17x32xf32> -> vector<17x32xf32>
    %105 = vector.broadcast %33 : vector<1x32xf32> to vector<17x32xf32>
    %106 = arith.addf %104, %105 : vector<17x32xf32>
    %cst_76 = arith.constant dense<0.000000e+00> : vector<17x32xf32>
    %107 = tpu.matmul %97, %31, %cst_76 {dimension_numbers = #tpu.dot_dimension_numbers<[1], [0], [0], [1], [0, 0, 1, 1], [], []>} : vector<17x32xf32>, vector<32x32xf32>, vector<17x32xf32> -> vector<17x32xf32>
    %108 = vector.broadcast %33 : vector<1x32xf32> to vector<17x32xf32>
    %109 = arith.addf %107, %108 : vector<17x32xf32>
    %cst_77 = arith.constant dense<0.000000e+00> : vector<17x32xf32>
    %110 = tpu.matmul %75, %35, %cst_77 {dimension_numbers = #tpu.dot_dimension_numbers<[1], [0], [0], [1], [0, 0, 1, 1], [], []>} : vector<17x32xf32>, vector<32x32xf32>, vector<17x32xf32> -> vector<17x32xf32>
    %111 = vector.broadcast %37 : vector<1x32xf32> to vector<17x32xf32>
    %112 = arith.addf %110, %111 : vector<17x32xf32>
    %cst_78 = arith.constant dense<0.000000e+00> : vector<17x32xf32>
    %113 = tpu.matmul %97, %35, %cst_78 {dimension_numbers = #tpu.dot_dimension_numbers<[1], [0], [0], [1], [0, 0, 1, 1], [], []>} : vector<17x32xf32>, vector<32x32xf32>, vector<17x32xf32> -> vector<17x32xf32>
    %114 = vector.broadcast %37 : vector<1x32xf32> to vector<17x32xf32>
    %115 = arith.addf %113, %114 : vector<17x32xf32>
    %116 = arith.mulf %100, %106 : vector<17x32xf32>
    %cst_79 = arith.constant dense<0.000000e+00> : vector<17x32xf32>
    %117 = tpu.matmul %116, %2, %cst_79 {dimension_numbers = #tpu.dot_dimension_numbers<[1], [0], [0], [1], [0, 0, 1, 1], [], []>} : vector<17x32xf32>, vector<32x32xf32>, vector<17x32xf32> -> vector<17x32xf32>
    %cst_80 = arith.constant 0.353553385 : f32
    %118 = vector.broadcast %cst_80 : f32 to vector<17x32xf32>
    %119 = arith.mulf %117, %118 : vector<17x32xf32>
    %120 = arith.mulf %100, %109 : vector<17x32xf32>
    %cst_81 = arith.constant dense<0.000000e+00> : vector<17x32xf32>
    %121 = tpu.matmul %120, %2, %cst_81 {dimension_numbers = #tpu.dot_dimension_numbers<[1], [0], [0], [1], [0, 0, 1, 1], [], []>} : vector<17x32xf32>, vector<32x32xf32>, vector<17x32xf32> -> vector<17x32xf32>
    %cst_82 = arith.constant 0.353553385 : f32
    %122 = vector.broadcast %cst_82 : f32 to vector<17x32xf32>
    %123 = arith.mulf %121, %122 : vector<17x32xf32>
    %124 = arith.mulf %103, %106 : vector<17x32xf32>
    %cst_83 = arith.constant dense<0.000000e+00> : vector<17x32xf32>
    %125 = tpu.matmul %124, %2, %cst_83 {dimension_numbers = #tpu.dot_dimension_numbers<[1], [0], [0], [1], [0, 0, 1, 1], [], []>} : vector<17x32xf32>, vector<32x32xf32>, vector<17x32xf32> -> vector<17x32xf32>
    %cst_84 = arith.constant 0.353553385 : f32
    %126 = vector.broadcast %cst_84 : f32 to vector<17x32xf32>
    %127 = arith.mulf %125, %126 : vector<17x32xf32>
    %128 = arith.mulf %103, %109 : vector<17x32xf32>
    %cst_85 = arith.constant dense<0.000000e+00> : vector<17x32xf32>
    %129 = tpu.matmul %128, %2, %cst_85 {dimension_numbers = #tpu.dot_dimension_numbers<[1], [0], [0], [1], [0, 0, 1, 1], [], []>} : vector<17x32xf32>, vector<32x32xf32>, vector<17x32xf32> -> vector<17x32xf32>
    %cst_86 = arith.constant 0.353553385 : f32
    %130 = vector.broadcast %cst_86 : f32 to vector<17x32xf32>
    %131 = arith.mulf %129, %130 : vector<17x32xf32>
    %132 = arith.maximumf %119, %123 : vector<17x32xf32>
    %133 = arith.subf %119, %132 : vector<17x32xf32>
    %134 = math.exp %133 : vector<17x32xf32>
    %135 = arith.subf %123, %132 : vector<17x32xf32>
    %136 = math.exp %135 : vector<17x32xf32>
    %137 = arith.addf %134, %136 : vector<17x32xf32>
    %138 = tpu.reciprocal %137 {approx = true} : vector<17x32xf32> -> vector<17x32xf32>
    %139 = arith.mulf %134, %138 : vector<17x32xf32>
    %140 = arith.mulf %139, %112 : vector<17x32xf32>
    %141 = arith.mulf %136, %138 : vector<17x32xf32>
    %142 = arith.mulf %141, %115 : vector<17x32xf32>
    %143 = arith.addf %140, %142 : vector<17x32xf32>
    %144 = arith.maximumf %127, %131 : vector<17x32xf32>
    %145 = arith.subf %127, %144 : vector<17x32xf32>
    %146 = math.exp %145 : vector<17x32xf32>
    %147 = arith.subf %131, %144 : vector<17x32xf32>
    %148 = math.exp %147 : vector<17x32xf32>
    %149 = arith.addf %146, %148 : vector<17x32xf32>
    %150 = tpu.reciprocal %149 {approx = true} : vector<17x32xf32> -> vector<17x32xf32>
    %151 = arith.mulf %146, %150 : vector<17x32xf32>
    %152 = arith.mulf %151, %112 : vector<17x32xf32>
    %153 = arith.mulf %148, %150 : vector<17x32xf32>
    %154 = arith.mulf %153, %115 : vector<17x32xf32>
    %155 = arith.addf %152, %154 : vector<17x32xf32>
    %cst_87 = arith.constant dense<0.000000e+00> : vector<17x32xf32>
    %156 = tpu.matmul %143, %39, %cst_87 {dimension_numbers = #tpu.dot_dimension_numbers<[1], [0], [0], [1], [0, 0, 1, 1], [], []>} : vector<17x32xf32>, vector<32x32xf32>, vector<17x32xf32> -> vector<17x32xf32>
    %157 = arith.addf %17, %156 : vector<17x32xf32>
    %158 = vector.broadcast %41 : vector<1x32xf32> to vector<17x32xf32>
    %159 = arith.addf %157, %158 : vector<17x32xf32>
    %cst_88 = arith.constant dense<0.000000e+00> : vector<17x32xf32>
    %160 = tpu.matmul %155, %39, %cst_88 {dimension_numbers = #tpu.dot_dimension_numbers<[1], [0], [0], [1], [0, 0, 1, 1], [], []>} : vector<17x32xf32>, vector<32x32xf32>, vector<17x32xf32> -> vector<17x32xf32>
    %161 = arith.addf %21, %160 : vector<17x32xf32>
    %162 = vector.broadcast %41 : vector<1x32xf32> to vector<17x32xf32>
    %163 = arith.addf %161, %162 : vector<17x32xf32>
    %cst_89 = arith.constant dense<0.000000e+00> : vector<17xf32>
    %164 = vector.multi_reduction <add>, %159, %cst_89 [1] : vector<17x32xf32> to vector<17xf32>
    %165 = vector.shape_cast %164 : vector<17xf32> to vector<17x1xf32>
    %cst_90 = arith.constant 3.200000e+01 : f32
    %166 = vector.broadcast %cst_90 : f32 to vector<17x1xf32>
    %167 = arith.divf %165, %166 : vector<17x1xf32>
    %168 = vector.broadcast %167 : vector<17x1xf32> to vector<17x32xf32>
    %169 = arith.subf %159, %168 : vector<17x32xf32>
    %170 = arith.mulf %169, %169 : vector<17x32xf32>
    %cst_91 = arith.constant dense<0.000000e+00> : vector<17xf32>
    %171 = vector.multi_reduction <add>, %170, %cst_91 [1] : vector<17x32xf32> to vector<17xf32>
    %172 = vector.shape_cast %171 : vector<17xf32> to vector<17x1xf32>
    %cst_92 = arith.constant 3.200000e+01 : f32
    %173 = vector.broadcast %cst_92 : f32 to vector<17x1xf32>
    %174 = arith.divf %172, %173 : vector<17x1xf32>
    %175 = vector.broadcast %167 : vector<17x1xf32> to vector<17x32xf32>
    %176 = arith.subf %159, %175 : vector<17x32xf32>
    %cst_93 = arith.constant 9.99999974E-6 : f32
    %177 = vector.broadcast %cst_93 : f32 to vector<17x1xf32>
    %178 = arith.addf %174, %177 : vector<17x1xf32>
    %179 = math.rsqrt %178 : vector<17x1xf32>
    %180 = vector.broadcast %179 : vector<17x1xf32> to vector<17x32xf32>
    %181 = arith.mulf %176, %180 : vector<17x32xf32>
    %182 = vector.broadcast %43 : vector<1x32xf32> to vector<17x32xf32>
    %183 = arith.mulf %181, %182 : vector<17x32xf32>
    %184 = vector.broadcast %45 : vector<1x32xf32> to vector<17x32xf32>
    %185 = arith.addf %183, %184 : vector<17x32xf32>
    %cst_94 = arith.constant dense<0.000000e+00> : vector<17xf32>
    %186 = vector.multi_reduction <add>, %163, %cst_94 [1] : vector<17x32xf32> to vector<17xf32>
    %187 = vector.shape_cast %186 : vector<17xf32> to vector<17x1xf32>
    %cst_95 = arith.constant 3.200000e+01 : f32
    %188 = vector.broadcast %cst_95 : f32 to vector<17x1xf32>
    %189 = arith.divf %187, %188 : vector<17x1xf32>
    %190 = vector.broadcast %189 : vector<17x1xf32> to vector<17x32xf32>
    %191 = arith.subf %163, %190 : vector<17x32xf32>
    %192 = arith.mulf %191, %191 : vector<17x32xf32>
    %cst_96 = arith.constant dense<0.000000e+00> : vector<17xf32>
    %193 = vector.multi_reduction <add>, %192, %cst_96 [1] : vector<17x32xf32> to vector<17xf32>
    %194 = vector.shape_cast %193 : vector<17xf32> to vector<17x1xf32>
    %cst_97 = arith.constant 3.200000e+01 : f32
    %195 = vector.broadcast %cst_97 : f32 to vector<17x1xf32>
    %196 = arith.divf %194, %195 : vector<17x1xf32>
    %197 = vector.broadcast %189 : vector<17x1xf32> to vector<17x32xf32>
    %198 = arith.subf %163, %197 : vector<17x32xf32>
    %cst_98 = arith.constant 9.99999974E-6 : f32
    %199 = vector.broadcast %cst_98 : f32 to vector<17x1xf32>
    %200 = arith.addf %196, %199 : vector<17x1xf32>
    %201 = math.rsqrt %200 : vector<17x1xf32>
    %202 = vector.broadcast %201 : vector<17x1xf32> to vector<17x32xf32>
    %203 = arith.mulf %198, %202 : vector<17x32xf32>
    %204 = vector.broadcast %43 : vector<1x32xf32> to vector<17x32xf32>
    %205 = arith.mulf %203, %204 : vector<17x32xf32>
    %206 = vector.broadcast %45 : vector<1x32xf32> to vector<17x32xf32>
    %207 = arith.addf %205, %206 : vector<17x32xf32>
    %cst_99 = arith.constant dense<0.000000e+00> : vector<17x64xf32>
    %208 = tpu.matmul %185, %47, %cst_99 {dimension_numbers = #tpu.dot_dimension_numbers<[1], [0], [0], [1], [0, 0, 1, 1], [], []>} : vector<17x32xf32>, vector<32x64xf32>, vector<17x64xf32> -> vector<17x64xf32>
    %209 = vector.broadcast %49 : vector<1x64xf32> to vector<17x64xf32>
    %210 = arith.addf %208, %209 : vector<17x64xf32>
    %cst_100 = arith.constant 5.000000e-01 : f32
    %211 = vector.broadcast %cst_100 : f32 to vector<17x64xf32>
    %212 = arith.mulf %211, %210 : vector<17x64xf32>
    %cst_101 = arith.constant 0.707106769 : f32
    %213 = vector.broadcast %cst_101 : f32 to vector<17x64xf32>
    %214 = arith.mulf %210, %213 : vector<17x64xf32>
    %215 = math.erf %214 : vector<17x64xf32>
    %cst_102 = arith.constant 1.000000e+00 : f32
    %216 = vector.broadcast %cst_102 : f32 to vector<17x64xf32>
    %217 = arith.addf %216, %215 : vector<17x64xf32>
    %218 = arith.mulf %212, %217 : vector<17x64xf32>
    %cst_103 = arith.constant dense<0.000000e+00> : vector<17x64xf32>
    %219 = tpu.matmul %207, %47, %cst_103 {dimension_numbers = #tpu.dot_dimension_numbers<[1], [0], [0], [1], [0, 0, 1, 1], [], []>} : vector<17x32xf32>, vector<32x64xf32>, vector<17x64xf32> -> vector<17x64xf32>
    %220 = vector.broadcast %49 : vector<1x64xf32> to vector<17x64xf32>
    %221 = arith.addf %219, %220 : vector<17x64xf32>
    %cst_104 = arith.constant 5.000000e-01 : f32
    %222 = vector.broadcast %cst_104 : f32 to vector<17x64xf32>
    %223 = arith.mulf %222, %221 : vector<17x64xf32>
    %cst_105 = arith.constant 0.707106769 : f32
    %224 = vector.broadcast %cst_105 : f32 to vector<17x64xf32>
    %225 = arith.mulf %221, %224 : vector<17x64xf32>
    %226 = math.erf %225 : vector<17x64xf32>
    %cst_106 = arith.constant 1.000000e+00 : f32
    %227 = vector.broadcast %cst_106 : f32 to vector<17x64xf32>
    %228 = arith.addf %227, %226 : vector<17x64xf32>
    %229 = arith.mulf %223, %228 : vector<17x64xf32>
    %cst_107 = arith.constant dense<0.000000e+00> : vector<17x32xf32>
    %230 = tpu.matmul %218, %51, %cst_107 {dimension_numbers = #tpu.dot_dimension_numbers<[1], [0], [0], [1], [0, 0, 1, 1], [], []>} : vector<17x64xf32>, vector<64x32xf32>, vector<17x32xf32> -> vector<17x32xf32>
    %231 = arith.addf %159, %230 : vector<17x32xf32>
    %232 = vector.broadcast %53 : vector<1x32xf32> to vector<17x32xf32>
    %233 = arith.addf %231, %232 : vector<17x32xf32>
    %cst_108 = arith.constant dense<0.000000e+00> : vector<17x32xf32>
    %234 = tpu.matmul %229, %51, %cst_108 {dimension_numbers = #tpu.dot_dimension_numbers<[1], [0], [0], [1], [0, 0, 1, 1], [], []>} : vector<17x64xf32>, vector<64x32xf32>, vector<17x32xf32> -> vector<17x32xf32>
    %235 = arith.addf %163, %234 : vector<17x32xf32>
    %236 = vector.broadcast %53 : vector<1x32xf32> to vector<17x32xf32>
    %237 = arith.addf %235, %236 : vector<17x32xf32>
    %c1_109 = arith.constant 1 : index
    %c0_110 = arith.constant 0 : index
    %c0_111 = arith.constant 0 : index
    %238 = vector.load %arg6[%c1_109, %c0_110, %c0_111] : memref<2x1x32xf32, #tpu.memory_space<vmem>>, vector<1x1x32xf32>
    %239 = vector.shape_cast %238 : vector<1x1x32xf32> to vector<1x32xf32>
    %c1_112 = arith.constant 1 : index
    %c0_113 = arith.constant 0 : index
    %c0_114 = arith.constant 0 : index
    %240 = vector.load %arg7[%c1_112, %c0_113, %c0_114] : memref<2x1x32xf32, #tpu.memory_space<vmem>>, vector<1x1x32xf32>
    %241 = vector.shape_cast %240 : vector<1x1x32xf32> to vector<1x32xf32>
    %c1_115 = arith.constant 1 : index
    %c0_116 = arith.constant 0 : index
    %c0_117 = arith.constant 0 : index
    %242 = vector.load %arg8[%c1_115, %c0_116, %c0_117] : memref<2x32x32xf32, #tpu.memory_space<vmem>>, vector<1x32x32xf32>
    %243 = vector.shape_cast %242 : vector<1x32x32xf32> to vector<32x32xf32>
    %c1_118 = arith.constant 1 : index
    %c0_119 = arith.constant 0 : index
    %c0_120 = arith.constant 0 : index
    %244 = vector.load %arg9[%c1_118, %c0_119, %c0_120] : memref<2x1x32xf32, #tpu.memory_space<vmem>>, vector<1x1x32xf32>
    %245 = vector.shape_cast %244 : vector<1x1x32xf32> to vector<1x32xf32>
    %c1_121 = arith.constant 1 : index
    %c0_122 = arith.constant 0 : index
    %c0_123 = arith.constant 0 : index
    %246 = vector.load %arg10[%c1_121, %c0_122, %c0_123] : memref<2x32x32xf32, #tpu.memory_space<vmem>>, vector<1x32x32xf32>
    %247 = vector.shape_cast %246 : vector<1x32x32xf32> to vector<32x32xf32>
    %c1_124 = arith.constant 1 : index
    %c0_125 = arith.constant 0 : index
    %c0_126 = arith.constant 0 : index
    %248 = vector.load %arg11[%c1_124, %c0_125, %c0_126] : memref<2x1x32xf32, #tpu.memory_space<vmem>>, vector<1x1x32xf32>
    %249 = vector.shape_cast %248 : vector<1x1x32xf32> to vector<1x32xf32>
    %c1_127 = arith.constant 1 : index
    %c0_128 = arith.constant 0 : index
    %c0_129 = arith.constant 0 : index
    %250 = vector.load %arg12[%c1_127, %c0_128, %c0_129] : memref<2x32x32xf32, #tpu.memory_space<vmem>>, vector<1x32x32xf32>
    %251 = vector.shape_cast %250 : vector<1x32x32xf32> to vector<32x32xf32>
    %c1_130 = arith.constant 1 : index
    %c0_131 = arith.constant 0 : index
    %c0_132 = arith.constant 0 : index
    %252 = vector.load %arg13[%c1_130, %c0_131, %c0_132] : memref<2x1x32xf32, #tpu.memory_space<vmem>>, vector<1x1x32xf32>
    %253 = vector.shape_cast %252 : vector<1x1x32xf32> to vector<1x32xf32>
    %c1_133 = arith.constant 1 : index
    %c0_134 = arith.constant 0 : index
    %c0_135 = arith.constant 0 : index
    %254 = vector.load %arg14[%c1_133, %c0_134, %c0_135] : memref<2x32x32xf32, #tpu.memory_space<vmem>>, vector<1x32x32xf32>
    %255 = vector.shape_cast %254 : vector<1x32x32xf32> to vector<32x32xf32>
    %c1_136 = arith.constant 1 : index
    %c0_137 = arith.constant 0 : index
    %c0_138 = arith.constant 0 : index
    %256 = vector.load %arg15[%c1_136, %c0_137, %c0_138] : memref<2x1x32xf32, #tpu.memory_space<vmem>>, vector<1x1x32xf32>
    %257 = vector.shape_cast %256 : vector<1x1x32xf32> to vector<1x32xf32>
    %c1_139 = arith.constant 1 : index
    %c0_140 = arith.constant 0 : index
    %c0_141 = arith.constant 0 : index
    %258 = vector.load %arg16[%c1_139, %c0_140, %c0_141] : memref<2x1x32xf32, #tpu.memory_space<vmem>>, vector<1x1x32xf32>
    %259 = vector.shape_cast %258 : vector<1x1x32xf32> to vector<1x32xf32>
    %c1_142 = arith.constant 1 : index
    %c0_143 = arith.constant 0 : index
    %c0_144 = arith.constant 0 : index
    %260 = vector.load %arg17[%c1_142, %c0_143, %c0_144] : memref<2x1x32xf32, #tpu.memory_space<vmem>>, vector<1x1x32xf32>
    %261 = vector.shape_cast %260 : vector<1x1x32xf32> to vector<1x32xf32>
    %c1_145 = arith.constant 1 : index
    %c0_146 = arith.constant 0 : index
    %c0_147 = arith.constant 0 : index
    %262 = vector.load %arg18[%c1_145, %c0_146, %c0_147] : memref<2x32x64xf32, #tpu.memory_space<vmem>>, vector<1x32x64xf32>
    %263 = vector.shape_cast %262 : vector<1x32x64xf32> to vector<32x64xf32>
    %c1_148 = arith.constant 1 : index
    %c0_149 = arith.constant 0 : index
    %c0_150 = arith.constant 0 : index
    %264 = vector.load %arg19[%c1_148, %c0_149, %c0_150] : memref<2x1x64xf32, #tpu.memory_space<vmem>>, vector<1x1x64xf32>
    %265 = vector.shape_cast %264 : vector<1x1x64xf32> to vector<1x64xf32>
    %c1_151 = arith.constant 1 : index
    %c0_152 = arith.constant 0 : index
    %c0_153 = arith.constant 0 : index
    %266 = vector.load %arg20[%c1_151, %c0_152, %c0_153] : memref<2x64x32xf32, #tpu.memory_space<vmem>>, vector<1x64x32xf32>
    %267 = vector.shape_cast %266 : vector<1x64x32xf32> to vector<64x32xf32>
    %c1_154 = arith.constant 1 : index
    %c0_155 = arith.constant 0 : index
    %c0_156 = arith.constant 0 : index
    %268 = vector.load %arg21[%c1_154, %c0_155, %c0_156] : memref<2x1x32xf32, #tpu.memory_space<vmem>>, vector<1x1x32xf32>
    %269 = vector.shape_cast %268 : vector<1x1x32xf32> to vector<1x32xf32>
    %cst_157 = arith.constant dense<0.000000e+00> : vector<17xf32>
    %270 = vector.multi_reduction <add>, %233, %cst_157 [1] : vector<17x32xf32> to vector<17xf32>
    %271 = vector.shape_cast %270 : vector<17xf32> to vector<17x1xf32>
    %cst_158 = arith.constant 3.200000e+01 : f32
    %272 = vector.broadcast %cst_158 : f32 to vector<17x1xf32>
    %273 = arith.divf %271, %272 : vector<17x1xf32>
    %274 = vector.broadcast %273 : vector<17x1xf32> to vector<17x32xf32>
    %275 = arith.subf %233, %274 : vector<17x32xf32>
    %276 = arith.mulf %275, %275 : vector<17x32xf32>
    %cst_159 = arith.constant dense<0.000000e+00> : vector<17xf32>
    %277 = vector.multi_reduction <add>, %276, %cst_159 [1] : vector<17x32xf32> to vector<17xf32>
    %278 = vector.shape_cast %277 : vector<17xf32> to vector<17x1xf32>
    %cst_160 = arith.constant 3.200000e+01 : f32
    %279 = vector.broadcast %cst_160 : f32 to vector<17x1xf32>
    %280 = arith.divf %278, %279 : vector<17x1xf32>
    %281 = vector.broadcast %273 : vector<17x1xf32> to vector<17x32xf32>
    %282 = arith.subf %233, %281 : vector<17x32xf32>
    %cst_161 = arith.constant 9.99999974E-6 : f32
    %283 = vector.broadcast %cst_161 : f32 to vector<17x1xf32>
    %284 = arith.addf %280, %283 : vector<17x1xf32>
    %285 = math.rsqrt %284 : vector<17x1xf32>
    %286 = vector.broadcast %285 : vector<17x1xf32> to vector<17x32xf32>
    %287 = arith.mulf %282, %286 : vector<17x32xf32>
    %288 = vector.broadcast %239 : vector<1x32xf32> to vector<17x32xf32>
    %289 = arith.mulf %287, %288 : vector<17x32xf32>
    %290 = vector.broadcast %241 : vector<1x32xf32> to vector<17x32xf32>
    %291 = arith.addf %289, %290 : vector<17x32xf32>
    %cst_162 = arith.constant dense<0.000000e+00> : vector<17xf32>
    %292 = vector.multi_reduction <add>, %237, %cst_162 [1] : vector<17x32xf32> to vector<17xf32>
    %293 = vector.shape_cast %292 : vector<17xf32> to vector<17x1xf32>
    %cst_163 = arith.constant 3.200000e+01 : f32
    %294 = vector.broadcast %cst_163 : f32 to vector<17x1xf32>
    %295 = arith.divf %293, %294 : vector<17x1xf32>
    %296 = vector.broadcast %295 : vector<17x1xf32> to vector<17x32xf32>
    %297 = arith.subf %237, %296 : vector<17x32xf32>
    %298 = arith.mulf %297, %297 : vector<17x32xf32>
    %cst_164 = arith.constant dense<0.000000e+00> : vector<17xf32>
    %299 = vector.multi_reduction <add>, %298, %cst_164 [1] : vector<17x32xf32> to vector<17xf32>
    %300 = vector.shape_cast %299 : vector<17xf32> to vector<17x1xf32>
    %cst_165 = arith.constant 3.200000e+01 : f32
    %301 = vector.broadcast %cst_165 : f32 to vector<17x1xf32>
    %302 = arith.divf %300, %301 : vector<17x1xf32>
    %303 = vector.broadcast %295 : vector<17x1xf32> to vector<17x32xf32>
    %304 = arith.subf %237, %303 : vector<17x32xf32>
    %cst_166 = arith.constant 9.99999974E-6 : f32
    %305 = vector.broadcast %cst_166 : f32 to vector<17x1xf32>
    %306 = arith.addf %302, %305 : vector<17x1xf32>
    %307 = math.rsqrt %306 : vector<17x1xf32>
    %308 = vector.broadcast %307 : vector<17x1xf32> to vector<17x32xf32>
    %309 = arith.mulf %304, %308 : vector<17x32xf32>
    %310 = vector.broadcast %239 : vector<1x32xf32> to vector<17x32xf32>
    %311 = arith.mulf %309, %310 : vector<17x32xf32>
    %312 = vector.broadcast %241 : vector<1x32xf32> to vector<17x32xf32>
    %313 = arith.addf %311, %312 : vector<17x32xf32>
    %cst_167 = arith.constant dense<0.000000e+00> : vector<17x32xf32>
    %314 = tpu.matmul %291, %243, %cst_167 {dimension_numbers = #tpu.dot_dimension_numbers<[1], [0], [0], [1], [0, 0, 1, 1], [], []>} : vector<17x32xf32>, vector<32x32xf32>, vector<17x32xf32> -> vector<17x32xf32>
    %315 = vector.broadcast %245 : vector<1x32xf32> to vector<17x32xf32>
    %316 = arith.addf %314, %315 : vector<17x32xf32>
    %cst_168 = arith.constant dense<0.000000e+00> : vector<17x32xf32>
    %317 = tpu.matmul %313, %243, %cst_168 {dimension_numbers = #tpu.dot_dimension_numbers<[1], [0], [0], [1], [0, 0, 1, 1], [], []>} : vector<17x32xf32>, vector<32x32xf32>, vector<17x32xf32> -> vector<17x32xf32>
    %318 = vector.broadcast %245 : vector<1x32xf32> to vector<17x32xf32>
    %319 = arith.addf %317, %318 : vector<17x32xf32>
    %cst_169 = arith.constant dense<0.000000e+00> : vector<17x32xf32>
    %320 = tpu.matmul %291, %247, %cst_169 {dimension_numbers = #tpu.dot_dimension_numbers<[1], [0], [0], [1], [0, 0, 1, 1], [], []>} : vector<17x32xf32>, vector<32x32xf32>, vector<17x32xf32> -> vector<17x32xf32>
    %321 = vector.broadcast %249 : vector<1x32xf32> to vector<17x32xf32>
    %322 = arith.addf %320, %321 : vector<17x32xf32>
    %cst_170 = arith.constant dense<0.000000e+00> : vector<17x32xf32>
    %323 = tpu.matmul %313, %247, %cst_170 {dimension_numbers = #tpu.dot_dimension_numbers<[1], [0], [0], [1], [0, 0, 1, 1], [], []>} : vector<17x32xf32>, vector<32x32xf32>, vector<17x32xf32> -> vector<17x32xf32>
    %324 = vector.broadcast %249 : vector<1x32xf32> to vector<17x32xf32>
    %325 = arith.addf %323, %324 : vector<17x32xf32>
    %cst_171 = arith.constant dense<0.000000e+00> : vector<17x32xf32>
    %326 = tpu.matmul %291, %251, %cst_171 {dimension_numbers = #tpu.dot_dimension_numbers<[1], [0], [0], [1], [0, 0, 1, 1], [], []>} : vector<17x32xf32>, vector<32x32xf32>, vector<17x32xf32> -> vector<17x32xf32>
    %327 = vector.broadcast %253 : vector<1x32xf32> to vector<17x32xf32>
    %328 = arith.addf %326, %327 : vector<17x32xf32>
    %cst_172 = arith.constant dense<0.000000e+00> : vector<17x32xf32>
    %329 = tpu.matmul %313, %251, %cst_172 {dimension_numbers = #tpu.dot_dimension_numbers<[1], [0], [0], [1], [0, 0, 1, 1], [], []>} : vector<17x32xf32>, vector<32x32xf32>, vector<17x32xf32> -> vector<17x32xf32>
    %330 = vector.broadcast %253 : vector<1x32xf32> to vector<17x32xf32>
    %331 = arith.addf %329, %330 : vector<17x32xf32>
    %332 = arith.mulf %316, %322 : vector<17x32xf32>
    %cst_173 = arith.constant dense<0.000000e+00> : vector<17x32xf32>
    %333 = tpu.matmul %332, %2, %cst_173 {dimension_numbers = #tpu.dot_dimension_numbers<[1], [0], [0], [1], [0, 0, 1, 1], [], []>} : vector<17x32xf32>, vector<32x32xf32>, vector<17x32xf32> -> vector<17x32xf32>
    %cst_174 = arith.constant 0.353553385 : f32
    %334 = vector.broadcast %cst_174 : f32 to vector<17x32xf32>
    %335 = arith.mulf %333, %334 : vector<17x32xf32>
    %336 = arith.mulf %316, %325 : vector<17x32xf32>
    %cst_175 = arith.constant dense<0.000000e+00> : vector<17x32xf32>
    %337 = tpu.matmul %336, %2, %cst_175 {dimension_numbers = #tpu.dot_dimension_numbers<[1], [0], [0], [1], [0, 0, 1, 1], [], []>} : vector<17x32xf32>, vector<32x32xf32>, vector<17x32xf32> -> vector<17x32xf32>
    %cst_176 = arith.constant 0.353553385 : f32
    %338 = vector.broadcast %cst_176 : f32 to vector<17x32xf32>
    %339 = arith.mulf %337, %338 : vector<17x32xf32>
    %340 = arith.mulf %319, %322 : vector<17x32xf32>
    %cst_177 = arith.constant dense<0.000000e+00> : vector<17x32xf32>
    %341 = tpu.matmul %340, %2, %cst_177 {dimension_numbers = #tpu.dot_dimension_numbers<[1], [0], [0], [1], [0, 0, 1, 1], [], []>} : vector<17x32xf32>, vector<32x32xf32>, vector<17x32xf32> -> vector<17x32xf32>
    %cst_178 = arith.constant 0.353553385 : f32
    %342 = vector.broadcast %cst_178 : f32 to vector<17x32xf32>
    %343 = arith.mulf %341, %342 : vector<17x32xf32>
    %344 = arith.mulf %319, %325 : vector<17x32xf32>
    %cst_179 = arith.constant dense<0.000000e+00> : vector<17x32xf32>
    %345 = tpu.matmul %344, %2, %cst_179 {dimension_numbers = #tpu.dot_dimension_numbers<[1], [0], [0], [1], [0, 0, 1, 1], [], []>} : vector<17x32xf32>, vector<32x32xf32>, vector<17x32xf32> -> vector<17x32xf32>
    %cst_180 = arith.constant 0.353553385 : f32
    %346 = vector.broadcast %cst_180 : f32 to vector<17x32xf32>
    %347 = arith.mulf %345, %346 : vector<17x32xf32>
    %348 = arith.maximumf %335, %339 : vector<17x32xf32>
    %349 = arith.subf %335, %348 : vector<17x32xf32>
    %350 = math.exp %349 : vector<17x32xf32>
    %351 = arith.subf %339, %348 : vector<17x32xf32>
    %352 = math.exp %351 : vector<17x32xf32>
    %353 = arith.addf %350, %352 : vector<17x32xf32>
    %354 = tpu.reciprocal %353 {approx = true} : vector<17x32xf32> -> vector<17x32xf32>
    %355 = arith.mulf %350, %354 : vector<17x32xf32>
    %356 = arith.mulf %355, %328 : vector<17x32xf32>
    %357 = arith.mulf %352, %354 : vector<17x32xf32>
    %358 = arith.mulf %357, %331 : vector<17x32xf32>
    %359 = arith.addf %356, %358 : vector<17x32xf32>
    %360 = arith.maximumf %343, %347 : vector<17x32xf32>
    %361 = arith.subf %343, %360 : vector<17x32xf32>
    %362 = math.exp %361 : vector<17x32xf32>
    %363 = arith.subf %347, %360 : vector<17x32xf32>
    %364 = math.exp %363 : vector<17x32xf32>
    %365 = arith.addf %362, %364 : vector<17x32xf32>
    %366 = tpu.reciprocal %365 {approx = true} : vector<17x32xf32> -> vector<17x32xf32>
    %367 = arith.mulf %362, %366 : vector<17x32xf32>
    %368 = arith.mulf %367, %328 : vector<17x32xf32>
    %369 = arith.mulf %364, %366 : vector<17x32xf32>
    %370 = arith.mulf %369, %331 : vector<17x32xf32>
    %371 = arith.addf %368, %370 : vector<17x32xf32>
    %cst_181 = arith.constant dense<0.000000e+00> : vector<17x32xf32>
    %372 = tpu.matmul %359, %255, %cst_181 {dimension_numbers = #tpu.dot_dimension_numbers<[1], [0], [0], [1], [0, 0, 1, 1], [], []>} : vector<17x32xf32>, vector<32x32xf32>, vector<17x32xf32> -> vector<17x32xf32>
    %373 = arith.addf %233, %372 : vector<17x32xf32>
    %374 = vector.broadcast %257 : vector<1x32xf32> to vector<17x32xf32>
    %375 = arith.addf %373, %374 : vector<17x32xf32>
    %cst_182 = arith.constant dense<0.000000e+00> : vector<17x32xf32>
    %376 = tpu.matmul %371, %255, %cst_182 {dimension_numbers = #tpu.dot_dimension_numbers<[1], [0], [0], [1], [0, 0, 1, 1], [], []>} : vector<17x32xf32>, vector<32x32xf32>, vector<17x32xf32> -> vector<17x32xf32>
    %377 = arith.addf %237, %376 : vector<17x32xf32>
    %378 = vector.broadcast %257 : vector<1x32xf32> to vector<17x32xf32>
    %379 = arith.addf %377, %378 : vector<17x32xf32>
    %cst_183 = arith.constant dense<0.000000e+00> : vector<17xf32>
    %380 = vector.multi_reduction <add>, %375, %cst_183 [1] : vector<17x32xf32> to vector<17xf32>
    %381 = vector.shape_cast %380 : vector<17xf32> to vector<17x1xf32>
    %cst_184 = arith.constant 3.200000e+01 : f32
    %382 = vector.broadcast %cst_184 : f32 to vector<17x1xf32>
    %383 = arith.divf %381, %382 : vector<17x1xf32>
    %384 = vector.broadcast %383 : vector<17x1xf32> to vector<17x32xf32>
    %385 = arith.subf %375, %384 : vector<17x32xf32>
    %386 = arith.mulf %385, %385 : vector<17x32xf32>
    %cst_185 = arith.constant dense<0.000000e+00> : vector<17xf32>
    %387 = vector.multi_reduction <add>, %386, %cst_185 [1] : vector<17x32xf32> to vector<17xf32>
    %388 = vector.shape_cast %387 : vector<17xf32> to vector<17x1xf32>
    %cst_186 = arith.constant 3.200000e+01 : f32
    %389 = vector.broadcast %cst_186 : f32 to vector<17x1xf32>
    %390 = arith.divf %388, %389 : vector<17x1xf32>
    %391 = vector.broadcast %383 : vector<17x1xf32> to vector<17x32xf32>
    %392 = arith.subf %375, %391 : vector<17x32xf32>
    %cst_187 = arith.constant 9.99999974E-6 : f32
    %393 = vector.broadcast %cst_187 : f32 to vector<17x1xf32>
    %394 = arith.addf %390, %393 : vector<17x1xf32>
    %395 = math.rsqrt %394 : vector<17x1xf32>
    %396 = vector.broadcast %395 : vector<17x1xf32> to vector<17x32xf32>
    %397 = arith.mulf %392, %396 : vector<17x32xf32>
    %398 = vector.broadcast %259 : vector<1x32xf32> to vector<17x32xf32>
    %399 = arith.mulf %397, %398 : vector<17x32xf32>
    %400 = vector.broadcast %261 : vector<1x32xf32> to vector<17x32xf32>
    %401 = arith.addf %399, %400 : vector<17x32xf32>
    %cst_188 = arith.constant dense<0.000000e+00> : vector<17xf32>
    %402 = vector.multi_reduction <add>, %379, %cst_188 [1] : vector<17x32xf32> to vector<17xf32>
    %403 = vector.shape_cast %402 : vector<17xf32> to vector<17x1xf32>
    %cst_189 = arith.constant 3.200000e+01 : f32
    %404 = vector.broadcast %cst_189 : f32 to vector<17x1xf32>
    %405 = arith.divf %403, %404 : vector<17x1xf32>
    %406 = vector.broadcast %405 : vector<17x1xf32> to vector<17x32xf32>
    %407 = arith.subf %379, %406 : vector<17x32xf32>
    %408 = arith.mulf %407, %407 : vector<17x32xf32>
    %cst_190 = arith.constant dense<0.000000e+00> : vector<17xf32>
    %409 = vector.multi_reduction <add>, %408, %cst_190 [1] : vector<17x32xf32> to vector<17xf32>
    %410 = vector.shape_cast %409 : vector<17xf32> to vector<17x1xf32>
    %cst_191 = arith.constant 3.200000e+01 : f32
    %411 = vector.broadcast %cst_191 : f32 to vector<17x1xf32>
    %412 = arith.divf %410, %411 : vector<17x1xf32>
    %413 = vector.broadcast %405 : vector<17x1xf32> to vector<17x32xf32>
    %414 = arith.subf %379, %413 : vector<17x32xf32>
    %cst_192 = arith.constant 9.99999974E-6 : f32
    %415 = vector.broadcast %cst_192 : f32 to vector<17x1xf32>
    %416 = arith.addf %412, %415 : vector<17x1xf32>
    %417 = math.rsqrt %416 : vector<17x1xf32>
    %418 = vector.broadcast %417 : vector<17x1xf32> to vector<17x32xf32>
    %419 = arith.mulf %414, %418 : vector<17x32xf32>
    %420 = vector.broadcast %259 : vector<1x32xf32> to vector<17x32xf32>
    %421 = arith.mulf %419, %420 : vector<17x32xf32>
    %422 = vector.broadcast %261 : vector<1x32xf32> to vector<17x32xf32>
    %423 = arith.addf %421, %422 : vector<17x32xf32>
    %cst_193 = arith.constant dense<0.000000e+00> : vector<17x64xf32>
    %424 = tpu.matmul %401, %263, %cst_193 {dimension_numbers = #tpu.dot_dimension_numbers<[1], [0], [0], [1], [0, 0, 1, 1], [], []>} : vector<17x32xf32>, vector<32x64xf32>, vector<17x64xf32> -> vector<17x64xf32>
    %425 = vector.broadcast %265 : vector<1x64xf32> to vector<17x64xf32>
    %426 = arith.addf %424, %425 : vector<17x64xf32>
    %cst_194 = arith.constant 5.000000e-01 : f32
    %427 = vector.broadcast %cst_194 : f32 to vector<17x64xf32>
    %428 = arith.mulf %427, %426 : vector<17x64xf32>
    %cst_195 = arith.constant 0.707106769 : f32
    %429 = vector.broadcast %cst_195 : f32 to vector<17x64xf32>
    %430 = arith.mulf %426, %429 : vector<17x64xf32>
    %431 = math.erf %430 : vector<17x64xf32>
    %cst_196 = arith.constant 1.000000e+00 : f32
    %432 = vector.broadcast %cst_196 : f32 to vector<17x64xf32>
    %433 = arith.addf %432, %431 : vector<17x64xf32>
    %434 = arith.mulf %428, %433 : vector<17x64xf32>
    %cst_197 = arith.constant dense<0.000000e+00> : vector<17x64xf32>
    %435 = tpu.matmul %423, %263, %cst_197 {dimension_numbers = #tpu.dot_dimension_numbers<[1], [0], [0], [1], [0, 0, 1, 1], [], []>} : vector<17x32xf32>, vector<32x64xf32>, vector<17x64xf32> -> vector<17x64xf32>
    %436 = vector.broadcast %265 : vector<1x64xf32> to vector<17x64xf32>
    %437 = arith.addf %435, %436 : vector<17x64xf32>
    %cst_198 = arith.constant 5.000000e-01 : f32
    %438 = vector.broadcast %cst_198 : f32 to vector<17x64xf32>
    %439 = arith.mulf %438, %437 : vector<17x64xf32>
    %cst_199 = arith.constant 0.707106769 : f32
    %440 = vector.broadcast %cst_199 : f32 to vector<17x64xf32>
    %441 = arith.mulf %437, %440 : vector<17x64xf32>
    %442 = math.erf %441 : vector<17x64xf32>
    %cst_200 = arith.constant 1.000000e+00 : f32
    %443 = vector.broadcast %cst_200 : f32 to vector<17x64xf32>
    %444 = arith.addf %443, %442 : vector<17x64xf32>
    %445 = arith.mulf %439, %444 : vector<17x64xf32>
    %cst_201 = arith.constant dense<0.000000e+00> : vector<17x32xf32>
    %446 = tpu.matmul %434, %267, %cst_201 {dimension_numbers = #tpu.dot_dimension_numbers<[1], [0], [0], [1], [0, 0, 1, 1], [], []>} : vector<17x64xf32>, vector<64x32xf32>, vector<17x32xf32> -> vector<17x32xf32>
    %447 = arith.addf %375, %446 : vector<17x32xf32>
    %448 = vector.broadcast %269 : vector<1x32xf32> to vector<17x32xf32>
    %449 = arith.addf %447, %448 : vector<17x32xf32>
    %cst_202 = arith.constant dense<0.000000e+00> : vector<17x32xf32>
    %450 = tpu.matmul %445, %267, %cst_202 {dimension_numbers = #tpu.dot_dimension_numbers<[1], [0], [0], [1], [0, 0, 1, 1], [], []>} : vector<17x64xf32>, vector<64x32xf32>, vector<17x32xf32> -> vector<17x32xf32>
    %451 = arith.addf %379, %450 : vector<17x32xf32>
    %452 = vector.broadcast %269 : vector<1x32xf32> to vector<17x32xf32>
    %453 = arith.addf %451, %452 : vector<17x32xf32>
    %c0_203 = arith.constant 0 : index
    %c0_204 = arith.constant 0 : index
    %454 = vector.load %arg22[%c0_203, %c0_204] : memref<1x32xf32, #tpu.memory_space<vmem>>, vector<1x32xf32>
    %c0_205 = arith.constant 0 : index
    %c0_206 = arith.constant 0 : index
    %455 = vector.load %arg23[%c0_205, %c0_206] : memref<1x32xf32, #tpu.memory_space<vmem>>, vector<1x32xf32>
    %456 = vector.extract_strided_slice %449 {offsets = [0, 0], sizes = [1, 32], strides = [1, 1]} : vector<17x32xf32> to vector<1x32xf32>
    %cst_207 = arith.constant dense<0.000000e+00> : vector<1xf32>
    %457 = vector.multi_reduction <add>, %456, %cst_207 [1] : vector<1x32xf32> to vector<1xf32>
    %458 = vector.shape_cast %457 : vector<1xf32> to vector<1x1xf32>
    %cst_208 = arith.constant 3.200000e+01 : f32
    %459 = vector.broadcast %cst_208 : f32 to vector<1x1xf32>
    %460 = arith.divf %458, %459 : vector<1x1xf32>
    %461 = vector.broadcast %460 : vector<1x1xf32> to vector<1x32xf32>
    %462 = arith.subf %456, %461 : vector<1x32xf32>
    %463 = arith.mulf %462, %462 : vector<1x32xf32>
    %cst_209 = arith.constant dense<0.000000e+00> : vector<1xf32>
    %464 = vector.multi_reduction <add>, %463, %cst_209 [1] : vector<1x32xf32> to vector<1xf32>
    %465 = vector.shape_cast %464 : vector<1xf32> to vector<1x1xf32>
    %cst_210 = arith.constant 3.200000e+01 : f32
    %466 = vector.broadcast %cst_210 : f32 to vector<1x1xf32>
    %467 = arith.divf %465, %466 : vector<1x1xf32>
    %468 = vector.broadcast %460 : vector<1x1xf32> to vector<1x32xf32>
    %469 = arith.subf %456, %468 : vector<1x32xf32>
    %cst_211 = arith.constant 9.99999974E-6 : f32
    %470 = vector.broadcast %cst_211 : f32 to vector<1x1xf32>
    %471 = arith.addf %467, %470 : vector<1x1xf32>
    %472 = math.rsqrt %471 : vector<1x1xf32>
    %473 = vector.broadcast %472 : vector<1x1xf32> to vector<1x32xf32>
    %474 = arith.mulf %469, %473 : vector<1x32xf32>
    %475 = arith.mulf %474, %454 : vector<1x32xf32>
    %476 = arith.addf %475, %455 : vector<1x32xf32>
    %c0_212 = arith.constant 0 : index
    %c0_213 = arith.constant 0 : index
    %477 = vector.load %arg24[%c0_212, %c0_213] : memref<2x32xf32, #tpu.memory_space<vmem>>, vector<1x32xf32>
    tpu.vector_store %arg24[%c0_212, %c0_213], %476 {strides = array<i32>} : memref<2x32xf32, #tpu.memory_space<vmem>>, vector<1x32xf32>,
    %478 = vector.extract_strided_slice %453 {offsets = [0, 0], sizes = [1, 32], strides = [1, 1]} : vector<17x32xf32> to vector<1x32xf32>
    %cst_214 = arith.constant dense<0.000000e+00> : vector<1xf32>
    %479 = vector.multi_reduction <add>, %478, %cst_214 [1] : vector<1x32xf32> to vector<1xf32>
    %480 = vector.shape_cast %479 : vector<1xf32> to vector<1x1xf32>
    %cst_215 = arith.constant 3.200000e+01 : f32
    %481 = vector.broadcast %cst_215 : f32 to vector<1x1xf32>
    %482 = arith.divf %480, %481 : vector<1x1xf32>
    %483 = vector.broadcast %482 : vector<1x1xf32> to vector<1x32xf32>
    %484 = arith.subf %478, %483 : vector<1x32xf32>
    %485 = arith.mulf %484, %484 : vector<1x32xf32>
    %cst_216 = arith.constant dense<0.000000e+00> : vector<1xf32>
    %486 = vector.multi_reduction <add>, %485, %cst_216 [1] : vector<1x32xf32> to vector<1xf32>
    %487 = vector.shape_cast %486 : vector<1xf32> to vector<1x1xf32>
    %cst_217 = arith.constant 3.200000e+01 : f32
    %488 = vector.broadcast %cst_217 : f32 to vector<1x1xf32>
    %489 = arith.divf %487, %488 : vector<1x1xf32>
    %490 = vector.broadcast %482 : vector<1x1xf32> to vector<1x32xf32>
    %491 = arith.subf %478, %490 : vector<1x32xf32>
    %cst_218 = arith.constant 9.99999974E-6 : f32
    %492 = vector.broadcast %cst_218 : f32 to vector<1x1xf32>
    %493 = arith.addf %489, %492 : vector<1x1xf32>
    %494 = math.rsqrt %493 : vector<1x1xf32>
    %495 = vector.broadcast %494 : vector<1x1xf32> to vector<1x32xf32>
    %496 = arith.mulf %491, %495 : vector<1x32xf32>
    %497 = arith.mulf %496, %454 : vector<1x32xf32>
    %498 = arith.addf %497, %455 : vector<1x32xf32>
    %c1_219 = arith.constant 1 : index
    %c0_220 = arith.constant 0 : index
    %499 = vector.load %arg24[%c1_219, %c0_220] : memref<2x32xf32, #tpu.memory_space<vmem>>, vector<1x32xf32>
    tpu.vector_store %arg24[%c1_219, %c0_220], %498 {strides = array<i32>} : memref<2x32xf32, #tpu.memory_space<vmem>>, vector<1x32xf32>,
    return
  }
}

</mosaic_0001>

<llo_original>
// kernel: vit_forward.1
$region0: #{vit_forward.1}
  #allocation0 [shape = 'u32[]', space=smem, size = 0x4, offset = 0x4, fixed_abs, tag = 'smem constant byte address 0x4 - core index']
  #allocation1 [shape = 'u32[144,128]{1,0:T(1,128)}', space=vmem, size = 0x12000, scoped, tag = 'internal scratch']
  %s0 = inlined_call_operand.vmem [shape: f32[2,17,48], index: 0, kind: input, shape index: {}]
  %s1 = inlined_call_operand.vmem [shape: f32[48,32], index: 1, kind: input, shape index: {}]
  %s2 = inlined_call_operand.vmem [shape: f32[1,32], index: 2, kind: input, shape index: {}]
  %s3 = inlined_call_operand.vmem [shape: f32[1,32], index: 3, kind: input, shape index: {}]
  %s4 = inlined_call_operand.vmem [shape: f32[17,32], index: 4, kind: input, shape index: {}]
  %s5 = inlined_call_operand.vmem [shape: f32[32,32], index: 5, kind: input, shape index: {}]
  %s6 = inlined_call_operand.vmem [shape: f32[2,1,32], index: 6, kind: input, shape index: {}]
  %s7 = inlined_call_operand.vmem [shape: f32[2,1,32], index: 7, kind: input, shape index: {}]
  %s8 = inlined_call_operand.vmem [shape: f32[2,32,32], index: 8, kind: input, shape index: {}]
  %s9 = inlined_call_operand.vmem [shape: f32[2,1,32], index: 9, kind: input, shape index: {}]
  %s10 = inlined_call_operand.vmem [shape: f32[2,32,32], index: 10, kind: input, shape index: {}]
  %s11 = inlined_call_operand.vmem [shape: f32[2,1,32], index: 11, kind: input, shape index: {}]
  %s12 = inlined_call_operand.vmem [shape: f32[2,32,32], index: 12, kind: input, shape index: {}]
  %s13 = inlined_call_operand.vmem [shape: f32[2,1,32], index: 13, kind: input, shape index: {}]
  %s14 = inlined_call_operand.vmem [shape: f32[2,32,32], index: 14, kind: input, shape index: {}]
  %s15 = inlined_call_operand.vmem [shape: f32[2,1,32], index: 15, kind: input, shape index: {}]
  %s16 = inlined_call_operand.vmem [shape: f32[2,1,32], index: 16, kind: input, shape index: {}]
  %s17 = inlined_call_operand.vmem [shape: f32[2,1,32], index: 17, kind: input, shape index: {}]
  %s18 = inlined_call_operand.vmem [shape: f32[2,32,64], index: 18, kind: input, shape index: {}]
  %s19 = inlined_call_operand.vmem [shape: f32[2,1,64], index: 19, kind: input, shape index: {}]
  %s20 = inlined_call_operand.vmem [shape: f32[2,64,32], index: 20, kind: input, shape index: {}]
  %s21 = inlined_call_operand.vmem [shape: f32[2,1,32], index: 21, kind: input, shape index: {}]
  %s22 = inlined_call_operand.vmem [shape: f32[1,32], index: 22, kind: input, shape index: {}]
  %s23 = inlined_call_operand.vmem [shape: f32[1,32], index: 23, kind: input, shape index: {}]
  %s24 = inlined_call_operand.hbm [shape: f32[2,32], index: 24, kind: output, shape index: {}]
  %s25 = sld [smem:[#allocation0]]
  $region106: #{vit_forward.1} parent=0
    _
  %s27 = ssub.s32 1, %s25
  %s28 = scalar_select 0, %s27, %s25
  $region1: #{vit_forward.1} parent=0
    #allocation2 [shape = 'u8[1024]{0}', space=vmem, size = 0x400, scoped, tag = 'output window, operand 0, single buffered']
    #allocation3 [shape = 's32[1]{0}', space=sflag, size = 0x4, scoped, tag = 'scoped memory for vit_forward.1']
    %29 = vsyncpa [#allocation3], 0
    // Predicated region
    $region2: #{vit_forward.1} parent=1 // pred_check
      _
    $region3: #{vit_forward.1} parent=1 // pred_check_branch
      %31 = sbr.rel (0) target = $region5
    $region4: #{vit_forward.1} parent=1 // pred_region
      _
    $region5: #{vit_forward.1} parent=1 // pred_fallthru
      _
    // Predicated region
    $region6: #{vit_forward.1} parent=1 // pred_check
      _
    $region7: #{vit_forward.1} parent=1 // pred_check_branch
      %33 = sbr.rel (0) target = $region9
    $region8: #{vit_forward.1} parent=1 // pred_region
      _
    $region9: #{vit_forward.1} parent=1 // pred_fallthru
      _
    // Predicated region
    $region10: #{vit_forward.1} parent=1 // pred_check
      _
    $region11: #{vit_forward.1} parent=1 // pred_check_branch
      %35 = sbr.rel (0) target = $region13
    $region12: #{vit_forward.1} parent=1 // pred_region
      _
    $region13: #{vit_forward.1} parent=1 // pred_fallthru
      _
    // Predicated region
    $region14: #{vit_forward.1} parent=1 // pred_check
      _
    $region15: #{vit_forward.1} parent=1 // pred_check_branch
      %37 = sbr.rel (0) target = $region17
    $region16: #{vit_forward.1} parent=1 // pred_region
      _
    $region17: #{vit_forward.1} parent=1 // pred_fallthru
      _
    // Predicated region
    $region18: #{vit_forward.1} parent=1 // pred_check
      _
    $region19: #{vit_forward.1} parent=1 // pred_check_branch
      %39 = sbr.rel (0) target = $region21
    $region20: #{vit_forward.1} parent=1 // pred_region
      _
    $region21: #{vit_forward.1} parent=1 // pred_fallthru
      _
    // Predicated region
    $region22: #{vit_forward.1} parent=1 // pred_check
      _
    $region23: #{vit_forward.1} parent=1 // pred_check_branch
      %41 = sbr.rel (0) target = $region25
    $region24: #{vit_forward.1} parent=1 // pred_region
      _
    $region25: #{vit_forward.1} parent=1 // pred_fallthru
      _
    // Predicated region
    $region26: #{vit_forward.1} parent=1 // pred_check
      _
    $region27: #{vit_forward.1} parent=1 // pred_check_branch
      %43 = sbr.rel (0) target = $region29
    $region28: #{vit_forward.1} parent=1 // pred_region
      _
    $region29: #{vit_forward.1} parent=1 // pred_fallthru
      _
    // Predicated region
    $region30: #{vit_forward.1} parent=1 // pred_check
      _
    $region31: #{vit_forward.1} parent=1 // pred_check_branch
      %45 = sbr.rel (0) target = $region33
    $region32: #{vit_forward.1} parent=1 // pred_region
      _
    $region33: #{vit_forward.1} parent=1 // pred_fallthru
      _
    // Predicated region
    $region34: #{vit_forward.1} parent=1 // pred_check
      _
    $region35: #{vit_forward.1} parent=1 // pred_check_branch
      %47 = sbr.rel (0) target = $region37
    $region36: #{vit_forward.1} parent=1 // pred_region
      _
    $region37: #{vit_forward.1} parent=1 // pred_fallthru
      _
    // Predicated region
    $region38: #{vit_forward.1} parent=1 // pred_check
      _
    $region39: #{vit_forward.1} parent=1 // pred_check_branch
      %49 = sbr.rel (0) target = $region41
    $region40: #{vit_forward.1} parent=1 // pred_region
      _
    $region41: #{vit_forward.1} parent=1 // pred_fallthru
      _
    // Predicated region
    $region42: #{vit_forward.1} parent=1 // pred_check
      _
    $region43: #{vit_forward.1} parent=1 // pred_check_branch
      %51 = sbr.rel (0) target = $region45
    $region44: #{vit_forward.1} parent=1 // pred_region
      _
    $region45: #{vit_forward.1} parent=1 // pred_fallthru
      _
    // Predicated region
    $region46: #{vit_forward.1} parent=1 // pred_check
      _
    $region47: #{vit_forward.1} parent=1 // pred_check_branch
      %53 = sbr.rel (0) target = $region49
    $region48: #{vit_forward.1} parent=1 // pred_region
      _
    $region49: #{vit_forward.1} parent=1 // pred_fallthru
      _
    // Predicated region
    $region50: #{vit_forward.1} parent=1 // pred_check
      _
    $region51: #{vit_forward.1} parent=1 // pred_check_branch
      %55 = sbr.rel (0) target = $region53
    $region52: #{vit_forward.1} parent=1 // pred_region
      _
    $region53: #{vit_forward.1} parent=1 // pred_fallthru
      _
    // Predicated region
    $region54: #{vit_forward.1} parent=1 // pred_check
      _
    $region55: #{vit_forward.1} parent=1 // pred_check_branch
      %57 = sbr.rel (0) target = $region57
    $region56: #{vit_forward.1} parent=1 // pred_region
      _
    $region57: #{vit_forward.1} parent=1 // pred_fallthru
      _
    // Predicated region
    $region58: #{vit_forward.1} parent=1 // pred_check
      _
    $region59: #{vit_forward.1} parent=1 // pred_check_branch
      %59 = sbr.rel (0) target = $region61
    $region60: #{vit_forward.1} parent=1 // pred_region
      _
    $region61: #{vit_forward.1} parent=1 // pred_fallthru
      _
    // Predicated region
    $region62: #{vit_forward.1} parent=1 // pred_check
      _
    $region63: #{vit_forward.1} parent=1 // pred_check_branch
      %61 = sbr.rel (0) target = $region65
    $region64: #{vit_forward.1} parent=1 // pred_region
      _
    $region65: #{vit_forward.1} parent=1 // pred_fallthru
      _
    // Predicated region
    $region66: #{vit_forward.1} parent=1 // pred_check
      _
    $region67: #{vit_forward.1} parent=1 // pred_check_branch
      %63 = sbr.rel (0) target = $region69
    $region68: #{vit_forward.1} parent=1 // pred_region
      _
    $region69: #{vit_forward.1} parent=1 // pred_fallthru
      _
    // Predicated region
    $region70: #{vit_forward.1} parent=1 // pred_check
      _
    $region71: #{vit_forward.1} parent=1 // pred_check_branch
      %65 = sbr.rel (0) target = $region73
    $region72: #{vit_forward.1} parent=1 // pred_region
      _
    $region73: #{vit_forward.1} parent=1 // pred_fallthru
      _
    // Predicated region
    $region74: #{vit_forward.1} parent=1 // pred_check
      _
    $region75: #{vit_forward.1} parent=1 // pred_check_branch
      %67 = sbr.rel (0) target = $region77
    $region76: #{vit_forward.1} parent=1 // pred_region
      _
    $region77: #{vit_forward.1} parent=1 // pred_fallthru
      _
    // Predicated region
    $region78: #{vit_forward.1} parent=1 // pred_check
      _
    $region79: #{vit_forward.1} parent=1 // pred_check_branch
      %69 = sbr.rel (0) target = $region81
    $region80: #{vit_forward.1} parent=1 // pred_region
      _
    $region81: #{vit_forward.1} parent=1 // pred_fallthru
      _
    // Predicated region
    $region82: #{vit_forward.1} parent=1 // pred_check
      _
    $region83: #{vit_forward.1} parent=1 // pred_check_branch
      %71 = sbr.rel (0) target = $region85
    $region84: #{vit_forward.1} parent=1 // pred_region
      _
    $region85: #{vit_forward.1} parent=1 // pred_fallthru
      _
    // Predicated region
    $region86: #{vit_forward.1} parent=1 // pred_check
      _
    $region87: #{vit_forward.1} parent=1 // pred_check_branch
      %73 = sbr.rel (0) target = $region89
    $region88: #{vit_forward.1} parent=1 // pred_region
      _
    $region89: #{vit_forward.1} parent=1 // pred_fallthru
      _
    // Predicated region
    $region90: #{vit_forward.1} parent=1 // pred_check
      _
    $region91: #{vit_forward.1} parent=1 // pred_check_branch
      %75 = sbr.rel (0) target = $region93
    $region92: #{vit_forward.1} parent=1 // pred_region
      _
    $region93: #{vit_forward.1} parent=1 // pred_fallthru
      _
    // Predicated region
    $region94: #{vit_forward.1} parent=1 // pred_check
      _
    $region95: #{vit_forward.1} parent=1 // pred_check_branch
      %77 = sbr.rel (0) target = $region97
    $region96: #{vit_forward.1} parent=1 // pred_region
      _
    $region97: #{vit_forward.1} parent=1 // pred_fallthru
      _
    %v78 = vld [vmem:[%s1] sm:$0xff]
    %v79 = vld [vmem:[%s1 + $0x8] sm:$0xff]
    %v80 = vld [vmem:[%s1 + $0x10] sm:$0xff]
    %v81 = vld [vmem:[%s1 + $0x18] sm:$0xff]
    %v82 = vld [vmem:[%s1 + $0x20] sm:$0xff]
    %v83 = vld [vmem:[%s1 + $0x28] sm:$0xff]
    %v84 = vld [vmem:[%s4] sm:$0xff]
    %v85 = vld [vmem:[%s4 + $0x8] sm:$0xff]
    %v86 = vld [vmem:[%s4 + $0x10] sm:$0x1]
    %v87 = vld [vmem:[%s5] sm:$0xff]
    %v88 = vld [vmem:[%s5 + $0x8] sm:$0xff]
    %v89 = vld [vmem:[%s5 + $0x10] sm:$0xff]
    %v90 = vld [vmem:[%s5 + $0x18] sm:$0xff]
    %v91 = vlaneseq
    %v92 = vshrl.u32 %v91, 7
    %v93 = vadd.s32 %v92, 8
    %v94 = vadd.s32 %v92, 16
    %vm95 = vcmp.eq.s32.totalorder %v92, 0
    %vm96 = vcmp.eq.s32.totalorder %v93, 0
    %vm97 = vcmp.eq.s32.totalorder %v94, 0
    %v98 = vld [vmem:[%s3] sm:$0x1]
    %v99 = vld [vmem:[%s2] sm:$0x1]
    %v101 = vlaneseq
    %v102 = vshrl.u32 %v101, 7
    %v103 = vsub.s32 0, %v102
    %v104 = vrot.slane %v98, %v103
    %v107 = vlaneseq
    %v108 = vshrl.u32 %v107, 7
    %v109 = vsub.s32 0, %v108
    %v110 = vrot.slane %v99, %v109
    %v112 = vsel %vm95, %v104, %v110
    %v113 = vsel %vm96, %v104, %v110
    %v114 = vsel %vm97, %v104, %v110
    %v115 = vadd.f32 %v112, %v84
    %v116 = vadd.f32 %v113, %v85
    %v117 = vadd.f32 %v114, %v86
    %v118 = vld [vmem:[%s0] sm:$0xff]
    %v119 = vld [vmem:[%s0 + $0x8] sm:$0xff]
    %v120 = vld [vmem:[%s0 + $0x10] sm:$0x1]
    %vm121 = vcmask 392192
    %v123 = vsel %vm121, %v118, 0
    %v126 = vsel %vm121, %v119, 0
    %v129 = vsel %vm121, %v120, 0
    %131 = vmatprep.subr.mxu0 0.0
    %132 = vmatpush1.msra.mxu0 0.0
    %133 = vmatprep.subr.mxu0 0.0
    %134 = vmatpush1.msra.mxu0 0.0
    %135 = vmatprep.subr.mxu0 0.0
    %136 = vmatpush1.msra.mxu0 0.0
    %137 = vmatprep.subr.mxu0 0.0
    %138 = vmatpush1.msra.mxu0 0.0
    %139 = vmatprep.subr.mxu0 0.0
    %140 = vmatpush1.msra.mxu0 0.0
    %141 = vmatprep.subr.mxu0 0.0
    %142 = vmatpush1.msra.mxu0 0.0
    %143 = vmatprep.subr.mxu0 0.0
    %144 = vmatpush1.msra.mxu0 0.0
    %145 = vmatprep.subr.mxu0 0.0
    %146 = vmatpush1.msra.mxu0 0.0
    %147 = vmatprep.subr.mxu0 0.0
    %148 = vmatpush1.msra.mxu0 0.0
    %149 = vmatprep.subr.mxu0 0.0
    %150 = vmatpush1.msra.mxu0 0.0
    %151 = vmatprep.subr.mxu0 0.0
    %152 = vmatpush1.msra.mxu0 %v83
    %153 = vmatprep.subr.mxu0 0.0
    %154 = vmatpush1.msra.mxu0 %v82
    %155 = vmatprep.subr.mxu0 0.0
    %156 = vmatpush1.msra.mxu0 %v81
    %157 = vmatprep.subr.mxu0 0.0
    %158 = vmatpush1.msra.mxu0 %v80
    %159 = vmatprep.subr.mxu0 0.0
    %160 = vmatpush1.msra.mxu0 %v79
    %161 = vmatprep.subr.mxu0 0.0
    %162 = vmatpush1.msra.mxu0 %v78
    %163 = vmatprep.subr.mxu0 0.0
    %164 = vmatpush2.msra.mxu0 0.0
    %165 = vmatprep.subr.mxu0 0.0
    %166 = vmatpush2.msra.mxu0 0.0
    %167 = vmatprep.subr.mxu0 0.0
    %168 = vmatpush2.msra.mxu0 0.0
    %169 = vmatprep.subr.mxu0 0.0
    %170 = vmatpush2.msra.mxu0 0.0
    %171 = vmatprep.subr.mxu0 0.0
    %172 = vmatpush2.msra.mxu0 0.0
    %173 = vmatprep.subr.mxu0 0.0
    %174 = vmatpush2.msra.mxu0 0.0
    %175 = vmatprep.subr.mxu0 0.0
    %176 = vmatpush2.msra.mxu0 0.0
    %177 = vmatprep.subr.mxu0 0.0
    %178 = vmatpush2.msra.mxu0 0.0
    %179 = vmatprep.subr.mxu0 0.0
    %180 = vmatpush2.msra.mxu0 0.0
    %181 = vmatprep.subr.mxu0 0.0
    %182 = vmatpush2.msra.mxu0 0.0
    %183 = vmatprep.subr.mxu0 0.0
    %184 = vmatpush2.msra.mxu0 0.0
    %185 = vmatprep.subr.mxu0 0.0
    %186 = vmatpush2.msra.mxu0 0.0
    %187 = vmatprep.subr.mxu0 0.0
    %188 = vmatpush2.msra.mxu0 0.0
    %189 = vmatprep.subr.mxu0 0.0
    %190 = vmatpush2.msra.mxu0 0.0
    %191 = vmatprep.subr.mxu0 0.0
    %192 = vmatpush2.msra.mxu0 0.0
    %193 = vmatprep.subr.mxu0 0.0
    %194 = vmatpush2.msra.mxu0 0.0
    %195 = vmatprep.mubr.f32.mxu0 0.0
    %196 = vmatmul.mubr.f32.gmra.mxu0 %v123
    %v197 = vpop.f32.mrf.mxu0
    %v198 = vadd.f32 %v115, %v197
    %v199 = vpop.f32.mrf.mxu0
    %200 = vmatprep.mubr.f32.mxu0 0.0
    %201 = vmatmul.mubr.f32.gmra.mxu0 %v126
    %v202 = vpop.f32.mrf.mxu0
    %v203 = vadd.f32 %v116, %v202
    %v204 = vpop.f32.mrf.mxu0
    %205 = vmatprep.mubr.f32.mxu0 0.0
    %206 = vmatmul.mubr.f32.gmra.mxu0 %v129
    %v207 = vpop.f32.mrf.mxu0
    %v208 = vadd.f32 %v117, %v207
    %v209 = vpop.f32.mrf.mxu0
    %210 = vdwg.mxu0
    %s211 = scalar_lea.vmem %s0, 24
    %v212 = vld [vmem:[%s211] sm:$0xff]
    %v213 = vld [vmem:[%s211 + $0x8] sm:$0xff]
    %v214 = vld [vmem:[%s211 + $0x10] sm:$0x1]
    %v216 = vsel %vm121, %v212, 0
    %v219 = vsel %vm121, %v213, 0
    %v222 = vsel %vm121, %v214, 0
    %224 = vmatprep.subr.mxu0 0.0
    %225 = vmatpush1.msra.mxu0 0.0
    %226 = vmatprep.subr.mxu0 0.0
    %227 = vmatpush1.msra.mxu0 0.0
    %228 = vmatprep.subr.mxu0 0.0
    %229 = vmatpush1.msra.mxu0 0.0
    %230 = vmatprep.subr.mxu0 0.0
    %231 = vmatpush1.msra.mxu0 0.0
    %232 = vmatprep.subr.mxu0 0.0
    %233 = vmatpush1.msra.mxu0 0.0
    %234 = vmatprep.subr.mxu0 0.0
    %235 = vmatpush1.msra.mxu0 0.0
    %236 = vmatprep.subr.mxu0 0.0
    %237 = vmatpush1.msra.mxu0 0.0
    %238 = vmatprep.subr.mxu0 0.0
    %239 = vmatpush1.msra.mxu0 0.0
    %240 = vmatprep.subr.mxu0 0.0
    %241 = vmatpush1.msra.mxu0 0.0
    %242 = vmatprep.subr.mxu0 0.0
    %243 = vmatpush1.msra.mxu0 0.0
    %244 = vmatprep.subr.mxu0 0.0
    %245 = vmatpush1.msra.mxu0 %v83
    %246 = vmatprep.subr.mxu0 0.0
    %247 = vmatpush1.msra.mxu0 %v82
    %248 = vmatprep.subr.mxu0 0.0
    %249 = vmatpush1.msra.mxu0 %v81
    %250 = vmatprep.subr.mxu0 0.0
    %251 = vmatpush1.msra.mxu0 %v80
    %252 = vmatprep.subr.mxu0 0.0
    %253 = vmatpush1.msra.mxu0 %v79
    %254 = vmatprep.subr.mxu0 0.0
    %255 = vmatpush1.msra.mxu0 %v78
    %256 = vmatprep.subr.mxu0 0.0
    %257 = vmatpush2.msra.mxu0 0.0
    %258 = vmatprep.subr.mxu0 0.0
    %259 = vmatpush2.msra.mxu0 0.0
    %260 = vmatprep.subr.mxu0 0.0
    %261 = vmatpush2.msra.mxu0 0.0
    %262 = vmatprep.subr.mxu0 0.0
    %263 = vmatpush2.msra.mxu0 0.0
    %264 = vmatprep.subr.mxu0 0.0
    %265 = vmatpush2.msra.mxu0 0.0
    %266 = vmatprep.subr.mxu0 0.0
    %267 = vmatpush2.msra.mxu0 0.0
    %268 = vmatprep.subr.mxu0 0.0
    %269 = vmatpush2.msra.mxu0 0.0
    %270 = vmatprep.subr.mxu0 0.0
    %271 = vmatpush2.msra.mxu0 0.0
    %272 = vmatprep.subr.mxu0 0.0
    %273 = vmatpush2.msra.mxu0 0.0
    %274 = vmatprep.subr.mxu0 0.0
    %275 = vmatpush2.msra.mxu0 0.0
    %276 = vmatprep.subr.mxu0 0.0
    %277 = vmatpush2.msra.mxu0 0.0
    %278 = vmatprep.subr.mxu0 0.0
    %279 = vmatpush2.msra.mxu0 0.0
    %280 = vmatprep.subr.mxu0 0.0
    %281 = vmatpush2.msra.mxu0 0.0
    %282 = vmatprep.subr.mxu0 0.0
    %283 = vmatpush2.msra.mxu0 0.0
    %284 = vmatprep.subr.mxu0 0.0
    %285 = vmatpush2.msra.mxu0 0.0
    %286 = vmatprep.subr.mxu0 0.0
    %287 = vmatpush2.msra.mxu0 0.0
    %288 = vmatprep.mubr.f32.mxu0 0.0
    %289 = vmatmul.mubr.f32.gmra.mxu0 %v216
    %v290 = vpop.f32.mrf.mxu0
    %v291 = vadd.f32 %v115, %v290
    %v292 = vpop.f32.mrf.mxu0
    %293 = vmatprep.mubr.f32.mxu0 0.0
    %294 = vmatmul.mubr.f32.gmra.mxu0 %v219
    %v295 = vpop.f32.mrf.mxu0
    %v296 = vadd.f32 %v116, %v295
    %v297 = vpop.f32.mrf.mxu0
    %298 = vmatprep.mubr.f32.mxu0 0.0
    %299 = vmatmul.mubr.f32.gmra.mxu0 %v222
    %v300 = vpop.f32.mrf.mxu0
    %v301 = vadd.f32 %v117, %v300
    %v302 = vpop.f32.mrf.mxu0
    %303 = vdwg.mxu0
    %v304 = vld [vmem:[%s6] sm:$0x1]
    %v305 = vld [vmem:[%s7] sm:$0x1]
    %v306 = vld [vmem:[%s8] sm:$0xff]
    %v307 = vld [vmem:[%s8 + $0x8] sm:$0xff]
    %v308 = vld [vmem:[%s8 + $0x10] sm:$0xff]
    %v309 = vld [vmem:[%s8 + $0x18] sm:$0xff]
    %v310 = vld [vmem:[%s9] sm:$0x1]
    %v311 = vld [vmem:[%s10] sm:$0xff]
    %v312 = vld [vmem:[%s10 + $0x8] sm:$0xff]
    %v313 = vld [vmem:[%s10 + $0x10] sm:$0xff]
    %v314 = vld [vmem:[%s10 + $0x18] sm:$0xff]
    %v315 = vld [vmem:[%s11] sm:$0x1]
    %v316 = vld [vmem:[%s12] sm:$0xff]
    %v317 = vld [vmem:[%s12 + $0x8] sm:$0xff]
    %v318 = vld [vmem:[%s12 + $0x10] sm:$0xff]
    %v319 = vld [vmem:[%s12 + $0x18] sm:$0xff]
    %v320 = vld [vmem:[%s13] sm:$0x1]
    %v321 = vld [vmem:[%s14] sm:$0xff]
    %v322 = vld [vmem:[%s14 + $0x8] sm:$0xff]
    %v323 = vld [vmem:[%s14 + $0x10] sm:$0xff]
    %v324 = vld [vmem:[%s14 + $0x18] sm:$0xff]
    %v325 = vld [vmem:[%s15] sm:$0x1]
    %v326 = vld [vmem:[%s16] sm:$0x1]
    %v327 = vld [vmem:[%s17] sm:$0x1]
    %v328 = vld [vmem:[%s18] sm:$0xff]
    %v329 = vld [vmem:[%s18 + $0x8] sm:$0xff]
    %v330 = vld [vmem:[%s18 + $0x10] sm:$0xff]
    %v331 = vld [vmem:[%s18 + $0x18] sm:$0xff]
    %v332 = vld [vmem:[%s19] sm:$0x1]
    %v333 = vld [vmem:[%s20] sm:$0xff]
    %v334 = vld [vmem:[%s20 + $0x8] sm:$0xff]
    %v335 = vld [vmem:[%s20 + $0x10] sm:$0xff]
    %v336 = vld [vmem:[%s20 + $0x18] sm:$0xff]
    %v337 = vld [vmem:[%s20 + $0x20] sm:$0xff]
    %v338 = vld [vmem:[%s20 + $0x28] sm:$0xff]
    %v339 = vld [vmem:[%s20 + $0x30] sm:$0xff]
    %v340 = vld [vmem:[%s20 + $0x38] sm:$0xff]
    %v341 = vld [vmem:[%s21] sm:$0x1]
    %vm342 = vcmask 261120
    %v343 = vsel %vm342, %v198, 0.0
    %344 = vadd.xlane.f32.xlu0 %v343
    %v345 = vpop.xlane.xlu0 %344
    %v346 = vsel %vm342, %v203, 0.0
    %347 = vadd.xlane.f32.xlu0 %v346
    %v348 = vpop.xlane.xlu0 %347
    %vm349 = vcmask 253952
    %v350 = vsel %vm349, %v208, 0.0
    %351 = vadd.xlane.f32.xlu0 %v350
    %v352 = vpop.xlane.xlu0 %351
    %v353 = vrcp.pop 32.0
    %v354 = vmul.f32 %v345, %v353
    %v355 = vmul.f32 %v348, %v353
    %v356 = vmul.f32 %v352, %v353
    %v357 = vsub.f32 %v198, %v354
    %v358 = vsub.f32 %v203, %v355
    %v359 = vsub.f32 %v208, %v356
    %v360 = vmul.f32 %v357, %v357
    %v361 = vmul.f32 %v358, %v358
    %v362 = vmul.f32 %v359, %v359
    %v363 = vsel %vm342, %v360, 0.0
    %364 = vadd.xlane.f32.xlu0 %v363
    %v365 = vpop.xlane.xlu0 %364
    %v366 = vsel %vm342, %v361, 0.0
    %367 = vadd.xlane.f32.xlu0 %v366
    %v368 = vpop.xlane.xlu0 %367
    %v369 = vsel %vm349, %v362, 0.0
    %370 = vadd.xlane.f32.xlu0 %v369
    %v371 = vpop.xlane.xlu0 %370
    %v372 = vmul.f32 %v365, %v353
    %v373 = vmul.f32 %v368, %v353
    %v374 = vmul.f32 %v371, %v353
    %v375 = vadd.f32 %v372, 1e-05
    %v376 = vadd.f32 %v373, 1e-05
    %v377 = vadd.f32 %v374, 1e-05
    %v378 = vrsqrt.pop %v375
    %v379 = vrsqrt.pop %v376
    %v380 = vrsqrt.pop %v377
    %v381 = vmul.f32 %v357, %v378
    %v382 = vmul.f32 %v358, %v379
    %v383 = vmul.f32 %v359, %v380
    %v385 = vlaneseq
    %v386 = vshrl.u32 %v385, 7
    %v387 = vsub.s32 0, %v386
    %v388 = vrot.slane %v304, %v387
    %v390 = vmul.f32 %v381, %v388
    %v391 = vmul.f32 %v382, %v388
    %v392 = vmul.f32 %v383, %v388
    %v394 = vlaneseq
    %v395 = vshrl.u32 %v394, 7
    %v396 = vsub.s32 0, %v395
    %v397 = vrot.slane %v305, %v396
    %v399 = vadd.f32 %v390, %v397
    %v400 = vadd.f32 %v391, %v397
    %v401 = vadd.f32 %v392, %v397
    %v402 = vsel %vm342, %v291, 0.0
    %403 = vadd.xlane.f32.xlu0 %v402
    %v404 = vpop.xlane.xlu0 %403
    %v405 = vsel %vm342, %v296, 0.0
    %406 = vadd.xlane.f32.xlu0 %v405
    %v407 = vpop.xlane.xlu0 %406
    %v408 = vsel %vm349, %v301, 0.0
    %409 = vadd.xlane.f32.xlu0 %v408
    %v410 = vpop.xlane.xlu0 %409
    %v411 = vmul.f32 %v404, %v353
    %v412 = vmul.f32 %v407, %v353
    %v413 = vmul.f32 %v410, %v353
    %v414 = vsub.f32 %v291, %v411
    %v415 = vsub.f32 %v296, %v412
    %v416 = vsub.f32 %v301, %v413
    %v417 = vmul.f32 %v414, %v414
    %v418 = vmul.f32 %v415, %v415
    %v419 = vmul.f32 %v416, %v416
    %v420 = vsel %vm342, %v417, 0.0
    %421 = vadd.xlane.f32.xlu0 %v420
    %v422 = vpop.xlane.xlu0 %421
    %v423 = vsel %vm342, %v418, 0.0
    %424 = vadd.xlane.f32.xlu0 %v423
    %v425 = vpop.xlane.xlu0 %424
    %v426 = vsel %vm349, %v419, 0.0
    %427 = vadd.xlane.f32.xlu0 %v426
    %v428 = vpop.xlane.xlu0 %427
    %v429 = vmul.f32 %v422, %v353
    %v430 = vmul.f32 %v425, %v353
    %v431 = vmul.f32 %v428, %v353
    %v432 = vadd.f32 %v429, 1e-05
    %v433 = vadd.f32 %v430, 1e-05
    %v434 = vadd.f32 %v431, 1e-05
    %v435 = vrsqrt.pop %v432
    %v436 = vrsqrt.pop %v433
    %v437 = vrsqrt.pop %v434
    %v438 = vmul.f32 %v414, %v435
    %v439 = vmul.f32 %v415, %v436
    %v440 = vmul.f32 %v416, %v437
    %v441 = vmul.f32 %v438, %v388
    %v442 = vmul.f32 %v439, %v388
    %v443 = vmul.f32 %v440, %v388
    %v444 = vadd.f32 %v441, %v397
    %v445 = vadd.f32 %v442, %v397
    %v446 = vadd.f32 %v443, %v397
    %v448 = vlaneseq
    %v449 = vshrl.u32 %v448, 7
    %v450 = vsub.s32 0, %v449
    %v451 = vrot.slane %v310, %v450
    %v454 = vsel %vm342, %v399, 0
    %v457 = vsel %vm342, %v400, 0
    %v460 = vsel %vm342, %v401, 0
    %462 = vmatprep.subr.mxu0 0.0
    %463 = vmatpush1.msra.mxu0 0.0
    %464 = vmatprep.subr.mxu0 0.0
    %465 = vmatpush1.msra.mxu0 0.0
    %466 = vmatprep.subr.mxu0 0.0
    %467 = vmatpush1.msra.mxu0 0.0
    %468 = vmatprep.subr.mxu0 0.0
    %469 = vmatpush1.msra.mxu0 0.0
    %470 = vmatprep.subr.mxu0 0.0
    %471 = vmatpush1.msra.mxu0 0.0
    %472 = vmatprep.subr.mxu0 0.0
    %473 = vmatpush1.msra.mxu0 0.0
    %474 = vmatprep.subr.mxu0 0.0
    %475 = vmatpush1.msra.mxu0 0.0
    %476 = vmatprep.subr.mxu0 0.0
    %477 = vmatpush1.msra.mxu0 0.0
    %478 = vmatprep.subr.mxu0 0.0
    %479 = vmatpush1.msra.mxu0 0.0
    %480 = vmatprep.subr.mxu0 0.0
    %481 = vmatpush1.msra.mxu0 0.0
    %482 = vmatprep.subr.mxu0 0.0
    %483 = vmatpush1.msra.mxu0 0.0
    %484 = vmatprep.subr.mxu0 0.0
    %485 = vmatpush1.msra.mxu0 0.0
    %486 = vmatprep.subr.mxu0 0.0
    %487 = vmatpush1.msra.mxu0 %v309
    %488 = vmatprep.subr.mxu0 0.0
    %489 = vmatpush1.msra.mxu0 %v308
    %490 = vmatprep.subr.mxu0 0.0
    %491 = vmatpush1.msra.mxu0 %v307
    %492 = vmatprep.subr.mxu0 0.0
    %493 = vmatpush1.msra.mxu0 %v306
    %494 = vmatprep.subr.mxu0 0.0
    %495 = vmatpush2.msra.mxu0 0.0
    %496 = vmatprep.subr.mxu0 0.0
    %497 = vmatpush2.msra.mxu0 0.0
    %498 = vmatprep.subr.mxu0 0.0
    %499 = vmatpush2.msra.mxu0 0.0
    %500 = vmatprep.subr.mxu0 0.0
    %501 = vmatpush2.msra.mxu0 0.0
    %502 = vmatprep.subr.mxu0 0.0
    %503 = vmatpush2.msra.mxu0 0.0
    %504 = vmatprep.subr.mxu0 0.0
    %505 = vmatpush2.msra.mxu0 0.0
    %506 = vmatprep.subr.mxu0 0.0
    %507 = vmatpush2.msra.mxu0 0.0
    %508 = vmatprep.subr.mxu0 0.0
    %509 = vmatpush2.msra.mxu0 0.0
    %510 = vmatprep.subr.mxu0 0.0
    %511 = vmatpush2.msra.mxu0 0.0
    %512 = vmatprep.subr.mxu0 0.0
    %513 = vmatpush2.msra.mxu0 0.0
    %514 = vmatprep.subr.mxu0 0.0
    %515 = vmatpush2.msra.mxu0 0.0
    %516 = vmatprep.subr.mxu0 0.0
    %517 = vmatpush2.msra.mxu0 0.0
    %518 = vmatprep.subr.mxu0 0.0
    %519 = vmatpush2.msra.mxu0 0.0
    %520 = vmatprep.subr.mxu0 0.0
    %521 = vmatpush2.msra.mxu0 0.0
    %522 = vmatprep.subr.mxu0 0.0
    %523 = vmatpush2.msra.mxu0 0.0
    %524 = vmatprep.subr.mxu0 0.0
    %525 = vmatpush2.msra.mxu0 0.0
    %526 = vmatprep.mubr.f32.mxu0 0.0
    %527 = vmatmul.mubr.f32.gmra.mxu0 %v454
    %v528 = vpop.f32.mrf.mxu0
    %v529 = vadd.f32 %v451, %v528
    %v530 = vpop.f32.mrf.mxu0
    %531 = vmatprep.mubr.f32.mxu0 0.0
    %532 = vmatmul.mubr.f32.gmra.mxu0 %v457
    %v533 = vpop.f32.mrf.mxu0
    %v534 = vadd.f32 %v451, %v533
    %v535 = vpop.f32.mrf.mxu0
    %536 = vmatprep.mubr.f32.mxu0 0.0
    %537 = vmatmul.mubr.f32.gmra.mxu0 %v460
    %v538 = vpop.f32.mrf.mxu0
    %v539 = vadd.f32 %v451, %v538
    %v540 = vpop.f32.mrf.mxu0
    %541 = vdwg.mxu0
    %v543 = vsel %vm342, %v444, 0
    %v546 = vsel %vm342, %v445, 0
    %v549 = vsel %vm342, %v446, 0
    %551 = vmatprep.subr.mxu0 0.0
    %552 = vmatpush1.msra.mxu0 0.0
    %553 = vmatprep.subr.mxu0 0.0
    %554 = vmatpush1.msra.mxu0 0.0
    %555 = vmatprep.subr.mxu0 0.0
    %556 = vmatpush1.msra.mxu0 0.0
    %557 = vmatprep.subr.mxu0 0.0
    %558 = vmatpush1.msra.mxu0 0.0
    %559 = vmatprep.subr.mxu0 0.0
    %560 = vmatpush1.msra.mxu0 0.0
    %561 = vmatprep.subr.mxu0 0.0
    %562 = vmatpush1.msra.mxu0 0.0
    %563 = vmatprep.subr.mxu0 0.0
    %564 = vmatpush1.msra.mxu0 0.0
    %565 = vmatprep.subr.mxu0 0.0
    %566 = vmatpush1.msra.mxu0 0.0
    %567 = vmatprep.subr.mxu0 0.0
    %568 = vmatpush1.msra.mxu0 0.0
    %569 = vmatprep.subr.mxu0 0.0
    %570 = vmatpush1.msra.mxu0 0.0
    %571 = vmatprep.subr.mxu0 0.0
    %572 = vmatpush1.msra.mxu0 0.0
    %573 = vmatprep.subr.mxu0 0.0
    %574 = vmatpush1.msra.mxu0 0.0
    %575 = vmatprep.subr.mxu0 0.0
    %576 = vmatpush1.msra.mxu0 %v309
    %577 = vmatprep.subr.mxu0 0.0
    %578 = vmatpush1.msra.mxu0 %v308
    %579 = vmatprep.subr.mxu0 0.0
    %580 = vmatpush1.msra.mxu0 %v307
    %581 = vmatprep.subr.mxu0 0.0
    %582 = vmatpush1.msra.mxu0 %v306
    %583 = vmatprep.subr.mxu0 0.0
    %584 = vmatpush2.msra.mxu0 0.0
    %585 = vmatprep.subr.mxu0 0.0
    %586 = vmatpush2.msra.mxu0 0.0
    %587 = vmatprep.subr.mxu0 0.0
    %588 = vmatpush2.msra.mxu0 0.0
    %589 = vmatprep.subr.mxu0 0.0
    %590 = vmatpush2.msra.mxu0 0.0
    %591 = vmatprep.subr.mxu0 0.0
    %592 = vmatpush2.msra.mxu0 0.0
    %593 = vmatprep.subr.mxu0 0.0
    %594 = vmatpush2.msra.mxu0 0.0
    %595 = vmatprep.subr.mxu0 0.0
    %596 = vmatpush2.msra.mxu0 0.0
    %597 = vmatprep.subr.mxu0 0.0
    %598 = vmatpush2.msra.mxu0 0.0
    %599 = vmatprep.subr.mxu0 0.0
    %600 = vmatpush2.msra.mxu0 0.0
    %601 = vmatprep.subr.mxu0 0.0
    %602 = vmatpush2.msra.mxu0 0.0
    %603 = vmatprep.subr.mxu0 0.0
    %604 = vmatpush2.msra.mxu0 0.0
    %605 = vmatprep.subr.mxu0 0.0
    %606 = vmatpush2.msra.mxu0 0.0
    %607 = vmatprep.subr.mxu0 0.0
    %608 = vmatpush2.msra.mxu0 0.0
    %609 = vmatprep.subr.mxu0 0.0
    %610 = vmatpush2.msra.mxu0 0.0
    %611 = vmatprep.subr.mxu0 0.0
    %612 = vmatpush2.msra.mxu0 0.0
    %613 = vmatprep.subr.mxu0 0.0
    %614 = vmatpush2.msra.mxu0 0.0
    %615 = vmatprep.mubr.f32.mxu0 0.0
    %616 = vmatmul.mubr.f32.gmra.mxu0 %v543
    %v617 = vpop.f32.mrf.mxu0
    %v618 = vadd.f32 %v451, %v617
    %v619 = vpop.f32.mrf.mxu0
    %620 = vmatprep.mubr.f32.mxu0 0.0
    %621 = vmatmul.mubr.f32.gmra.mxu0 %v546
    %v622 = vpop.f32.mrf.mxu0
    %v623 = vadd.f32 %v451, %v622
    %v624 = vpop.f32.mrf.mxu0
    %625 = vmatprep.mubr.f32.mxu0 0.0
    %626 = vmatmul.mubr.f32.gmra.mxu0 %v549
    %v627 = vpop.f32.mrf.mxu0
    %v628 = vadd.f32 %v451, %v627
    %v629 = vpop.f32.mrf.mxu0
    %630 = vdwg.mxu0
    %v632 = vlaneseq
    %v633 = vshrl.u32 %v632, 7
    %v634 = vsub.s32 0, %v633
    %v635 = vrot.slane %v315, %v634
    %637 = vmatprep.subr.mxu0 0.0
    %638 = vmatpush1.msra.mxu0 0.0
    %639 = vmatprep.subr.mxu0 0.0
    %640 = vmatpush1.msra.mxu0 0.0
    %641 = vmatprep.subr.mxu0 0.0
    %642 = vmatpush1.msra.mxu0 0.0
    %643 = vmatprep.subr.mxu0 0.0
    %644 = vmatpush1.msra.mxu0 0.0
    %645 = vmatprep.subr.mxu0 0.0
    %646 = vmatpush1.msra.mxu0 0.0
    %647 = vmatprep.subr.mxu0 0.0
    %648 = vmatpush1.msra.mxu0 0.0
    %649 = vmatprep.subr.mxu0 0.0
    %650 = vmatpush1.msra.mxu0 0.0
    %651 = vmatprep.subr.mxu0 0.0
    %652 = vmatpush1.msra.mxu0 0.0
    %653 = vmatprep.subr.mxu0 0.0
    %654 = vmatpush1.msra.mxu0 0.0
    %655 = vmatprep.subr.mxu0 0.0
    %656 = vmatpush1.msra.mxu0 0.0
    %657 = vmatprep.subr.mxu0 0.0
    %658 = vmatpush1.msra.mxu0 0.0
    %659 = vmatprep.subr.mxu0 0.0
    %660 = vmatpush1.msra.mxu0 0.0
    %661 = vmatprep.subr.mxu0 0.0
    %662 = vmatpush1.msra.mxu0 %v314
    %663 = vmatprep.subr.mxu0 0.0
    %664 = vmatpush1.msra.mxu0 %v313
    %665 = vmatprep.subr.mxu0 0.0
    %666 = vmatpush1.msra.mxu0 %v312
    %667 = vmatprep.subr.mxu0 0.0
    %668 = vmatpush1.msra.mxu0 %v311
    %669 = vmatprep.subr.mxu0 0.0
    %670 = vmatpush2.msra.mxu0 0.0
    %671 = vmatprep.subr.mxu0 0.0
    %672 = vmatpush2.msra.mxu0 0.0
    %673 = vmatprep.subr.mxu0 0.0
    %674 = vmatpush2.msra.mxu0 0.0
    %675 = vmatprep.subr.mxu0 0.0
    %676 = vmatpush2.msra.mxu0 0.0
    %677 = vmatprep.subr.mxu0 0.0
    %678 = vmatpush2.msra.mxu0 0.0
    %679 = vmatprep.subr.mxu0 0.0
    %680 = vmatpush2.msra.mxu0 0.0
    %681 = vmatprep.subr.mxu0 0.0
    %682 = vmatpush2.msra.mxu0 0.0
    %683 = vmatprep.subr.mxu0 0.0
    %684 = vmatpush2.msra.mxu0 0.0
    %685 = vmatprep.subr.mxu0 0.0
    %686 = vmatpush2.msra.mxu0 0.0
    %687 = vmatprep.subr.mxu0 0.0
    %688 = vmatpush2.msra.mxu0 0.0
    %689 = vmatprep.subr.mxu0 0.0
    %690 = vmatpush2.msra.mxu0 0.0
    %691 = vmatprep.subr.mxu0 0.0
    %692 = vmatpush2.msra.mxu0 0.0
    %693 = vmatprep.subr.mxu0 0.0
    %694 = vmatpush2.msra.mxu0 0.0
    %695 = vmatprep.subr.mxu0 0.0
    %696 = vmatpush2.msra.mxu0 0.0
    %697 = vmatprep.subr.mxu0 0.0
    %698 = vmatpush2.msra.mxu0 0.0
    %699 = vmatprep.subr.mxu0 0.0
    %700 = vmatpush2.msra.mxu0 0.0
    %701 = vmatprep.mubr.f32.mxu0 0.0
    %702 = vmatmul.mubr.f32.gmra.mxu0 %v454
    %v703 = vpop.f32.mrf.mxu0
    %v704 = vadd.f32 %v635, %v703
    %v705 = vpop.f32.mrf.mxu0
    %706 = vmatprep.mubr.f32.mxu0 0.0
    %707 = vmatmul.mubr.f32.gmra.mxu0 %v457
    %v708 = vpop.f32.mrf.mxu0
    %v709 = vadd.f32 %v635, %v708
    %v710 = vpop.f32.mrf.mxu0
    %711 = vmatprep.mubr.f32.mxu0 0.0
    %712 = vmatmul.mubr.f32.gmra.mxu0 %v460
    %v713 = vpop.f32.mrf.mxu0
    %v714 = vadd.f32 %v635, %v713
    %v715 = vpop.f32.mrf.mxu0
    %716 = vdwg.mxu0
    %717 = vmatprep.subr.mxu0 0.0
    %718 = vmatpush1.msra.mxu0 0.0
    %719 = vmatprep.subr.mxu0 0.0
    %720 = vmatpush1.msra.mxu0 0.0
    %721 = vmatprep.subr.mxu0 0.0
    %722 = vmatpush1.msra.mxu0 0.0
    %723 = vmatprep.subr.mxu0 0.0
    %724 = vmatpush1.msra.mxu0 0.0
    %725 = vmatprep.subr.mxu0 0.0
    %726 = vmatpush1.msra.mxu0 0.0
    %727 = vmatprep.subr.mxu0 0.0
    %728 = vmatpush1.msra.mxu0 0.0
    %729 = vmatprep.subr.mxu0 0.0
    %730 = vmatpush1.msra.mxu0 0.0
    %731 = vmatprep.subr.mxu0 0.0
    %732 = vmatpush1.msra.mxu0 0.0
    %733 = vmatprep.subr.mxu0 0.0
    %734 = vmatpush1.msra.mxu0 0.0
    %735 = vmatprep.subr.mxu0 0.0
    %736 = vmatpush1.msra.mxu0 0.0
    %737 = vmatprep.subr.mxu0 0.0
    %738 = vmatpush1.msra.mxu0 0.0
    %739 = vmatprep.subr.mxu0 0.0
    %740 = vmatpush1.msra.mxu0 0.0
    %741 = vmatprep.subr.mxu0 0.0
    %742 = vmatpush1.msra.mxu0 %v314
    %743 = vmatprep.subr.mxu0 0.0
    %744 = vmatpush1.msra.mxu0 %v313
    %745 = vmatprep.subr.mxu0 0.0
    %746 = vmatpush1.msra.mxu0 %v312
    %747 = vmatprep.subr.mxu0 0.0
    %748 = vmatpush1.msra.mxu0 %v311
    %749 = vmatprep.subr.mxu0 0.0
    %750 = vmatpush2.msra.mxu0 0.0
    %751 = vmatprep.subr.mxu0 0.0
    %752 = vmatpush2.msra.mxu0 0.0
    %753 = vmatprep.subr.mxu0 0.0
    %754 = vmatpush2.msra.mxu0 0.0
    %755 = vmatprep.subr.mxu0 0.0
    %756 = vmatpush2.msra.mxu0 0.0
    %757 = vmatprep.subr.mxu0 0.0
    %758 = vmatpush2.msra.mxu0 0.0
    %759 = vmatprep.subr.mxu0 0.0
    %760 = vmatpush2.msra.mxu0 0.0
    %761 = vmatprep.subr.mxu0 0.0
    %762 = vmatpush2.msra.mxu0 0.0
    %763 = vmatprep.subr.mxu0 0.0
    %764 = vmatpush2.msra.mxu0 0.0
    %765 = vmatprep.subr.mxu0 0.0
    %766 = vmatpush2.msra.mxu0 0.0
    %767 = vmatprep.subr.mxu0 0.0
    %768 = vmatpush2.msra.mxu0 0.0
    %769 = vmatprep.subr.mxu0 0.0
    %770 = vmatpush2.msra.mxu0 0.0
    %771 = vmatprep.subr.mxu0 0.0
    %772 = vmatpush2.msra.mxu0 0.0
    %773 = vmatprep.subr.mxu0 0.0
    %774 = vmatpush2.msra.mxu0 0.0
    %775 = vmatprep.subr.mxu0 0.0
    %776 = vmatpush2.msra.mxu0 0.0
    %777 = vmatprep.subr.mxu0 0.0
    %778 = vmatpush2.msra.mxu0 0.0
    %779 = vmatprep.subr.mxu0 0.0
    %780 = vmatpush2.msra.mxu0 0.0
    %781 = vmatprep.mubr.f32.mxu0 0.0
    %782 = vmatmul.mubr.f32.gmra.mxu0 %v543
    %v783 = vpop.f32.mrf.mxu0
    %v784 = vadd.f32 %v635, %v783
    %v785 = vpop.f32.mrf.mxu0
    %786 = vmatprep.mubr.f32.mxu0 0.0
    %787 = vmatmul.mubr.f32.gmra.mxu0 %v546
    %v788 = vpop.f32.mrf.mxu0
    %v789 = vadd.f32 %v635, %v788
    %v790 = vpop.f32.mrf.mxu0
    %791 = vmatprep.mubr.f32.mxu0 0.0
    %792 = vmatmul.mubr.f32.gmra.mxu0 %v549
    %v793 = vpop.f32.mrf.mxu0
    %v794 = vadd.f32 %v635, %v793
    %v795 = vpop.f32.mrf.mxu0
    %796 = vdwg.mxu0
    %v798 = vlaneseq
    %v799 = vshrl.u32 %v798, 7
    %v800 = vsub.s32 0, %v799
    %v801 = vrot.slane %v320, %v800
    %803 = vmatprep.subr.mxu0 0.0
    %804 = vmatpush1.msra.mxu0 0.0
    %805 = vmatprep.subr.mxu0 0.0
    %806 = vmatpush1.msra.mxu0 0.0
    %807 = vmatprep.subr.mxu0 0.0
    %808 = vmatpush1.msra.mxu0 0.0
    %809 = vmatprep.subr.mxu0 0.0
    %810 = vmatpush1.msra.mxu0 0.0
    %811 = vmatprep.subr.mxu0 0.0
    %812 = vmatpush1.msra.mxu0 0.0
    %813 = vmatprep.subr.mxu0 0.0
    %814 = vmatpush1.msra.mxu0 0.0
    %815 = vmatprep.subr.mxu0 0.0
    %816 = vmatpush1.msra.mxu0 0.0
    %817 = vmatprep.subr.mxu0 0.0
    %818 = vmatpush1.msra.mxu0 0.0
    %819 = vmatprep.subr.mxu0 0.0
    %820 = vmatpush1.msra.mxu0 0.0
    %821 = vmatprep.subr.mxu0 0.0
    %822 = vmatpush1.msra.mxu0 0.0
    %823 = vmatprep.subr.mxu0 0.0
    %824 = vmatpush1.msra.mxu0 0.0
    %825 = vmatprep.subr.mxu0 0.0
    %826 = vmatpush1.msra.mxu0 0.0
    %827 = vmatprep.subr.mxu0 0.0
    %828 = vmatpush1.msra.mxu0 %v319
    %829 = vmatprep.subr.mxu0 0.0
    %830 = vmatpush1.msra.mxu0 %v318
    %831 = vmatprep.subr.mxu0 0.0
    %832 = vmatpush1.msra.mxu0 %v317
    %833 = vmatprep.subr.mxu0 0.0
    %834 = vmatpush1.msra.mxu0 %v316
    %835 = vmatprep.subr.mxu0 0.0
    %836 = vmatpush2.msra.mxu0 0.0
    %837 = vmatprep.subr.mxu0 0.0
    %838 = vmatpush2.msra.mxu0 0.0
    %839 = vmatprep.subr.mxu0 0.0
    %840 = vmatpush2.msra.mxu0 0.0
    %841 = vmatprep.subr.mxu0 0.0
    %842 = vmatpush2.msra.mxu0 0.0
    %843 = vmatprep.subr.mxu0 0.0
    %844 = vmatpush2.msra.mxu0 0.0
    %845 = vmatprep.subr.mxu0 0.0
    %846 = vmatpush2.msra.mxu0 0.0
    %847 = vmatprep.subr.mxu0 0.0
    %848 = vmatpush2.msra.mxu0 0.0
    %849 = vmatprep.subr.mxu0 0.0
    %850 = vmatpush2.msra.mxu0 0.0
    %851 = vmatprep.subr.mxu0 0.0
    %852 = vmatpush2.msra.mxu0 0.0
    %853 = vmatprep.subr.mxu0 0.0
    %854 = vmatpush2.msra.mxu0 0.0
    %855 = vmatprep.subr.mxu0 0.0
    %856 = vmatpush2.msra.mxu0 0.0
    %857 = vmatprep.subr.mxu0 0.0
    %858 = vmatpush2.msra.mxu0 0.0
    %859 = vmatprep.subr.mxu0 0.0
    %860 = vmatpush2.msra.mxu0 0.0
    %861 = vmatprep.subr.mxu0 0.0
    %862 = vmatpush2.msra.mxu0 0.0
    %863 = vmatprep.subr.mxu0 0.0
    %864 = vmatpush2.msra.mxu0 0.0
    %865 = vmatprep.subr.mxu0 0.0
    %866 = vmatpush2.msra.mxu0 0.0
    %867 = vmatprep.mubr.f32.mxu0 0.0
    %868 = vmatmul.mubr.f32.gmra.mxu0 %v454
    %v869 = vpop.f32.mrf.mxu0
    %v870 = vadd.f32 %v801, %v869
    %v871 = vpop.f32.mrf.mxu0
    %872 = vmatprep.mubr.f32.mxu0 0.0
    %873 = vmatmul.mubr.f32.gmra.mxu0 %v457
    %v874 = vpop.f32.mrf.mxu0
    %v875 = vadd.f32 %v801, %v874
    %v876 = vpop.f32.mrf.mxu0
    %877 = vmatprep.mubr.f32.mxu0 0.0
    %878 = vmatmul.mubr.f32.gmra.mxu0 %v460
    %v879 = vpop.f32.mrf.mxu0
    %v880 = vadd.f32 %v801, %v879
    %v881 = vpop.f32.mrf.mxu0
    %882 = vdwg.mxu0
    %883 = vmatprep.subr.mxu0 0.0
    %884 = vmatpush1.msra.mxu0 0.0
    %885 = vmatprep.subr.mxu0 0.0
    %886 = vmatpush1.msra.mxu0 0.0
    %887 = vmatprep.subr.mxu0 0.0
    %888 = vmatpush1.msra.mxu0 0.0
    %889 = vmatprep.subr.mxu0 0.0
    %890 = vmatpush1.msra.mxu0 0.0
    %891 = vmatprep.subr.mxu0 0.0
    %892 = vmatpush1.msra.mxu0 0.0
    %893 = vmatprep.subr.mxu0 0.0
    %894 = vmatpush1.msra.mxu0 0.0
    %895 = vmatprep.subr.mxu0 0.0
    %896 = vmatpush1.msra.mxu0 0.0
    %897 = vmatprep.subr.mxu0 0.0
    %898 = vmatpush1.msra.mxu0 0.0
    %899 = vmatprep.subr.mxu0 0.0
    %900 = vmatpush1.msra.mxu0 0.0
    %901 = vmatprep.subr.mxu0 0.0
    %902 = vmatpush1.msra.mxu0 0.0
    %903 = vmatprep.subr.mxu0 0.0
    %904 = vmatpush1.msra.mxu0 0.0
    %905 = vmatprep.subr.mxu0 0.0
    %906 = vmatpush1.msra.mxu0 0.0
    %907 = vmatprep.subr.mxu0 0.0
    %908 = vmatpush1.msra.mxu0 %v319
    %909 = vmatprep.subr.mxu0 0.0
    %910 = vmatpush1.msra.mxu0 %v318
    %911 = vmatprep.subr.mxu0 0.0
    %912 = vmatpush1.msra.mxu0 %v317
    %913 = vmatprep.subr.mxu0 0.0
    %914 = vmatpush1.msra.mxu0 %v316
    %915 = vmatprep.subr.mxu0 0.0
    %916 = vmatpush2.msra.mxu0 0.0
    %917 = vmatprep.subr.mxu0 0.0
    %918 = vmatpush2.msra.mxu0 0.0
    %919 = vmatprep.subr.mxu0 0.0
    %920 = vmatpush2.msra.mxu0 0.0
    %921 = vmatprep.subr.mxu0 0.0
    %922 = vmatpush2.msra.mxu0 0.0
    %923 = vmatprep.subr.mxu0 0.0
    %924 = vmatpush2.msra.mxu0 0.0
    %925 = vmatprep.subr.mxu0 0.0
    %926 = vmatpush2.msra.mxu0 0.0
    %927 = vmatprep.subr.mxu0 0.0
    %928 = vmatpush2.msra.mxu0 0.0
    %929 = vmatprep.subr.mxu0 0.0
    %930 = vmatpush2.msra.mxu0 0.0
    %931 = vmatprep.subr.mxu0 0.0
    %932 = vmatpush2.msra.mxu0 0.0
    %933 = vmatprep.subr.mxu0 0.0
    %934 = vmatpush2.msra.mxu0 0.0
    %935 = vmatprep.subr.mxu0 0.0
    %936 = vmatpush2.msra.mxu0 0.0
    %937 = vmatprep.subr.mxu0 0.0
    %938 = vmatpush2.msra.mxu0 0.0
    %939 = vmatprep.subr.mxu0 0.0
    %940 = vmatpush2.msra.mxu0 0.0
    %941 = vmatprep.subr.mxu0 0.0
    %942 = vmatpush2.msra.mxu0 0.0
    %943 = vmatprep.subr.mxu0 0.0
    %944 = vmatpush2.msra.mxu0 0.0
    %945 = vmatprep.subr.mxu0 0.0
    %946 = vmatpush2.msra.mxu0 0.0
    %947 = vmatprep.mubr.f32.mxu0 0.0
    %948 = vmatmul.mubr.f32.gmra.mxu0 %v543
    %v949 = vpop.f32.mrf.mxu0
    %v950 = vadd.f32 %v801, %v949
    %v951 = vpop.f32.mrf.mxu0
    %952 = vmatprep.mubr.f32.mxu0 0.0
    %953 = vmatmul.mubr.f32.gmra.mxu0 %v546
    %v954 = vpop.f32.mrf.mxu0
    %v955 = vadd.f32 %v801, %v954
    %v956 = vpop.f32.mrf.mxu0
    %957 = vmatprep.mubr.f32.mxu0 0.0
    %958 = vmatmul.mubr.f32.gmra.mxu0 %v549
    %v959 = vpop.f32.mrf.mxu0
    %v960 = vadd.f32 %v801, %v959
    %v961 = vpop.f32.mrf.mxu0
    %962 = vdwg.mxu0
    %v963 = vmul.f32 %v529, %v704
    %v964 = vmul.f32 %v534, %v709
    %v965 = vmul.f32 %v539, %v714
    %v967 = vsel %vm342, %v963, 0
    %v970 = vsel %vm342, %v964, 0
    %v973 = vsel %vm342, %v965, 0
    %975 = vmatprep.subr.mxu0 0.0
    %976 = vmatpush1.msra.mxu0 0.0
    %977 = vmatprep.subr.mxu0 0.0
    %978 = vmatpush1.msra.mxu0 0.0
    %979 = vmatprep.subr.mxu0 0.0
    %980 = vmatpush1.msra.mxu0 0.0
    %981 = vmatprep.subr.mxu0 0.0
    %982 = vmatpush1.msra.mxu0 0.0
    %983 = vmatprep.subr.mxu0 0.0
    %984 = vmatpush1.msra.mxu0 0.0
    %985 = vmatprep.subr.mxu0 0.0
    %986 = vmatpush1.msra.mxu0 0.0
    %987 = vmatprep.subr.mxu0 0.0
    %988 = vmatpush1.msra.mxu0 0.0
    %989 = vmatprep.subr.mxu0 0.0
    %990 = vmatpush1.msra.mxu0 0.0
    %991 = vmatprep.subr.mxu0 0.0
    %992 = vmatpush1.msra.mxu0 0.0
    %993 = vmatprep.subr.mxu0 0.0
    %994 = vmatpush1.msra.mxu0 0.0
    %995 = vmatprep.subr.mxu0 0.0
    %996 = vmatpush1.msra.mxu0 0.0
    %997 = vmatprep.subr.mxu0 0.0
    %998 = vmatpush1.msra.mxu0 0.0
    %999 = vmatprep.subr.mxu0 0.0
    %1000 = vmatpush1.msra.mxu0 %v90
    %1001 = vmatprep.subr.mxu0 0.0
    %1002 = vmatpush1.msra.mxu0 %v89
    %1003 = vmatprep.subr.mxu0 0.0
    %1004 = vmatpush1.msra.mxu0 %v88
    %1005 = vmatprep.subr.mxu0 0.0
    %1006 = vmatpush1.msra.mxu0 %v87
    %1007 = vmatprep.subr.mxu0 0.0
    %1008 = vmatpush2.msra.mxu0 0.0
    %1009 = vmatprep.subr.mxu0 0.0
    %1010 = vmatpush2.msra.mxu0 0.0
    %1011 = vmatprep.subr.mxu0 0.0
    %1012 = vmatpush2.msra.mxu0 0.0
    %1013 = vmatprep.subr.mxu0 0.0
    %1014 = vmatpush2.msra.mxu0 0.0
    %1015 = vmatprep.subr.mxu0 0.0
    %1016 = vmatpush2.msra.mxu0 0.0
    %1017 = vmatprep.subr.mxu0 0.0
    %1018 = vmatpush2.msra.mxu0 0.0
    %1019 = vmatprep.subr.mxu0 0.0
    %1020 = vmatpush2.msra.mxu0 0.0
    %1021 = vmatprep.subr.mxu0 0.0
    %1022 = vmatpush2.msra.mxu0 0.0
    %1023 = vmatprep.subr.mxu0 0.0
    %1024 = vmatpush2.msra.mxu0 0.0
    %1025 = vmatprep.subr.mxu0 0.0
    %1026 = vmatpush2.msra.mxu0 0.0
    %1027 = vmatprep.subr.mxu0 0.0
    %1028 = vmatpush2.msra.mxu0 0.0
    %1029 = vmatprep.subr.mxu0 0.0
    %1030 = vmatpush2.msra.mxu0 0.0
    %1031 = vmatprep.subr.mxu0 0.0
    %1032 = vmatpush2.msra.mxu0 0.0
    %1033 = vmatprep.subr.mxu0 0.0
    %1034 = vmatpush2.msra.mxu0 0.0
    %1035 = vmatprep.subr.mxu0 0.0
    %1036 = vmatpush2.msra.mxu0 0.0
    %1037 = vmatprep.subr.mxu0 0.0
    %1038 = vmatpush2.msra.mxu0 0.0
    %1039 = vmatprep.mubr.f32.mxu0 0.0
    %1040 = vmatmul.mubr.f32.gmra.mxu0 %v967
    %v1041 = vpop.f32.mrf.mxu0
    %v1042 = vadd.f32 0.0, %v1041
    %v1043 = vpop.f32.mrf.mxu0
    %1044 = vmatprep.mubr.f32.mxu0 0.0
    %1045 = vmatmul.mubr.f32.gmra.mxu0 %v970
    %v1046 = vpop.f32.mrf.mxu0
    %v1047 = vadd.f32 0.0, %v1046
    %v1048 = vpop.f32.mrf.mxu0
    %1049 = vmatprep.mubr.f32.mxu0 0.0
    %1050 = vmatmul.mubr.f32.gmra.mxu0 %v973
    %v1051 = vpop.f32.mrf.mxu0
    %v1052 = vadd.f32 0.0, %v1051
    %v1053 = vpop.f32.mrf.mxu0
    %1054 = vdwg.mxu0
    %v1055 = vmul.f32 %v1042, 0.35355338
    %v1056 = vmul.f32 %v1047, 0.35355338
    %v1057 = vmul.f32 %v1052, 0.35355338
    %v1058 = vmul.f32 %v529, %v784
    %v1059 = vmul.f32 %v534, %v789
    %v1060 = vmul.f32 %v539, %v794
    %v1062 = vsel %vm342, %v1058, 0
    %v1065 = vsel %vm342, %v1059, 0
    %v1068 = vsel %vm342, %v1060, 0
    %1070 = vmatprep.subr.mxu0 0.0
    %1071 = vmatpush1.msra.mxu0 0.0
    %1072 = vmatprep.subr.mxu0 0.0
    %1073 = vmatpush1.msra.mxu0 0.0
    %1074 = vmatprep.subr.mxu0 0.0
    %1075 = vmatpush1.msra.mxu0 0.0
    %1076 = vmatprep.subr.mxu0 0.0
    %1077 = vmatpush1.msra.mxu0 0.0
    %1078 = vmatprep.subr.mxu0 0.0
    %1079 = vmatpush1.msra.mxu0 0.0
    %1080 = vmatprep.subr.mxu0 0.0
    %1081 = vmatpush1.msra.mxu0 0.0
    %1082 = vmatprep.subr.mxu0 0.0
    %1083 = vmatpush1.msra.mxu0 0.0
    %1084 = vmatprep.subr.mxu0 0.0
    %1085 = vmatpush1.msra.mxu0 0.0
    %1086 = vmatprep.subr.mxu0 0.0
    %1087 = vmatpush1.msra.mxu0 0.0
    %1088 = vmatprep.subr.mxu0 0.0
    %1089 = vmatpush1.msra.mxu0 0.0
    %1090 = vmatprep.subr.mxu0 0.0
    %1091 = vmatpush1.msra.mxu0 0.0
    %1092 = vmatprep.subr.mxu0 0.0
    %1093 = vmatpush1.msra.mxu0 0.0
    %1094 = vmatprep.subr.mxu0 0.0
    %1095 = vmatpush1.msra.mxu0 %v90
    %1096 = vmatprep.subr.mxu0 0.0
    %1097 = vmatpush1.msra.mxu0 %v89
    %1098 = vmatprep.subr.mxu0 0.0
    %1099 = vmatpush1.msra.mxu0 %v88
    %1100 = vmatprep.subr.mxu0 0.0
    %1101 = vmatpush1.msra.mxu0 %v87
    %1102 = vmatprep.subr.mxu0 0.0
    %1103 = vmatpush2.msra.mxu0 0.0
    %1104 = vmatprep.subr.mxu0 0.0
    %1105 = vmatpush2.msra.mxu0 0.0
    %1106 = vmatprep.subr.mxu0 0.0
    %1107 = vmatpush2.msra.mxu0 0.0
    %1108 = vmatprep.subr.mxu0 0.0
    %1109 = vmatpush2.msra.mxu0 0.0
    %1110 = vmatprep.subr.mxu0 0.0
    %1111 = vmatpush2.msra.mxu0 0.0
    %1112 = vmatprep.subr.mxu0 0.0
    %1113 = vmatpush2.msra.mxu0 0.0
    %1114 = vmatprep.subr.mxu0 0.0
    %1115 = vmatpush2.msra.mxu0 0.0
    %1116 = vmatprep.subr.mxu0 0.0
    %1117 = vmatpush2.msra.mxu0 0.0
    %1118 = vmatprep.subr.mxu0 0.0
    %1119 = vmatpush2.msra.mxu0 0.0
    %1120 = vmatprep.subr.mxu0 0.0
    %1121 = vmatpush2.msra.mxu0 0.0
    %1122 = vmatprep.subr.mxu0 0.0
    %1123 = vmatpush2.msra.mxu0 0.0
    %1124 = vmatprep.subr.mxu0 0.0
    %1125 = vmatpush2.msra.mxu0 0.0
    %1126 = vmatprep.subr.mxu0 0.0
    %1127 = vmatpush2.msra.mxu0 0.0
    %1128 = vmatprep.subr.mxu0 0.0
    %1129 = vmatpush2.msra.mxu0 0.0
    %1130 = vmatprep.subr.mxu0 0.0
    %1131 = vmatpush2.msra.mxu0 0.0
    %1132 = vmatprep.subr.mxu0 0.0
    %1133 = vmatpush2.msra.mxu0 0.0
    %1134 = vmatprep.mubr.f32.mxu0 0.0
    %1135 = vmatmul.mubr.f32.gmra.mxu0 %v1062
    %v1136 = vpop.f32.mrf.mxu0
    %v1137 = vadd.f32 0.0, %v1136
    %v1138 = vpop.f32.mrf.mxu0
    %1139 = vmatprep.mubr.f32.mxu0 0.0
    %1140 = vmatmul.mubr.f32.gmra.mxu0 %v1065
    %v1141 = vpop.f32.mrf.mxu0
    %v1142 = vadd.f32 0.0, %v1141
    %v1143 = vpop.f32.mrf.mxu0
    %1144 = vmatprep.mubr.f32.mxu0 0.0
    %1145 = vmatmul.mubr.f32.gmra.mxu0 %v1068
    %v1146 = vpop.f32.mrf.mxu0
    %v1147 = vadd.f32 0.0, %v1146
    %v1148 = vpop.f32.mrf.mxu0
    %1149 = vdwg.mxu0
    %v1150 = vmul.f32 %v1137, 0.35355338
    %v1151 = vmul.f32 %v1142, 0.35355338
    %v1152 = vmul.f32 %v1147, 0.35355338
    %v1153 = vmul.f32 %v618, %v704
    %v1154 = vmul.f32 %v623, %v709
    %v1155 = vmul.f32 %v628, %v714
    %v1157 = vsel %vm342, %v1153, 0
    %v1160 = vsel %vm342, %v1154, 0
    %v1163 = vsel %vm342, %v1155, 0
    %1165 = vmatprep.subr.mxu0 0.0
    %1166 = vmatpush1.msra.mxu0 0.0
    %1167 = vmatprep.subr.mxu0 0.0
    %1168 = vmatpush1.msra.mxu0 0.0
    %1169 = vmatprep.subr.mxu0 0.0
    %1170 = vmatpush1.msra.mxu0 0.0
    %1171 = vmatprep.subr.mxu0 0.0
    %1172 = vmatpush1.msra.mxu0 0.0
    %1173 = vmatprep.subr.mxu0 0.0
    %1174 = vmatpush1.msra.mxu0 0.0
    %1175 = vmatprep.subr.mxu0 0.0
    %1176 = vmatpush1.msra.mxu0 0.0
    %1177 = vmatprep.subr.mxu0 0.0
    %1178 = vmatpush1.msra.mxu0 0.0
    %1179 = vmatprep.subr.mxu0 0.0
    %1180 = vmatpush1.msra.mxu0 0.0
    %1181 = vmatprep.subr.mxu0 0.0
    %1182 = vmatpush1.msra.mxu0 0.0
    %1183 = vmatprep.subr.mxu0 0.0
    %1184 = vmatpush1.msra.mxu0 0.0
    %1185 = vmatprep.subr.mxu0 0.0
    %1186 = vmatpush1.msra.mxu0 0.0
    %1187 = vmatprep.subr.mxu0 0.0
    %1188 = vmatpush1.msra.mxu0 0.0
    %1189 = vmatprep.subr.mxu0 0.0
    %1190 = vmatpush1.msra.mxu0 %v90
    %1191 = vmatprep.subr.mxu0 0.0
    %1192 = vmatpush1.msra.mxu0 %v89
    %1193 = vmatprep.subr.mxu0 0.0
    %1194 = vmatpush1.msra.mxu0 %v88
    %1195 = vmatprep.subr.mxu0 0.0
    %1196 = vmatpush1.msra.mxu0 %v87
    %1197 = vmatprep.subr.mxu0 0.0
    %1198 = vmatpush2.msra.mxu0 0.0
    %1199 = vmatprep.subr.mxu0 0.0
    %1200 = vmatpush2.msra.mxu0 0.0
    %1201 = vmatprep.subr.mxu0 0.0
    %1202 = vmatpush2.msra.mxu0 0.0
    %1203 = vmatprep.subr.mxu0 0.0
    %1204 = vmatpush2.msra.mxu0 0.0
    %1205 = vmatprep.subr.mxu0 0.0
    %1206 = vmatpush2.msra.mxu0 0.0
    %1207 = vmatprep.subr.mxu0 0.0
    %1208 = vmatpush2.msra.mxu0 0.0
    %1209 = vmatprep.subr.mxu0 0.0
    %1210 = vmatpush2.msra.mxu0 0.0
    %1211 = vmatprep.subr.mxu0 0.0
    %1212 = vmatpush2.msra.mxu0 0.0
    %1213 = vmatprep.subr.mxu0 0.0
    %1214 = vmatpush2.msra.mxu0 0.0
    %1215 = vmatprep.subr.mxu0 0.0
    %1216 = vmatpush2.msra.mxu0 0.0
    %1217 = vmatprep.subr.mxu0 0.0
    %1218 = vmatpush2.msra.mxu0 0.0
    %1219 = vmatprep.subr.mxu0 0.0
    %1220 = vmatpush2.msra.mxu0 0.0
    %1221 = vmatprep.subr.mxu0 0.0
    %1222 = vmatpush2.msra.mxu0 0.0
    %1223 = vmatprep.subr.mxu0 0.0
    %1224 = vmatpush2.msra.mxu0 0.0
    %1225 = vmatprep.subr.mxu0 0.0
    %1226 = vmatpush2.msra.mxu0 0.0
    %1227 = vmatprep.subr.mxu0 0.0
    %1228 = vmatpush2.msra.mxu0 0.0
    %1229 = vmatprep.mubr.f32.mxu0 0.0
    %1230 = vmatmul.mubr.f32.gmra.mxu0 %v1157
    %v1231 = vpop.f32.mrf.mxu0
    %v1232 = vadd.f32 0.0, %v1231
    %v1233 = vpop.f32.mrf.mxu0
    %1234 = vmatprep.mubr.f32.mxu0 0.0
    %1235 = vmatmul.mubr.f32.gmra.mxu0 %v1160
    %v1236 = vpop.f32.mrf.mxu0
    %v1237 = vadd.f32 0.0, %v1236
    %v1238 = vpop.f32.mrf.mxu0
    %1239 = vmatprep.mubr.f32.mxu0 0.0
    %1240 = vmatmul.mubr.f32.gmra.mxu0 %v1163
    %v1241 = vpop.f32.mrf.mxu0
    %v1242 = vadd.f32 0.0, %v1241
    %v1243 = vpop.f32.mrf.mxu0
    %1244 = vdwg.mxu0
    %v1245 = vmul.f32 %v1232, 0.35355338
    %v1246 = vmul.f32 %v1237, 0.35355338
    %v1247 = vmul.f32 %v1242, 0.35355338
    %v1248 = vmul.f32 %v618, %v784
    %v1249 = vmul.f32 %v623, %v789
    %v1250 = vmul.f32 %v628, %v794
    %v1252 = vsel %vm342, %v1248, 0
    %v1255 = vsel %vm342, %v1249, 0
    %v1258 = vsel %vm342, %v1250, 0
    %1260 = vmatprep.subr.mxu0 0.0
    %1261 = vmatpush1.msra.mxu0 0.0
    %1262 = vmatprep.subr.mxu0 0.0
    %1263 = vmatpush1.msra.mxu0 0.0
    %1264 = vmatprep.subr.mxu0 0.0
    %1265 = vmatpush1.msra.mxu0 0.0
    %1266 = vmatprep.subr.mxu0 0.0
    %1267 = vmatpush1.msra.mxu0 0.0
    %1268 = vmatprep.subr.mxu0 0.0
    %1269 = vmatpush1.msra.mxu0 0.0
    %1270 = vmatprep.subr.mxu0 0.0
    %1271 = vmatpush1.msra.mxu0 0.0
    %1272 = vmatprep.subr.mxu0 0.0
    %1273 = vmatpush1.msra.mxu0 0.0
    %1274 = vmatprep.subr.mxu0 0.0
    %1275 = vmatpush1.msra.mxu0 0.0
    %1276 = vmatprep.subr.mxu0 0.0
    %1277 = vmatpush1.msra.mxu0 0.0
    %1278 = vmatprep.subr.mxu0 0.0
    %1279 = vmatpush1.msra.mxu0 0.0
    %1280 = vmatprep.subr.mxu0 0.0
    %1281 = vmatpush1.msra.mxu0 0.0
    %1282 = vmatprep.subr.mxu0 0.0
    %1283 = vmatpush1.msra.mxu0 0.0
    %1284 = vmatprep.subr.mxu0 0.0
    %1285 = vmatpush1.msra.mxu0 %v90
    %1286 = vmatprep.subr.mxu0 0.0
    %1287 = vmatpush1.msra.mxu0 %v89
    %1288 = vmatprep.subr.mxu0 0.0
    %1289 = vmatpush1.msra.mxu0 %v88
    %1290 = vmatprep.subr.mxu0 0.0
    %1291 = vmatpush1.msra.mxu0 %v87
    %1292 = vmatprep.subr.mxu0 0.0
    %1293 = vmatpush2.msra.mxu0 0.0
    %1294 = vmatprep.subr.mxu0 0.0
    %1295 = vmatpush2.msra.mxu0 0.0
    %1296 = vmatprep.subr.mxu0 0.0
    %1297 = vmatpush2.msra.mxu0 0.0
    %1298 = vmatprep.subr.mxu0 0.0
    %1299 = vmatpush2.msra.mxu0 0.0
    %1300 = vmatprep.subr.mxu0 0.0
    %1301 = vmatpush2.msra.mxu0 0.0
    %1302 = vmatprep.subr.mxu0 0.0
    %1303 = vmatpush2.msra.mxu0 0.0
    %1304 = vmatprep.subr.mxu0 0.0
    %1305 = vmatpush2.msra.mxu0 0.0
    %1306 = vmatprep.subr.mxu0 0.0
    %1307 = vmatpush2.msra.mxu0 0.0
    %1308 = vmatprep.subr.mxu0 0.0
    %1309 = vmatpush2.msra.mxu0 0.0
    %1310 = vmatprep.subr.mxu0 0.0
    %1311 = vmatpush2.msra.mxu0 0.0
    %1312 = vmatprep.subr.mxu0 0.0
    %1313 = vmatpush2.msra.mxu0 0.0
    %1314 = vmatprep.subr.mxu0 0.0
    %1315 = vmatpush2.msra.mxu0 0.0
    %1316 = vmatprep.subr.mxu0 0.0
    %1317 = vmatpush2.msra.mxu0 0.0
    %1318 = vmatprep.subr.mxu0 0.0
    %1319 = vmatpush2.msra.mxu0 0.0
    %1320 = vmatprep.subr.mxu0 0.0
    %1321 = vmatpush2.msra.mxu0 0.0
    %1322 = vmatprep.subr.mxu0 0.0
    %1323 = vmatpush2.msra.mxu0 0.0
    %1324 = vmatprep.mubr.f32.mxu0 0.0
    %1325 = vmatmul.mubr.f32.gmra.mxu0 %v1252
    %v1326 = vpop.f32.mrf.mxu0
    %v1327 = vadd.f32 0.0, %v1326
    %v1328 = vpop.f32.mrf.mxu0
    %1329 = vmatprep.mubr.f32.mxu0 0.0
    %1330 = vmatmul.mubr.f32.gmra.mxu0 %v1255
    %v1331 = vpop.f32.mrf.mxu0
    %v1332 = vadd.f32 0.0, %v1331
    %v1333 = vpop.f32.mrf.mxu0
    %1334 = vmatprep.mubr.f32.mxu0 0.0
    %1335 = vmatmul.mubr.f32.gmra.mxu0 %v1258
    %v1336 = vpop.f32.mrf.mxu0
    %v1337 = vadd.f32 0.0, %v1336
    %v1338 = vpop.f32.mrf.mxu0
    %1339 = vdwg.mxu0
    %v1340 = vmul.f32 %v1327, 0.35355338
    %v1341 = vmul.f32 %v1332, 0.35355338
    %v1342 = vmul.f32 %v1337, 0.35355338
    %v1343 = vmax.f32 %v1055, %v1150
    %v1344 = vmax.f32 %v1056, %v1151
    %v1345 = vmax.f32 %v1057, %v1152
    %v1346 = vsub.f32 %v1055, %v1343
    %v1347 = vsub.f32 %v1056, %v1344
    %v1348 = vsub.f32 %v1057, %v1345
    %v1349 = vmul.f32 %v1346, 1.442695
    %v1350 = vpow.pop %v1349
    %v1351 = vmul.f32 %v1347, 1.442695
    %v1352 = vpow.pop %v1351
    %v1353 = vmul.f32 %v1348, 1.442695
    %v1354 = vpow.pop %v1353
    %v1355 = vsub.f32 %v1150, %v1343
    %v1356 = vsub.f32 %v1151, %v1344
    %v1357 = vsub.f32 %v1152, %v1345
    %v1358 = vmul.f32 %v1355, 1.442695
    %v1359 = vpow.pop %v1358
    %v1360 = vmul.f32 %v1356, 1.442695
    %v1361 = vpow.pop %v1360
    %v1362 = vmul.f32 %v1357, 1.442695
    %v1363 = vpow.pop %v1362
    %v1364 = vadd.f32 %v1350, %v1359
    %v1365 = vadd.f32 %v1352, %v1361
    %v1366 = vadd.f32 %v1354, %v1363
    %v1367 = vrcp.pop %v1364
    %v1368 = vrcp.pop %v1365
    %v1369 = vrcp.pop %v1366
    %v1370 = vmul.f32 %v1350, %v1367
    %v1371 = vmul.f32 %v1352, %v1368
    %v1372 = vmul.f32 %v1354, %v1369
    %v1373 = vmul.f32 %v1370, %v870
    %v1374 = vmul.f32 %v1371, %v875
    %v1375 = vmul.f32 %v1372, %v880
    %v1376 = vmul.f32 %v1359, %v1367
    %v1377 = vmul.f32 %v1361, %v1368
    %v1378 = vmul.f32 %v1363, %v1369
    %v1379 = vmul.f32 %v1376, %v950
    %v1380 = vmul.f32 %v1377, %v955
    %v1381 = vmul.f32 %v1378, %v960
    %v1382 = vadd.f32 %v1373, %v1379
    %v1383 = vadd.f32 %v1374, %v1380
    %v1384 = vadd.f32 %v1375, %v1381
    %v1385 = vmax.f32 %v1245, %v1340
    %v1386 = vmax.f32 %v1246, %v1341
    %v1387 = vmax.f32 %v1247, %v1342
    %v1388 = vsub.f32 %v1245, %v1385
    %v1389 = vsub.f32 %v1246, %v1386
    %v1390 = vsub.f32 %v1247, %v1387
    %v1391 = vmul.f32 %v1388, 1.442695
    %v1392 = vpow.pop %v1391
    %v1393 = vmul.f32 %v1389, 1.442695
    %v1394 = vpow.pop %v1393
    %v1395 = vmul.f32 %v1390, 1.442695
    %v1396 = vpow.pop %v1395
    %v1397 = vsub.f32 %v1340, %v1385
    %v1398 = vsub.f32 %v1341, %v1386
    %v1399 = vsub.f32 %v1342, %v1387
    %v1400 = vmul.f32 %v1397, 1.442695
    %v1401 = vpow.pop %v1400
    %v1402 = vmul.f32 %v1398, 1.442695
    %v1403 = vpow.pop %v1402
    %v1404 = vmul.f32 %v1399, 1.442695
    %v1405 = vpow.pop %v1404
    %v1406 = vadd.f32 %v1392, %v1401
    %v1407 = vadd.f32 %v1394, %v1403
    %v1408 = vadd.f32 %v1396, %v1405
    %v1409 = vrcp.pop %v1406
    %v1410 = vrcp.pop %v1407
    %v1411 = vrcp.pop %v1408
    %v1412 = vmul.f32 %v1392, %v1409
    %v1413 = vmul.f32 %v1394, %v1410
    %v1414 = vmul.f32 %v1396, %v1411
    %v1415 = vmul.f32 %v1412, %v870
    %v1416 = vmul.f32 %v1413, %v875
    %v1417 = vmul.f32 %v1414, %v880
    %v1418 = vmul.f32 %v1401, %v1409
    %v1419 = vmul.f32 %v1403, %v1410
    %v1420 = vmul.f32 %v1405, %v1411
    %v1421 = vmul.f32 %v1418, %v950
    %v1422 = vmul.f32 %v1419, %v955
    %v1423 = vmul.f32 %v1420, %v960
    %v1424 = vadd.f32 %v1415, %v1421
    %v1425 = vadd.f32 %v1416, %v1422
    %v1426 = vadd.f32 %v1417, %v1423
    %v1428 = vsel %vm342, %v1382, 0
    %v1431 = vsel %vm342, %v1383, 0
    %v1434 = vsel %vm342, %v1384, 0
    %1436 = vmatprep.subr.mxu0 0.0
    %1437 = vmatpush1.msra.mxu0 0.0
    %1438 = vmatprep.subr.mxu0 0.0
    %1439 = vmatpush1.msra.mxu0 0.0
    %1440 = vmatprep.subr.mxu0 0.0
    %1441 = vmatpush1.msra.mxu0 0.0
    %1442 = vmatprep.subr.mxu0 0.0
    %1443 = vmatpush1.msra.mxu0 0.0
    %1444 = vmatprep.subr.mxu0 0.0
    %1445 = vmatpush1.msra.mxu0 0.0
    %1446 = vmatprep.subr.mxu0 0.0
    %1447 = vmatpush1.msra.mxu0 0.0
    %1448 = vmatprep.subr.mxu0 0.0
    %1449 = vmatpush1.msra.mxu0 0.0
    %1450 = vmatprep.subr.mxu0 0.0
    %1451 = vmatpush1.msra.mxu0 0.0
    %1452 = vmatprep.subr.mxu0 0.0
    %1453 = vmatpush1.msra.mxu0 0.0
    %1454 = vmatprep.subr.mxu0 0.0
    %1455 = vmatpush1.msra.mxu0 0.0
    %1456 = vmatprep.subr.mxu0 0.0
    %1457 = vmatpush1.msra.mxu0 0.0
    %1458 = vmatprep.subr.mxu0 0.0
    %1459 = vmatpush1.msra.mxu0 0.0
    %1460 = vmatprep.subr.mxu0 0.0
    %1461 = vmatpush1.msra.mxu0 %v324
    %1462 = vmatprep.subr.mxu0 0.0
    %1463 = vmatpush1.msra.mxu0 %v323
    %1464 = vmatprep.subr.mxu0 0.0
    %1465 = vmatpush1.msra.mxu0 %v322
    %1466 = vmatprep.subr.mxu0 0.0
    %1467 = vmatpush1.msra.mxu0 %v321
    %1468 = vmatprep.subr.mxu0 0.0
    %1469 = vmatpush2.msra.mxu0 0.0
    %1470 = vmatprep.subr.mxu0 0.0
    %1471 = vmatpush2.msra.mxu0 0.0
    %1472 = vmatprep.subr.mxu0 0.0
    %1473 = vmatpush2.msra.mxu0 0.0
    %1474 = vmatprep.subr.mxu0 0.0
    %1475 = vmatpush2.msra.mxu0 0.0
    %1476 = vmatprep.subr.mxu0 0.0
    %1477 = vmatpush2.msra.mxu0 0.0
    %1478 = vmatprep.subr.mxu0 0.0
    %1479 = vmatpush2.msra.mxu0 0.0
    %1480 = vmatprep.subr.mxu0 0.0
    %1481 = vmatpush2.msra.mxu0 0.0
    %1482 = vmatprep.subr.mxu0 0.0
    %1483 = vmatpush2.msra.mxu0 0.0
    %1484 = vmatprep.subr.mxu0 0.0
    %1485 = vmatpush2.msra.mxu0 0.0
    %1486 = vmatprep.subr.mxu0 0.0
    %1487 = vmatpush2.msra.mxu0 0.0
    %1488 = vmatprep.subr.mxu0 0.0
    %1489 = vmatpush2.msra.mxu0 0.0
    %1490 = vmatprep.subr.mxu0 0.0
    %1491 = vmatpush2.msra.mxu0 0.0
    %1492 = vmatprep.subr.mxu0 0.0
    %1493 = vmatpush2.msra.mxu0 0.0
    %1494 = vmatprep.subr.mxu0 0.0
    %1495 = vmatpush2.msra.mxu0 0.0
    %1496 = vmatprep.subr.mxu0 0.0
    %1497 = vmatpush2.msra.mxu0 0.0
    %1498 = vmatprep.subr.mxu0 0.0
    %1499 = vmatpush2.msra.mxu0 0.0
    %1500 = vmatprep.mubr.f32.mxu0 0.0
    %1501 = vmatmul.mubr.f32.gmra.mxu0 %v1428
    %v1502 = vpop.f32.mrf.mxu0
    %v1503 = vadd.f32 0.0, %v1502
    %v1504 = vpop.f32.mrf.mxu0
    %1505 = vmatprep.mubr.f32.mxu0 0.0
    %1506 = vmatmul.mubr.f32.gmra.mxu0 %v1431
    %v1507 = vpop.f32.mrf.mxu0
    %v1508 = vadd.f32 0.0, %v1507
    %v1509 = vpop.f32.mrf.mxu0
    %1510 = vmatprep.mubr.f32.mxu0 0.0
    %1511 = vmatmul.mubr.f32.gmra.mxu0 %v1434
    %v1512 = vpop.f32.mrf.mxu0
    %v1513 = vadd.f32 0.0, %v1512
    %v1514 = vpop.f32.mrf.mxu0
    %1515 = vdwg.mxu0
    %v1516 = vadd.f32 %v198, %v1503
    %v1517 = vadd.f32 %v203, %v1508
    %v1518 = vadd.f32 %v208, %v1513
    %v1520 = vlaneseq
    %v1521 = vshrl.u32 %v1520, 7
    %v1522 = vsub.s32 0, %v1521
    %v1523 = vrot.slane %v325, %v1522
    %v1525 = vadd.f32 %v1516, %v1523
    %v1526 = vadd.f32 %v1517, %v1523
    %v1527 = vadd.f32 %v1518, %v1523
    %v1529 = vsel %vm342, %v1424, 0
    %v1532 = vsel %vm342, %v1425, 0
    %v1535 = vsel %vm342, %v1426, 0
    %1537 = vmatprep.subr.mxu0 0.0
    %1538 = vmatpush1.msra.mxu0 0.0
    %1539 = vmatprep.subr.mxu0 0.0
    %1540 = vmatpush1.msra.mxu0 0.0
    %1541 = vmatprep.subr.mxu0 0.0
    %1542 = vmatpush1.msra.mxu0 0.0
    %1543 = vmatprep.subr.mxu0 0.0
    %1544 = vmatpush1.msra.mxu0 0.0
    %1545 = vmatprep.subr.mxu0 0.0
    %1546 = vmatpush1.msra.mxu0 0.0
    %1547 = vmatprep.subr.mxu0 0.0
    %1548 = vmatpush1.msra.mxu0 0.0
    %1549 = vmatprep.subr.mxu0 0.0
    %1550 = vmatpush1.msra.mxu0 0.0
    %1551 = vmatprep.subr.mxu0 0.0
    %1552 = vmatpush1.msra.mxu0 0.0
    %1553 = vmatprep.subr.mxu0 0.0
    %1554 = vmatpush1.msra.mxu0 0.0
    %1555 = vmatprep.subr.mxu0 0.0
    %1556 = vmatpush1.msra.mxu0 0.0
    %1557 = vmatprep.subr.mxu0 0.0
    %1558 = vmatpush1.msra.mxu0 0.0
    %1559 = vmatprep.subr.mxu0 0.0
    %1560 = vmatpush1.msra.mxu0 0.0
    %1561 = vmatprep.subr.mxu0 0.0
    %1562 = vmatpush1.msra.mxu0 %v324
    %1563 = vmatprep.subr.mxu0 0.0
    %1564 = vmatpush1.msra.mxu0 %v323
    %1565 = vmatprep.subr.mxu0 0.0
    %1566 = vmatpush1.msra.mxu0 %v322
    %1567 = vmatprep.subr.mxu0 0.0
    %1568 = vmatpush1.msra.mxu0 %v321
    %1569 = vmatprep.subr.mxu0 0.0
    %1570 = vmatpush2.msra.mxu0 0.0
    %1571 = vmatprep.subr.mxu0 0.0
    %1572 = vmatpush2.msra.mxu0 0.0
    %1573 = vmatprep.subr.mxu0 0.0
    %1574 = vmatpush2.msra.mxu0 0.0
    %1575 = vmatprep.subr.mxu0 0.0
    %1576 = vmatpush2.msra.mxu0 0.0
    %1577 = vmatprep.subr.mxu0 0.0
    %1578 = vmatpush2.msra.mxu0 0.0
    %1579 = vmatprep.subr.mxu0 0.0
    %1580 = vmatpush2.msra.mxu0 0.0
    %1581 = vmatprep.subr.mxu0 0.0
    %1582 = vmatpush2.msra.mxu0 0.0
    %1583 = vmatprep.subr.mxu0 0.0
    %1584 = vmatpush2.msra.mxu0 0.0
    %1585 = vmatprep.subr.mxu0 0.0
    %1586 = vmatpush2.msra.mxu0 0.0
    %1587 = vmatprep.subr.mxu0 0.0
    %1588 = vmatpush2.msra.mxu0 0.0
    %1589 = vmatprep.subr.mxu0 0.0
    %1590 = vmatpush2.msra.mxu0 0.0
    %1591 = vmatprep.subr.mxu0 0.0
    %1592 = vmatpush2.msra.mxu0 0.0
    %1593 = vmatprep.subr.mxu0 0.0
    %1594 = vmatpush2.msra.mxu0 0.0
    %1595 = vmatprep.subr.mxu0 0.0
    %1596 = vmatpush2.msra.mxu0 0.0
    %1597 = vmatprep.subr.mxu0 0.0
    %1598 = vmatpush2.msra.mxu0 0.0
    %1599 = vmatprep.subr.mxu0 0.0
    %1600 = vmatpush2.msra.mxu0 0.0
    %1601 = vmatprep.mubr.f32.mxu0 0.0
    %1602 = vmatmul.mubr.f32.gmra.mxu0 %v1529
    %v1603 = vpop.f32.mrf.mxu0
    %v1604 = vadd.f32 0.0, %v1603
    %v1605 = vpop.f32.mrf.mxu0
    %1606 = vmatprep.mubr.f32.mxu0 0.0
    %1607 = vmatmul.mubr.f32.gmra.mxu0 %v1532
    %v1608 = vpop.f32.mrf.mxu0
    %v1609 = vadd.f32 0.0, %v1608
    %v1610 = vpop.f32.mrf.mxu0
    %1611 = vmatprep.mubr.f32.mxu0 0.0
    %1612 = vmatmul.mubr.f32.gmra.mxu0 %v1535
    %v1613 = vpop.f32.mrf.mxu0
    %v1614 = vadd.f32 0.0, %v1613
    %v1615 = vpop.f32.mrf.mxu0
    %1616 = vdwg.mxu0
    %v1617 = vadd.f32 %v291, %v1604
    %v1618 = vadd.f32 %v296, %v1609
    %v1619 = vadd.f32 %v301, %v1614
    %v1620 = vadd.f32 %v1617, %v1523
    %v1621 = vadd.f32 %v1618, %v1523
    %v1622 = vadd.f32 %v1619, %v1523
    %v1623 = vsel %vm342, %v1525, 0.0
    %1624 = vadd.xlane.f32.xlu0 %v1623
    %v1625 = vpop.xlane.xlu0 %1624
    %v1626 = vsel %vm342, %v1526, 0.0
    %1627 = vadd.xlane.f32.xlu0 %v1626
    %v1628 = vpop.xlane.xlu0 %1627
    %v1629 = vsel %vm349, %v1527, 0.0
    %1630 = vadd.xlane.f32.xlu0 %v1629
    %v1631 = vpop.xlane.xlu0 %1630
    %v1632 = vmul.f32 %v1625, %v353
    %v1633 = vmul.f32 %v1628, %v353
    %v1634 = vmul.f32 %v1631, %v353
    %v1635 = vsub.f32 %v1525, %v1632
    %v1636 = vsub.f32 %v1526, %v1633
    %v1637 = vsub.f32 %v1527, %v1634
    %v1638 = vmul.f32 %v1635, %v1635
    %v1639 = vmul.f32 %v1636, %v1636
    %v1640 = vmul.f32 %v1637, %v1637
    %v1641 = vsel %vm342, %v1638, 0.0
    %1642 = vadd.xlane.f32.xlu0 %v1641
    %v1643 = vpop.xlane.xlu0 %1642
    %v1644 = vsel %vm342, %v1639, 0.0
    %1645 = vadd.xlane.f32.xlu0 %v1644
    %v1646 = vpop.xlane.xlu0 %1645
    %v1647 = vsel %vm349, %v1640, 0.0
    %1648 = vadd.xlane.f32.xlu0 %v1647
    %v1649 = vpop.xlane.xlu0 %1648
    %v1650 = vmul.f32 %v1643, %v353
    %v1651 = vmul.f32 %v1646, %v353
    %v1652 = vmul.f32 %v1649, %v353
    %v1653 = vadd.f32 %v1650, 1e-05
    %v1654 = vadd.f32 %v1651, 1e-05
    %v1655 = vadd.f32 %v1652, 1e-05
    %v1656 = vrsqrt.pop %v1653
    %v1657 = vrsqrt.pop %v1654
    %v1658 = vrsqrt.pop %v1655
    %v1659 = vmul.f32 %v1635, %v1656
    %v1660 = vmul.f32 %v1636, %v1657
    %v1661 = vmul.f32 %v1637, %v1658
    %v1663 = vlaneseq
    %v1664 = vshrl.u32 %v1663, 7
    %v1665 = vsub.s32 0, %v1664
    %v1666 = vrot.slane %v326, %v1665
    %v1668 = vmul.f32 %v1659, %v1666
    %v1669 = vmul.f32 %v1660, %v1666
    %v1670 = vmul.f32 %v1661, %v1666
    %v1672 = vlaneseq
    %v1673 = vshrl.u32 %v1672, 7
    %v1674 = vsub.s32 0, %v1673
    %v1675 = vrot.slane %v327, %v1674
    %v1677 = vadd.f32 %v1668, %v1675
    %v1678 = vadd.f32 %v1669, %v1675
    %v1679 = vadd.f32 %v1670, %v1675
    %v1680 = vsel %vm342, %v1620, 0.0
    %1681 = vadd.xlane.f32.xlu0 %v1680
    %v1682 = vpop.xlane.xlu0 %1681
    %v1683 = vsel %vm342, %v1621, 0.0
    %1684 = vadd.xlane.f32.xlu0 %v1683
    %v1685 = vpop.xlane.xlu0 %1684
    %v1686 = vsel %vm349, %v1622, 0.0
    %1687 = vadd.xlane.f32.xlu0 %v1686
    %v1688 = vpop.xlane.xlu0 %1687
    %v1689 = vmul.f32 %v1682, %v353
    %v1690 = vmul.f32 %v1685, %v353
    %v1691 = vmul.f32 %v1688, %v353
    %v1692 = vsub.f32 %v1620, %v1689
    %v1693 = vsub.f32 %v1621, %v1690
    %v1694 = vsub.f32 %v1622, %v1691
    %v1695 = vmul.f32 %v1692, %v1692
    %v1696 = vmul.f32 %v1693, %v1693
    %v1697 = vmul.f32 %v1694, %v1694
    %v1698 = vsel %vm342, %v1695, 0.0
    %1699 = vadd.xlane.f32.xlu0 %v1698
    %v1700 = vpop.xlane.xlu0 %1699
    %v1701 = vsel %vm342, %v1696, 0.0
    %1702 = vadd.xlane.f32.xlu0 %v1701
    %v1703 = vpop.xlane.xlu0 %1702
    %v1704 = vsel %vm349, %v1697, 0.0
    %1705 = vadd.xlane.f32.xlu0 %v1704
    %v1706 = vpop.xlane.xlu0 %1705
    %v1707 = vmul.f32 %v1700, %v353
    %v1708 = vmul.f32 %v1703, %v353
    %v1709 = vmul.f32 %v1706, %v353
    %v1710 = vadd.f32 %v1707, 1e-05
    %v1711 = vadd.f32 %v1708, 1e-05
    %v1712 = vadd.f32 %v1709, 1e-05
    %v1713 = vrsqrt.pop %v1710
    %v1714 = vrsqrt.pop %v1711
    %v1715 = vrsqrt.pop %v1712
    %v1716 = vmul.f32 %v1692, %v1713
    %v1717 = vmul.f32 %v1693, %v1714
    %v1718 = vmul.f32 %v1694, %v1715
    %v1719 = vmul.f32 %v1716, %v1666
    %v1720 = vmul.f32 %v1717, %v1666
    %v1721 = vmul.f32 %v1718, %v1666
    %v1722 = vadd.f32 %v1719, %v1675
    %v1723 = vadd.f32 %v1720, %v1675
    %v1724 = vadd.f32 %v1721, %v1675
    %v1726 = vlaneseq
    %v1727 = vshrl.u32 %v1726, 7
    %v1728 = vsub.s32 0, %v1727
    %v1729 = vrot.slane %v332, %v1728
    %v1732 = vsel %vm342, %v1677, 0
    %v1735 = vsel %vm342, %v1678, 0
    %v1738 = vsel %vm342, %v1679, 0
    %1740 = vmatprep.subr.mxu0 0.0
    %1741 = vmatpush1.msra.mxu0 0.0
    %1742 = vmatprep.subr.mxu0 0.0
    %1743 = vmatpush1.msra.mxu0 0.0
    %1744 = vmatprep.subr.mxu0 0.0
    %1745 = vmatpush1.msra.mxu0 0.0
    %1746 = vmatprep.subr.mxu0 0.0
    %1747 = vmatpush1.msra.mxu0 0.0
    %1748 = vmatprep.subr.mxu0 0.0
    %1749 = vmatpush1.msra.mxu0 0.0
    %1750 = vmatprep.subr.mxu0 0.0
    %1751 = vmatpush1.msra.mxu0 0.0
    %1752 = vmatprep.subr.mxu0 0.0
    %1753 = vmatpush1.msra.mxu0 0.0
    %1754 = vmatprep.subr.mxu0 0.0
    %1755 = vmatpush1.msra.mxu0 0.0
    %1756 = vmatprep.subr.mxu0 0.0
    %1757 = vmatpush1.msra.mxu0 0.0
    %1758 = vmatprep.subr.mxu0 0.0
    %1759 = vmatpush1.msra.mxu0 0.0
    %1760 = vmatprep.subr.mxu0 0.0
    %1761 = vmatpush1.msra.mxu0 0.0
    %1762 = vmatprep.subr.mxu0 0.0
    %1763 = vmatpush1.msra.mxu0 0.0
    %1764 = vmatprep.subr.mxu0 0.0
    %1765 = vmatpush1.msra.mxu0 %v331
    %1766 = vmatprep.subr.mxu0 0.0
    %1767 = vmatpush1.msra.mxu0 %v330
    %1768 = vmatprep.subr.mxu0 0.0
    %1769 = vmatpush1.msra.mxu0 %v329
    %1770 = vmatprep.subr.mxu0 0.0
    %1771 = vmatpush1.msra.mxu0 %v328
    %1772 = vmatprep.subr.mxu0 0.0
    %1773 = vmatpush2.msra.mxu0 0.0
    %1774 = vmatprep.subr.mxu0 0.0
    %1775 = vmatpush2.msra.mxu0 0.0
    %1776 = vmatprep.subr.mxu0 0.0
    %1777 = vmatpush2.msra.mxu0 0.0
    %1778 = vmatprep.subr.mxu0 0.0
    %1779 = vmatpush2.msra.mxu0 0.0
    %1780 = vmatprep.subr.mxu0 0.0
    %1781 = vmatpush2.msra.mxu0 0.0
    %1782 = vmatprep.subr.mxu0 0.0
    %1783 = vmatpush2.msra.mxu0 0.0
    %1784 = vmatprep.subr.mxu0 0.0
    %1785 = vmatpush2.msra.mxu0 0.0
    %1786 = vmatprep.subr.mxu0 0.0
    %1787 = vmatpush2.msra.mxu0 0.0
    %1788 = vmatprep.subr.mxu0 0.0
    %1789 = vmatpush2.msra.mxu0 0.0
    %1790 = vmatprep.subr.mxu0 0.0
    %1791 = vmatpush2.msra.mxu0 0.0
    %1792 = vmatprep.subr.mxu0 0.0
    %1793 = vmatpush2.msra.mxu0 0.0
    %1794 = vmatprep.subr.mxu0 0.0
    %1795 = vmatpush2.msra.mxu0 0.0
    %1796 = vmatprep.subr.mxu0 0.0
    %1797 = vmatpush2.msra.mxu0 0.0
    %1798 = vmatprep.subr.mxu0 0.0
    %1799 = vmatpush2.msra.mxu0 0.0
    %1800 = vmatprep.subr.mxu0 0.0
    %1801 = vmatpush2.msra.mxu0 0.0
    %1802 = vmatprep.subr.mxu0 0.0
    %1803 = vmatpush2.msra.mxu0 0.0
    %1804 = vmatprep.mubr.f32.mxu0 0.0
    %1805 = vmatmul.mubr.f32.gmra.mxu0 %v1732
    %v1806 = vpop.f32.mrf.mxu0
    %v1807 = vadd.f32 %v1729, %v1806
    %v1808 = vpop.f32.mrf.mxu0
    %1809 = vmatprep.mubr.f32.mxu0 0.0
    %1810 = vmatmul.mubr.f32.gmra.mxu0 %v1735
    %v1811 = vpop.f32.mrf.mxu0
    %v1812 = vadd.f32 %v1729, %v1811
    %v1813 = vpop.f32.mrf.mxu0
    %1814 = vmatprep.mubr.f32.mxu0 0.0
    %1815 = vmatmul.mubr.f32.gmra.mxu0 %v1738
    %v1816 = vpop.f32.mrf.mxu0
    %v1817 = vadd.f32 %v1729, %v1816
    %v1818 = vpop.f32.mrf.mxu0
    %1819 = vdwg.mxu0
    %v1820 = vmul.f32 %v1807, 0.5
    %v1821 = vmul.f32 %v1812, 0.5
    %v1822 = vmul.f32 %v1817, 0.5
    %v1823 = vmul.f32 %v1807, 0.70710677
    %v1824 = vmul.f32 %v1812, 0.70710677
    %v1825 = vmul.f32 %v1817, 0.70710677
    %v1826 = verf.f32.pop %v1823
    %v1827 = verf.f32.pop %v1824
    %v1828 = verf.f32.pop %v1825
    %v1829 = vadd.f32 %v1826, 1.0
    %v1830 = vadd.f32 %v1827, 1.0
    %v1831 = vadd.f32 %v1828, 1.0
    %v1832 = vmul.f32 %v1820, %v1829
    %v1833 = vmul.f32 %v1821, %v1830
    %v1834 = vmul.f32 %v1822, %v1831
    %v1836 = vsel %vm342, %v1722, 0
    %v1839 = vsel %vm342, %v1723, 0
    %v1842 = vsel %vm342, %v1724, 0
    %1844 = vmatprep.subr.mxu0 0.0
    %1845 = vmatpush1.msra.mxu0 0.0
    %1846 = vmatprep.subr.mxu0 0.0
    %1847 = vmatpush1.msra.mxu0 0.0
    %1848 = vmatprep.subr.mxu0 0.0
    %1849 = vmatpush1.msra.mxu0 0.0
    %1850 = vmatprep.subr.mxu0 0.0
    %1851 = vmatpush1.msra.mxu0 0.0
    %1852 = vmatprep.subr.mxu0 0.0
    %1853 = vmatpush1.msra.mxu0 0.0
    %1854 = vmatprep.subr.mxu0 0.0
    %1855 = vmatpush1.msra.mxu0 0.0
    %1856 = vmatprep.subr.mxu0 0.0
    %1857 = vmatpush1.msra.mxu0 0.0
    %1858 = vmatprep.subr.mxu0 0.0
    %1859 = vmatpush1.msra.mxu0 0.0
    %1860 = vmatprep.subr.mxu0 0.0
    %1861 = vmatpush1.msra.mxu0 0.0
    %1862 = vmatprep.subr.mxu0 0.0
    %1863 = vmatpush1.msra.mxu0 0.0
    %1864 = vmatprep.subr.mxu0 0.0
    %1865 = vmatpush1.msra.mxu0 0.0
    %1866 = vmatprep.subr.mxu0 0.0
    %1867 = vmatpush1.msra.mxu0 0.0
    %1868 = vmatprep.subr.mxu0 0.0
    %1869 = vmatpush1.msra.mxu0 %v331
    %1870 = vmatprep.subr.mxu0 0.0
    %1871 = vmatpush1.msra.mxu0 %v330
    %1872 = vmatprep.subr.mxu0 0.0
    %1873 = vmatpush1.msra.mxu0 %v329
    %1874 = vmatprep.subr.mxu0 0.0
    %1875 = vmatpush1.msra.mxu0 %v328
    %1876 = vmatprep.subr.mxu0 0.0
    %1877 = vmatpush2.msra.mxu0 0.0
    %1878 = vmatprep.subr.mxu0 0.0
    %1879 = vmatpush2.msra.mxu0 0.0
    %1880 = vmatprep.subr.mxu0 0.0
    %1881 = vmatpush2.msra.mxu0 0.0
    %1882 = vmatprep.subr.mxu0 0.0
    %1883 = vmatpush2.msra.mxu0 0.0
    %1884 = vmatprep.subr.mxu0 0.0
    %1885 = vmatpush2.msra.mxu0 0.0
    %1886 = vmatprep.subr.mxu0 0.0
    %1887 = vmatpush2.msra.mxu0 0.0
    %1888 = vmatprep.subr.mxu0 0.0
    %1889 = vmatpush2.msra.mxu0 0.0
    %1890 = vmatprep.subr.mxu0 0.0
    %1891 = vmatpush2.msra.mxu0 0.0
    %1892 = vmatprep.subr.mxu0 0.0
    %1893 = vmatpush2.msra.mxu0 0.0
    %1894 = vmatprep.subr.mxu0 0.0
    %1895 = vmatpush2.msra.mxu0 0.0
    %1896 = vmatprep.subr.mxu0 0.0
    %1897 = vmatpush2.msra.mxu0 0.0
    %1898 = vmatprep.subr.mxu0 0.0
    %1899 = vmatpush2.msra.mxu0 0.0
    %1900 = vmatprep.subr.mxu0 0.0
    %1901 = vmatpush2.msra.mxu0 0.0
    %1902 = vmatprep.subr.mxu0 0.0
    %1903 = vmatpush2.msra.mxu0 0.0
    %1904 = vmatprep.subr.mxu0 0.0
    %1905 = vmatpush2.msra.mxu0 0.0
    %1906 = vmatprep.subr.mxu0 0.0
    %1907 = vmatpush2.msra.mxu0 0.0
    %1908 = vmatprep.mubr.f32.mxu0 0.0
    %1909 = vmatmul.mubr.f32.gmra.mxu0 %v1836
    %v1910 = vpop.f32.mrf.mxu0
    %v1911 = vadd.f32 %v1729, %v1910
    %v1912 = vpop.f32.mrf.mxu0
    %1913 = vmatprep.mubr.f32.mxu0 0.0
    %1914 = vmatmul.mubr.f32.gmra.mxu0 %v1839
    %v1915 = vpop.f32.mrf.mxu0
    %v1916 = vadd.f32 %v1729, %v1915
    %v1917 = vpop.f32.mrf.mxu0
    %1918 = vmatprep.mubr.f32.mxu0 0.0
    %1919 = vmatmul.mubr.f32.gmra.mxu0 %v1842
    %v1920 = vpop.f32.mrf.mxu0
    %v1921 = vadd.f32 %v1729, %v1920
    %v1922 = vpop.f32.mrf.mxu0
    %1923 = vdwg.mxu0
    %v1924 = vmul.f32 %v1911, 0.5
    %v1925 = vmul.f32 %v1916, 0.5
    %v1926 = vmul.f32 %v1921, 0.5
    %v1927 = vmul.f32 %v1911, 0.70710677
    %v1928 = vmul.f32 %v1916, 0.70710677
    %v1929 = vmul.f32 %v1921, 0.70710677
    %v1930 = verf.f32.pop %v1927
    %v1931 = verf.f32.pop %v1928
    %v1932 = verf.f32.pop %v1929
    %v1933 = vadd.f32 %v1930, 1.0
    %v1934 = vadd.f32 %v1931, 1.0
    %v1935 = vadd.f32 %v1932, 1.0
    %v1936 = vmul.f32 %v1924, %v1933
    %v1937 = vmul.f32 %v1925, %v1934
    %v1938 = vmul.f32 %v1926, %v1935
    %vm1939 = vcmask 523264
    %v1941 = vsel %vm1939, %v1832, 0
    %v1944 = vsel %vm1939, %v1833, 0
    %v1947 = vsel %vm1939, %v1834, 0
    %1949 = vmatprep.subr.mxu0 0.0
    %1950 = vmatpush1.msra.mxu0 0.0
    %1951 = vmatprep.subr.mxu0 0.0
    %1952 = vmatpush1.msra.mxu0 0.0
    %1953 = vmatprep.subr.mxu0 0.0
    %1954 = vmatpush1.msra.mxu0 0.0
    %1955 = vmatprep.subr.mxu0 0.0
    %1956 = vmatpush1.msra.mxu0 0.0
    %1957 = vmatprep.subr.mxu0 0.0
    %1958 = vmatpush1.msra.mxu0 0.0
    %1959 = vmatprep.subr.mxu0 0.0
    %1960 = vmatpush1.msra.mxu0 0.0
    %1961 = vmatprep.subr.mxu0 0.0
    %1962 = vmatpush1.msra.mxu0 0.0
    %1963 = vmatprep.subr.mxu0 0.0
    %1964 = vmatpush1.msra.mxu0 0.0
    %1965 = vmatprep.subr.mxu0 0.0
    %1966 = vmatpush1.msra.mxu0 %v340
    %1967 = vmatprep.subr.mxu0 0.0
    %1968 = vmatpush1.msra.mxu0 %v339
    %1969 = vmatprep.subr.mxu0 0.0
    %1970 = vmatpush1.msra.mxu0 %v338
    %1971 = vmatprep.subr.mxu0 0.0
    %1972 = vmatpush1.msra.mxu0 %v337
    %1973 = vmatprep.subr.mxu0 0.0
    %1974 = vmatpush1.msra.mxu0 %v336
    %1975 = vmatprep.subr.mxu0 0.0
    %1976 = vmatpush1.msra.mxu0 %v335
    %1977 = vmatprep.subr.mxu0 0.0
    %1978 = vmatpush1.msra.mxu0 %v334
    %1979 = vmatprep.subr.mxu0 0.0
    %1980 = vmatpush1.msra.mxu0 %v333
    %1981 = vmatprep.subr.mxu0 0.0
    %1982 = vmatpush2.msra.mxu0 0.0
    %1983 = vmatprep.subr.mxu0 0.0
    %1984 = vmatpush2.msra.mxu0 0.0
    %1985 = vmatprep.subr.mxu0 0.0
    %1986 = vmatpush2.msra.mxu0 0.0
    %1987 = vmatprep.subr.mxu0 0.0
    %1988 = vmatpush2.msra.mxu0 0.0
    %1989 = vmatprep.subr.mxu0 0.0
    %1990 = vmatpush2.msra.mxu0 0.0
    %1991 = vmatprep.subr.mxu0 0.0
    %1992 = vmatpush2.msra.mxu0 0.0
    %1993 = vmatprep.subr.mxu0 0.0
    %1994 = vmatpush2.msra.mxu0 0.0
    %1995 = vmatprep.subr.mxu0 0.0
    %1996 = vmatpush2.msra.mxu0 0.0
    %1997 = vmatprep.subr.mxu0 0.0
    %1998 = vmatpush2.msra.mxu0 0.0
    %1999 = vmatprep.subr.mxu0 0.0
    %2000 = vmatpush2.msra.mxu0 0.0
    %2001 = vmatprep.subr.mxu0 0.0
    %2002 = vmatpush2.msra.mxu0 0.0
    %2003 = vmatprep.subr.mxu0 0.0
    %2004 = vmatpush2.msra.mxu0 0.0
    %2005 = vmatprep.subr.mxu0 0.0
    %2006 = vmatpush2.msra.mxu0 0.0
    %2007 = vmatprep.subr.mxu0 0.0
    %2008 = vmatpush2.msra.mxu0 0.0
    %2009 = vmatprep.subr.mxu0 0.0
    %2010 = vmatpush2.msra.mxu0 0.0
    %2011 = vmatprep.subr.mxu0 0.0
    %2012 = vmatpush2.msra.mxu0 0.0
    %2013 = vmatprep.mubr.f32.mxu0 0.0
    %2014 = vmatmul.mubr.f32.gmra.mxu0 %v1941
    %v2015 = vpop.f32.mrf.mxu0
    %v2016 = vadd.f32 0.0, %v2015
    %v2017 = vpop.f32.mrf.mxu0
    %2018 = vmatprep.mubr.f32.mxu0 0.0
    %2019 = vmatmul.mubr.f32.gmra.mxu0 %v1944
    %v2020 = vpop.f32.mrf.mxu0
    %v2021 = vadd.f32 0.0, %v2020
    %v2022 = vpop.f32.mrf.mxu0
    %2023 = vmatprep.mubr.f32.mxu0 0.0
    %2024 = vmatmul.mubr.f32.gmra.mxu0 %v1947
    %v2025 = vpop.f32.mrf.mxu0
    %v2026 = vadd.f32 0.0, %v2025
    %v2027 = vpop.f32.mrf.mxu0
    %2028 = vdwg.mxu0
    %v2029 = vadd.f32 %v1525, %v2016
    %v2030 = vadd.f32 %v1526, %v2021
    %v2031 = vadd.f32 %v1527, %v2026
    %v2033 = vlaneseq
    %v2034 = vshrl.u32 %v2033, 7
    %v2035 = vsub.s32 0, %v2034
    %v2036 = vrot.slane %v341, %v2035
    %v2038 = vadd.f32 %v2029, %v2036
    %v2039 = vadd.f32 %v2030, %v2036
    %v2040 = vadd.f32 %v2031, %v2036
    %v2042 = vsel %vm1939, %v1936, 0
    %v2045 = vsel %vm1939, %v1937, 0
    %v2048 = vsel %vm1939, %v1938, 0
    %2050 = vmatprep.subr.mxu0 0.0
    %2051 = vmatpush1.msra.mxu0 0.0
    %2052 = vmatprep.subr.mxu0 0.0
    %2053 = vmatpush1.msra.mxu0 0.0
    %2054 = vmatprep.subr.mxu0 0.0
    %2055 = vmatpush1.msra.mxu0 0.0
    %2056 = vmatprep.subr.mxu0 0.0
    %2057 = vmatpush1.msra.mxu0 0.0
    %2058 = vmatprep.subr.mxu0 0.0
    %2059 = vmatpush1.msra.mxu0 0.0
    %2060 = vmatprep.subr.mxu0 0.0
    %2061 = vmatpush1.msra.mxu0 0.0
    %2062 = vmatprep.subr.mxu0 0.0
    %2063 = vmatpush1.msra.mxu0 0.0
    %2064 = vmatprep.subr.mxu0 0.0
    %2065 = vmatpush1.msra.mxu0 0.0
    %2066 = vmatprep.subr.mxu0 0.0
    %2067 = vmatpush1.msra.mxu0 %v340
    %2068 = vmatprep.subr.mxu0 0.0
    %2069 = vmatpush1.msra.mxu0 %v339
    %2070 = vmatprep.subr.mxu0 0.0
    %2071 = vmatpush1.msra.mxu0 %v338
    %2072 = vmatprep.subr.mxu0 0.0
    %2073 = vmatpush1.msra.mxu0 %v337
    %2074 = vmatprep.subr.mxu0 0.0
    %2075 = vmatpush1.msra.mxu0 %v336
    %2076 = vmatprep.subr.mxu0 0.0
    %2077 = vmatpush1.msra.mxu0 %v335
    %2078 = vmatprep.subr.mxu0 0.0
    %2079 = vmatpush1.msra.mxu0 %v334
    %2080 = vmatprep.subr.mxu0 0.0
    %2081 = vmatpush1.msra.mxu0 %v333
    %2082 = vmatprep.subr.mxu0 0.0
    %2083 = vmatpush2.msra.mxu0 0.0
    %2084 = vmatprep.subr.mxu0 0.0
    %2085 = vmatpush2.msra.mxu0 0.0
    %2086 = vmatprep.subr.mxu0 0.0
    %2087 = vmatpush2.msra.mxu0 0.0
    %2088 = vmatprep.subr.mxu0 0.0
    %2089 = vmatpush2.msra.mxu0 0.0
    %2090 = vmatprep.subr.mxu0 0.0
    %2091 = vmatpush2.msra.mxu0 0.0
    %2092 = vmatprep.subr.mxu0 0.0
    %2093 = vmatpush2.msra.mxu0 0.0
    %2094 = vmatprep.subr.mxu0 0.0
    %2095 = vmatpush2.msra.mxu0 0.0
    %2096 = vmatprep.subr.mxu0 0.0
    %2097 = vmatpush2.msra.mxu0 0.0
    %2098 = vmatprep.subr.mxu0 0.0
    %2099 = vmatpush2.msra.mxu0 0.0
    %2100 = vmatprep.subr.mxu0 0.0
    %2101 = vmatpush2.msra.mxu0 0.0
    %2102 = vmatprep.subr.mxu0 0.0
    %2103 = vmatpush2.msra.mxu0 0.0
    %2104 = vmatprep.subr.mxu0 0.0
    %2105 = vmatpush2.msra.mxu0 0.0
    %2106 = vmatprep.subr.mxu0 0.0
    %2107 = vmatpush2.msra.mxu0 0.0
    %2108 = vmatprep.subr.mxu0 0.0
    %2109 = vmatpush2.msra.mxu0 0.0
    %2110 = vmatprep.subr.mxu0 0.0
    %2111 = vmatpush2.msra.mxu0 0.0
    %2112 = vmatprep.subr.mxu0 0.0
    %2113 = vmatpush2.msra.mxu0 0.0
    %2114 = vmatprep.mubr.f32.mxu0 0.0
    %2115 = vmatmul.mubr.f32.gmra.mxu0 %v2042
    %v2116 = vpop.f32.mrf.mxu0
    %v2117 = vadd.f32 0.0, %v2116
    %v2118 = vpop.f32.mrf.mxu0
    %2119 = vmatprep.mubr.f32.mxu0 0.0
    %2120 = vmatmul.mubr.f32.gmra.mxu0 %v2045
    %v2121 = vpop.f32.mrf.mxu0
    %v2122 = vadd.f32 0.0, %v2121
    %v2123 = vpop.f32.mrf.mxu0
    %2124 = vmatprep.mubr.f32.mxu0 0.0
    %2125 = vmatmul.mubr.f32.gmra.mxu0 %v2048
    %v2126 = vpop.f32.mrf.mxu0
    %v2127 = vadd.f32 0.0, %v2126
    %v2128 = vpop.f32.mrf.mxu0
    %2129 = vdwg.mxu0
    %v2130 = vadd.f32 %v1620, %v2117
    %v2131 = vadd.f32 %v1621, %v2122
    %v2132 = vadd.f32 %v1622, %v2127
    %v2133 = vadd.f32 %v2130, %v2036
    %v2134 = vadd.f32 %v2131, %v2036
    %v2135 = vadd.f32 %v2132, %v2036
    %s2136 = scalar_lea.vmem %s6, 1
    %v2137 = vld [vmem:[%s2136] sm:$0x1]
    %s2138 = scalar_lea.vmem %s7, 1
    %v2139 = vld [vmem:[%s2138] sm:$0x1]
    %s2140 = scalar_lea.vmem %s8, 32
    %v2141 = vld [vmem:[%s2140] sm:$0xff]
    %v2142 = vld [vmem:[%s2140 + $0x8] sm:$0xff]
    %v2143 = vld [vmem:[%s2140 + $0x10] sm:$0xff]
    %v2144 = vld [vmem:[%s2140 + $0x18] sm:$0xff]
    %s2145 = scalar_lea.vmem %s9, 1
    %v2146 = vld [vmem:[%s2145] sm:$0x1]
    %s2147 = scalar_lea.vmem %s10, 32
    %v2148 = vld [vmem:[%s2147] sm:$0xff]
    %v2149 = vld [vmem:[%s2147 + $0x8] sm:$0xff]
    %v2150 = vld [vmem:[%s2147 + $0x10] sm:$0xff]
    %v2151 = vld [vmem:[%s2147 + $0x18] sm:$0xff]
    %s2152 = scalar_lea.vmem %s11, 1
    %v2153 = vld [vmem:[%s2152] sm:$0x1]
    %s2154 = scalar_lea.vmem %s12, 32
    %v2155 = vld [vmem:[%s2154] sm:$0xff]
    %v2156 = vld [vmem:[%s2154 + $0x8] sm:$0xff]
    %v2157 = vld [vmem:[%s2154 + $0x10] sm:$0xff]
    %v2158 = vld [vmem:[%s2154 + $0x18] sm:$0xff]
    %s2159 = scalar_lea.vmem %s13, 1
    %v2160 = vld [vmem:[%s2159] sm:$0x1]
    %s2161 = scalar_lea.vmem %s14, 32
    %v2162 = vld [vmem:[%s2161] sm:$0xff]
    %v2163 = vld [vmem:[%s2161 + $0x8] sm:$0xff]
    %v2164 = vld [vmem:[%s2161 + $0x10] sm:$0xff]
    %v2165 = vld [vmem:[%s2161 + $0x18] sm:$0xff]
    %s2166 = scalar_lea.vmem %s15, 1
    %v2167 = vld [vmem:[%s2166] sm:$0x1]
    %s2168 = scalar_lea.vmem %s16, 1
    %v2169 = vld [vmem:[%s2168] sm:$0x1]
    %s2170 = scalar_lea.vmem %s17, 1
    %v2171 = vld [vmem:[%s2170] sm:$0x1]
    %s2172 = scalar_lea.vmem %s18, 32
    %v2173 = vld [vmem:[%s2172] sm:$0xff]
    %v2174 = vld [vmem:[%s2172 + $0x8] sm:$0xff]
    %v2175 = vld [vmem:[%s2172 + $0x10] sm:$0xff]
    %v2176 = vld [vmem:[%s2172 + $0x18] sm:$0xff]
    %s2177 = scalar_lea.vmem %s19, 1
    %v2178 = vld [vmem:[%s2177] sm:$0x1]
    %s2179 = scalar_lea.vmem %s20, 64
    %v2180 = vld [vmem:[%s2179] sm:$0xff]
    %v2181 = vld [vmem:[%s2179 + $0x8] sm:$0xff]
    %v2182 = vld [vmem:[%s2179 + $0x10] sm:$0xff]
    %v2183 = vld [vmem:[%s2179 + $0x18] sm:$0xff]
    %v2184 = vld [vmem:[%s2179 + $0x20] sm:$0xff]
    %v2185 = vld [vmem:[%s2179 + $0x28] sm:$0xff]
    %v2186 = vld [vmem:[%s2179 + $0x30] sm:$0xff]
    %v2187 = vld [vmem:[%s2179 + $0x38] sm:$0xff]
    %s2188 = scalar_lea.vmem %s21, 1
    %v2189 = vld [vmem:[%s2188] sm:$0x1]
    %v2190 = vsel %vm342, %v2038, 0.0
    %2191 = vadd.xlane.f32.xlu0 %v2190
    %v2192 = vpop.xlane.xlu0 %2191
    %v2193 = vsel %vm342, %v2039, 0.0
    %2194 = vadd.xlane.f32.xlu0 %v2193
    %v2195 = vpop.xlane.xlu0 %2194
    %v2196 = vsel %vm349, %v2040, 0.0
    %2197 = vadd.xlane.f32.xlu0 %v2196
    %v2198 = vpop.xlane.xlu0 %2197
    %v2199 = vmul.f32 %v2192, %v353
    %v2200 = vmul.f32 %v2195, %v353
    %v2201 = vmul.f32 %v2198, %v353
    %v2202 = vsub.f32 %v2038, %v2199
    %v2203 = vsub.f32 %v2039, %v2200
    %v2204 = vsub.f32 %v2040, %v2201
    %v2205 = vmul.f32 %v2202, %v2202
    %v2206 = vmul.f32 %v2203, %v2203
    %v2207 = vmul.f32 %v2204, %v2204
    %v2208 = vsel %vm342, %v2205, 0.0
    %2209 = vadd.xlane.f32.xlu0 %v2208
    %v2210 = vpop.xlane.xlu0 %2209
    %v2211 = vsel %vm342, %v2206, 0.0
    %2212 = vadd.xlane.f32.xlu0 %v2211
    %v2213 = vpop.xlane.xlu0 %2212
    %v2214 = vsel %vm349, %v2207, 0.0
    %2215 = vadd.xlane.f32.xlu0 %v2214
    %v2216 = vpop.xlane.xlu0 %2215
    %v2217 = vmul.f32 %v2210, %v353
    %v2218 = vmul.f32 %v2213, %v353
    %v2219 = vmul.f32 %v2216, %v353
    %v2220 = vadd.f32 %v2217, 1e-05
    %v2221 = vadd.f32 %v2218, 1e-05
    %v2222 = vadd.f32 %v2219, 1e-05
    %v2223 = vrsqrt.pop %v2220
    %v2224 = vrsqrt.pop %v2221
    %v2225 = vrsqrt.pop %v2222
    %v2226 = vmul.f32 %v2202, %v2223
    %v2227 = vmul.f32 %v2203, %v2224
    %v2228 = vmul.f32 %v2204, %v2225
    %v2230 = vlaneseq
    %v2231 = vshrl.u32 %v2230, 7
    %v2232 = vsub.s32 0, %v2231
    %v2233 = vrot.slane %v2137, %v2232
    %v2235 = vmul.f32 %v2226, %v2233
    %v2236 = vmul.f32 %v2227, %v2233
    %v2237 = vmul.f32 %v2228, %v2233
    %v2239 = vlaneseq
    %v2240 = vshrl.u32 %v2239, 7
    %v2241 = vsub.s32 0, %v2240
    %v2242 = vrot.slane %v2139, %v2241
    %v2244 = vadd.f32 %v2235, %v2242
    %v2245 = vadd.f32 %v2236, %v2242
    %v2246 = vadd.f32 %v2237, %v2242
    %v2247 = vsel %vm342, %v2133, 0.0
    %2248 = vadd.xlane.f32.xlu0 %v2247
    %v2249 = vpop.xlane.xlu0 %2248
    %v2250 = vsel %vm342, %v2134, 0.0
    %2251 = vadd.xlane.f32.xlu0 %v2250
    %v2252 = vpop.xlane.xlu0 %2251
    %v2253 = vsel %vm349, %v2135, 0.0
    %2254 = vadd.xlane.f32.xlu0 %v2253
    %v2255 = vpop.xlane.xlu0 %2254
    %v2256 = vmul.f32 %v2249, %v353
    %v2257 = vmul.f32 %v2252, %v353
    %v2258 = vmul.f32 %v2255, %v353
    %v2259 = vsub.f32 %v2133, %v2256
    %v2260 = vsub.f32 %v2134, %v2257
    %v2261 = vsub.f32 %v2135, %v2258
    %v2262 = vmul.f32 %v2259, %v2259
    %v2263 = vmul.f32 %v2260, %v2260
    %v2264 = vmul.f32 %v2261, %v2261
    %v2265 = vsel %vm342, %v2262, 0.0
    %2266 = vadd.xlane.f32.xlu0 %v2265
    %v2267 = vpop.xlane.xlu0 %2266
    %v2268 = vsel %vm342, %v2263, 0.0
    %2269 = vadd.xlane.f32.xlu0 %v2268
    %v2270 = vpop.xlane.xlu0 %2269
    %v2271 = vsel %vm349, %v2264, 0.0
    %2272 = vadd.xlane.f32.xlu0 %v2271
    %v2273 = vpop.xlane.xlu0 %2272
    %v2274 = vmul.f32 %v2267, %v353
    %v2275 = vmul.f32 %v2270, %v353
    %v2276 = vmul.f32 %v2273, %v353
    %v2277 = vadd.f32 %v2274, 1e-05
    %v2278 = vadd.f32 %v2275, 1e-05
    %v2279 = vadd.f32 %v2276, 1e-05
    %v2280 = vrsqrt.pop %v2277
    %v2281 = vrsqrt.pop %v2278
    %v2282 = vrsqrt.pop %v2279
    %v2283 = vmul.f32 %v2259, %v2280
    %v2284 = vmul.f32 %v2260, %v2281
    %v2285 = vmul.f32 %v2261, %v2282
    %v2286 = vmul.f32 %v2283, %v2233
    %v2287 = vmul.f32 %v2284, %v2233
    %v2288 = vmul.f32 %v2285, %v2233
    %v2289 = vadd.f32 %v2286, %v2242
    %v2290 = vadd.f32 %v2287, %v2242
    %v2291 = vadd.f32 %v2288, %v2242
    %v2293 = vlaneseq
    %v2294 = vshrl.u32 %v2293, 7
    %v2295 = vsub.s32 0, %v2294
    %v2296 = vrot.slane %v2146, %v2295
    %v2299 = vsel %vm342, %v2244, 0
    %v2302 = vsel %vm342, %v2245, 0
    %v2305 = vsel %vm342, %v2246, 0
    %2307 = vmatprep.subr.mxu0 0.0
    %2308 = vmatpush1.msra.mxu0 0.0
    %2309 = vmatprep.subr.mxu0 0.0
    %2310 = vmatpush1.msra.mxu0 0.0
    %2311 = vmatprep.subr.mxu0 0.0
    %2312 = vmatpush1.msra.mxu0 0.0
    %2313 = vmatprep.subr.mxu0 0.0
    %2314 = vmatpush1.msra.mxu0 0.0
    %2315 = vmatprep.subr.mxu0 0.0
    %2316 = vmatpush1.msra.mxu0 0.0
    %2317 = vmatprep.subr.mxu0 0.0
    %2318 = vmatpush1.msra.mxu0 0.0
    %2319 = vmatprep.subr.mxu0 0.0
    %2320 = vmatpush1.msra.mxu0 0.0
    %2321 = vmatprep.subr.mxu0 0.0
    %2322 = vmatpush1.msra.mxu0 0.0
    %2323 = vmatprep.subr.mxu0 0.0
    %2324 = vmatpush1.msra.mxu0 0.0
    %2325 = vmatprep.subr.mxu0 0.0
    %2326 = vmatpush1.msra.mxu0 0.0
    %2327 = vmatprep.subr.mxu0 0.0
    %2328 = vmatpush1.msra.mxu0 0.0
    %2329 = vmatprep.subr.mxu0 0.0
    %2330 = vmatpush1.msra.mxu0 0.0
    %2331 = vmatprep.subr.mxu0 0.0
    %2332 = vmatpush1.msra.mxu0 %v2144
    %2333 = vmatprep.subr.mxu0 0.0
    %2334 = vmatpush1.msra.mxu0 %v2143
    %2335 = vmatprep.subr.mxu0 0.0
    %2336 = vmatpush1.msra.mxu0 %v2142
    %2337 = vmatprep.subr.mxu0 0.0
    %2338 = vmatpush1.msra.mxu0 %v2141
    %2339 = vmatprep.subr.mxu0 0.0
    %2340 = vmatpush2.msra.mxu0 0.0
    %2341 = vmatprep.subr.mxu0 0.0
    %2342 = vmatpush2.msra.mxu0 0.0
    %2343 = vmatprep.subr.mxu0 0.0
    %2344 = vmatpush2.msra.mxu0 0.0
    %2345 = vmatprep.subr.mxu0 0.0
    %2346 = vmatpush2.msra.mxu0 0.0
    %2347 = vmatprep.subr.mxu0 0.0
    %2348 = vmatpush2.msra.mxu0 0.0
    %2349 = vmatprep.subr.mxu0 0.0
    %2350 = vmatpush2.msra.mxu0 0.0
    %2351 = vmatprep.subr.mxu0 0.0
    %2352 = vmatpush2.msra.mxu0 0.0
    %2353 = vmatprep.subr.mxu0 0.0
    %2354 = vmatpush2.msra.mxu0 0.0
    %2355 = vmatprep.subr.mxu0 0.0
    %2356 = vmatpush2.msra.mxu0 0.0
    %2357 = vmatprep.subr.mxu0 0.0
    %2358 = vmatpush2.msra.mxu0 0.0
    %2359 = vmatprep.subr.mxu0 0.0
    %2360 = vmatpush2.msra.mxu0 0.0
    %2361 = vmatprep.subr.mxu0 0.0
    %2362 = vmatpush2.msra.mxu0 0.0
    %2363 = vmatprep.subr.mxu0 0.0
    %2364 = vmatpush2.msra.mxu0 0.0
    %2365 = vmatprep.subr.mxu0 0.0
    %2366 = vmatpush2.msra.mxu0 0.0
    %2367 = vmatprep.subr.mxu0 0.0
    %2368 = vmatpush2.msra.mxu0 0.0
    %2369 = vmatprep.subr.mxu0 0.0
    %2370 = vmatpush2.msra.mxu0 0.0
    %2371 = vmatprep.mubr.f32.mxu0 0.0
    %2372 = vmatmul.mubr.f32.gmra.mxu0 %v2299
    %v2373 = vpop.f32.mrf.mxu0
    %v2374 = vadd.f32 %v2296, %v2373
    %v2375 = vpop.f32.mrf.mxu0
    %2376 = vmatprep.mubr.f32.mxu0 0.0
    %2377 = vmatmul.mubr.f32.gmra.mxu0 %v2302
    %v2378 = vpop.f32.mrf.mxu0
    %v2379 = vadd.f32 %v2296, %v2378
    %v2380 = vpop.f32.mrf.mxu0
    %2381 = vmatprep.mubr.f32.mxu0 0.0
    %2382 = vmatmul.mubr.f32.gmra.mxu0 %v2305
    %v2383 = vpop.f32.mrf.mxu0
    %v2384 = vadd.f32 %v2296, %v2383
    %v2385 = vpop.f32.mrf.mxu0
    %2386 = vdwg.mxu0
    %v2388 = vsel %vm342, %v2289, 0
    %v2391 = vsel %vm342, %v2290, 0
    %v2394 = vsel %vm342, %v2291, 0
    %2396 = vmatprep.subr.mxu0 0.0
    %2397 = vmatpush1.msra.mxu0 0.0
    %2398 = vmatprep.subr.mxu0 0.0
    %2399 = vmatpush1.msra.mxu0 0.0
    %2400 = vmatprep.subr.mxu0 0.0
    %2401 = vmatpush1.msra.mxu0 0.0
    %2402 = vmatprep.subr.mxu0 0.0
    %2403 = vmatpush1.msra.mxu0 0.0
    %2404 = vmatprep.subr.mxu0 0.0
    %2405 = vmatpush1.msra.mxu0 0.0
    %2406 = vmatprep.subr.mxu0 0.0
    %2407 = vmatpush1.msra.mxu0 0.0
    %2408 = vmatprep.subr.mxu0 0.0
    %2409 = vmatpush1.msra.mxu0 0.0
    %2410 = vmatprep.subr.mxu0 0.0
    %2411 = vmatpush1.msra.mxu0 0.0
    %2412 = vmatprep.subr.mxu0 0.0
    %2413 = vmatpush1.msra.mxu0 0.0
    %2414 = vmatprep.subr.mxu0 0.0
    %2415 = vmatpush1.msra.mxu0 0.0
    %2416 = vmatprep.subr.mxu0 0.0
    %2417 = vmatpush1.msra.mxu0 0.0
    %2418 = vmatprep.subr.mxu0 0.0
    %2419 = vmatpush1.msra.mxu0 0.0
    %2420 = vmatprep.subr.mxu0 0.0
    %2421 = vmatpush1.msra.mxu0 %v2144
    %2422 = vmatprep.subr.mxu0 0.0
    %2423 = vmatpush1.msra.mxu0 %v2143
    %2424 = vmatprep.subr.mxu0 0.0
    %2425 = vmatpush1.msra.mxu0 %v2142
    %2426 = vmatprep.subr.mxu0 0.0
    %2427 = vmatpush1.msra.mxu0 %v2141
    %2428 = vmatprep.subr.mxu0 0.0
    %2429 = vmatpush2.msra.mxu0 0.0
    %2430 = vmatprep.subr.mxu0 0.0
    %2431 = vmatpush2.msra.mxu0 0.0
    %2432 = vmatprep.subr.mxu0 0.0
    %2433 = vmatpush2.msra.mxu0 0.0
    %2434 = vmatprep.subr.mxu0 0.0
    %2435 = vmatpush2.msra.mxu0 0.0
    %2436 = vmatprep.subr.mxu0 0.0
    %2437 = vmatpush2.msra.mxu0 0.0
    %2438 = vmatprep.subr.mxu0 0.0
    %2439 = vmatpush2.msra.mxu0 0.0
    %2440 = vmatprep.subr.mxu0 0.0
    %2441 = vmatpush2.msra.mxu0 0.0
    %2442 = vmatprep.subr.mxu0 0.0
    %2443 = vmatpush2.msra.mxu0 0.0
    %2444 = vmatprep.subr.mxu0 0.0
    %2445 = vmatpush2.msra.mxu0 0.0
    %2446 = vmatprep.subr.mxu0 0.0
    %2447 = vmatpush2.msra.mxu0 0.0
    %2448 = vmatprep.subr.mxu0 0.0
    %2449 = vmatpush2.msra.mxu0 0.0
    %2450 = vmatprep.subr.mxu0 0.0
    %2451 = vmatpush2.msra.mxu0 0.0
    %2452 = vmatprep.subr.mxu0 0.0
    %2453 = vmatpush2.msra.mxu0 0.0
    %2454 = vmatprep.subr.mxu0 0.0
    %2455 = vmatpush2.msra.mxu0 0.0
    %2456 = vmatprep.subr.mxu0 0.0
    %2457 = vmatpush2.msra.mxu0 0.0
    %2458 = vmatprep.subr.mxu0 0.0
    %2459 = vmatpush2.msra.mxu0 0.0
    %2460 = vmatprep.mubr.f32.mxu0 0.0
    %2461 = vmatmul.mubr.f32.gmra.mxu0 %v2388
    %v2462 = vpop.f32.mrf.mxu0
    %v2463 = vadd.f32 %v2296, %v2462
    %v2464 = vpop.f32.mrf.mxu0
    %2465 = vmatprep.mubr.f32.mxu0 0.0
    %2466 = vmatmul.mubr.f32.gmra.mxu0 %v2391
    %v2467 = vpop.f32.mrf.mxu0
    %v2468 = vadd.f32 %v2296, %v2467
    %v2469 = vpop.f32.mrf.mxu0
    %2470 = vmatprep.mubr.f32.mxu0 0.0
    %2471 = vmatmul.mubr.f32.gmra.mxu0 %v2394
    %v2472 = vpop.f32.mrf.mxu0
    %v2473 = vadd.f32 %v2296, %v2472
    %v2474 = vpop.f32.mrf.mxu0
    %2475 = vdwg.mxu0
    %v2477 = vlaneseq
    %v2478 = vshrl.u32 %v2477, 7
    %v2479 = vsub.s32 0, %v2478
    %v2480 = vrot.slane %v2153, %v2479
    %2482 = vmatprep.subr.mxu0 0.0
    %2483 = vmatpush1.msra.mxu0 0.0
    %2484 = vmatprep.subr.mxu0 0.0
    %2485 = vmatpush1.msra.mxu0 0.0
    %2486 = vmatprep.subr.mxu0 0.0
    %2487 = vmatpush1.msra.mxu0 0.0
    %2488 = vmatprep.subr.mxu0 0.0
    %2489 = vmatpush1.msra.mxu0 0.0
    %2490 = vmatprep.subr.mxu0 0.0
    %2491 = vmatpush1.msra.mxu0 0.0
    %2492 = vmatprep.subr.mxu0 0.0
    %2493 = vmatpush1.msra.mxu0 0.0
    %2494 = vmatprep.subr.mxu0 0.0
    %2495 = vmatpush1.msra.mxu0 0.0
    %2496 = vmatprep.subr.mxu0 0.0
    %2497 = vmatpush1.msra.mxu0 0.0
    %2498 = vmatprep.subr.mxu0 0.0
    %2499 = vmatpush1.msra.mxu0 0.0
    %2500 = vmatprep.subr.mxu0 0.0
    %2501 = vmatpush1.msra.mxu0 0.0
    %2502 = vmatprep.subr.mxu0 0.0
    %2503 = vmatpush1.msra.mxu0 0.0
    %2504 = vmatprep.subr.mxu0 0.0
    %2505 = vmatpush1.msra.mxu0 0.0
    %2506 = vmatprep.subr.mxu0 0.0
    %2507 = vmatpush1.msra.mxu0 %v2151
    %2508 = vmatprep.subr.mxu0 0.0
    %2509 = vmatpush1.msra.mxu0 %v2150
    %2510 = vmatprep.subr.mxu0 0.0
    %2511 = vmatpush1.msra.mxu0 %v2149
    %2512 = vmatprep.subr.mxu0 0.0
    %2513 = vmatpush1.msra.mxu0 %v2148
    %2514 = vmatprep.subr.mxu0 0.0
    %2515 = vmatpush2.msra.mxu0 0.0
    %2516 = vmatprep.subr.mxu0 0.0
    %2517 = vmatpush2.msra.mxu0 0.0
    %2518 = vmatprep.subr.mxu0 0.0
    %2519 = vmatpush2.msra.mxu0 0.0
    %2520 = vmatprep.subr.mxu0 0.0
    %2521 = vmatpush2.msra.mxu0 0.0
    %2522 = vmatprep.subr.mxu0 0.0
    %2523 = vmatpush2.msra.mxu0 0.0
    %2524 = vmatprep.subr.mxu0 0.0
    %2525 = vmatpush2.msra.mxu0 0.0
    %2526 = vmatprep.subr.mxu0 0.0
    %2527 = vmatpush2.msra.mxu0 0.0
    %2528 = vmatprep.subr.mxu0 0.0
    %2529 = vmatpush2.msra.mxu0 0.0
    %2530 = vmatprep.subr.mxu0 0.0
    %2531 = vmatpush2.msra.mxu0 0.0
    %2532 = vmatprep.subr.mxu0 0.0
    %2533 = vmatpush2.msra.mxu0 0.0
    %2534 = vmatprep.subr.mxu0 0.0
    %2535 = vmatpush2.msra.mxu0 0.0
    %2536 = vmatprep.subr.mxu0 0.0
    %2537 = vmatpush2.msra.mxu0 0.0
    %2538 = vmatprep.subr.mxu0 0.0
    %2539 = vmatpush2.msra.mxu0 0.0
    %2540 = vmatprep.subr.mxu0 0.0
    %2541 = vmatpush2.msra.mxu0 0.0
    %2542 = vmatprep.subr.mxu0 0.0
    %2543 = vmatpush2.msra.mxu0 0.0
    %2544 = vmatprep.subr.mxu0 0.0
    %2545 = vmatpush2.msra.mxu0 0.0
    %2546 = vmatprep.mubr.f32.mxu0 0.0
    %2547 = vmatmul.mubr.f32.gmra.mxu0 %v2299
    %v2548 = vpop.f32.mrf.mxu0
    %v2549 = vadd.f32 %v2480, %v2548
    %v2550 = vpop.f32.mrf.mxu0
    %2551 = vmatprep.mubr.f32.mxu0 0.0
    %2552 = vmatmul.mubr.f32.gmra.mxu0 %v2302
    %v2553 = vpop.f32.mrf.mxu0
    %v2554 = vadd.f32 %v2480, %v2553
    %v2555 = vpop.f32.mrf.mxu0
    %2556 = vmatprep.mubr.f32.mxu0 0.0
    %2557 = vmatmul.mubr.f32.gmra.mxu0 %v2305
    %v2558 = vpop.f32.mrf.mxu0
    %v2559 = vadd.f32 %v2480, %v2558
    %v2560 = vpop.f32.mrf.mxu0
    %2561 = vdwg.mxu0
    %2562 = vmatprep.subr.mxu0 0.0
    %2563 = vmatpush1.msra.mxu0 0.0
    %2564 = vmatprep.subr.mxu0 0.0
    %2565 = vmatpush1.msra.mxu0 0.0
    %2566 = vmatprep.subr.mxu0 0.0
    %2567 = vmatpush1.msra.mxu0 0.0
    %2568 = vmatprep.subr.mxu0 0.0
    %2569 = vmatpush1.msra.mxu0 0.0
    %2570 = vmatprep.subr.mxu0 0.0
    %2571 = vmatpush1.msra.mxu0 0.0
    %2572 = vmatprep.subr.mxu0 0.0
    %2573 = vmatpush1.msra.mxu0 0.0
    %2574 = vmatprep.subr.mxu0 0.0
    %2575 = vmatpush1.msra.mxu0 0.0
    %2576 = vmatprep.subr.mxu0 0.0
    %2577 = vmatpush1.msra.mxu0 0.0
    %2578 = vmatprep.subr.mxu0 0.0
    %2579 = vmatpush1.msra.mxu0 0.0
    %2580 = vmatprep.subr.mxu0 0.0
    %2581 = vmatpush1.msra.mxu0 0.0
    %2582 = vmatprep.subr.mxu0 0.0
    %2583 = vmatpush1.msra.mxu0 0.0
    %2584 = vmatprep.subr.mxu0 0.0
    %2585 = vmatpush1.msra.mxu0 0.0
    %2586 = vmatprep.subr.mxu0 0.0
    %2587 = vmatpush1.msra.mxu0 %v2151
    %2588 = vmatprep.subr.mxu0 0.0
    %2589 = vmatpush1.msra.mxu0 %v2150
    %2590 = vmatprep.subr.mxu0 0.0
    %2591 = vmatpush1.msra.mxu0 %v2149
    %2592 = vmatprep.subr.mxu0 0.0
    %2593 = vmatpush1.msra.mxu0 %v2148
    %2594 = vmatprep.subr.mxu0 0.0
    %2595 = vmatpush2.msra.mxu0 0.0
    %2596 = vmatprep.subr.mxu0 0.0
    %2597 = vmatpush2.msra.mxu0 0.0
    %2598 = vmatprep.subr.mxu0 0.0
    %2599 = vmatpush2.msra.mxu0 0.0
    %2600 = vmatprep.subr.mxu0 0.0
    %2601 = vmatpush2.msra.mxu0 0.0
    %2602 = vmatprep.subr.mxu0 0.0
    %2603 = vmatpush2.msra.mxu0 0.0
    %2604 = vmatprep.subr.mxu0 0.0
    %2605 = vmatpush2.msra.mxu0 0.0
    %2606 = vmatprep.subr.mxu0 0.0
    %2607 = vmatpush2.msra.mxu0 0.0
    %2608 = vmatprep.subr.mxu0 0.0
    %2609 = vmatpush2.msra.mxu0 0.0
    %2610 = vmatprep.subr.mxu0 0.0
    %2611 = vmatpush2.msra.mxu0 0.0
    %2612 = vmatprep.subr.mxu0 0.0
    %2613 = vmatpush2.msra.mxu0 0.0
    %2614 = vmatprep.subr.mxu0 0.0
    %2615 = vmatpush2.msra.mxu0 0.0
    %2616 = vmatprep.subr.mxu0 0.0
    %2617 = vmatpush2.msra.mxu0 0.0
    %2618 = vmatprep.subr.mxu0 0.0
    %2619 = vmatpush2.msra.mxu0 0.0
    %2620 = vmatprep.subr.mxu0 0.0
    %2621 = vmatpush2.msra.mxu0 0.0
    %2622 = vmatprep.subr.mxu0 0.0
    %2623 = vmatpush2.msra.mxu0 0.0
    %2624 = vmatprep.subr.mxu0 0.0
    %2625 = vmatpush2.msra.mxu0 0.0
    %2626 = vmatprep.mubr.f32.mxu0 0.0
    %2627 = vmatmul.mubr.f32.gmra.mxu0 %v2388
    %v2628 = vpop.f32.mrf.mxu0
    %v2629 = vadd.f32 %v2480, %v2628
    %v2630 = vpop.f32.mrf.mxu0
    %2631 = vmatprep.mubr.f32.mxu0 0.0
    %2632 = vmatmul.mubr.f32.gmra.mxu0 %v2391
    %v2633 = vpop.f32.mrf.mxu0
    %v2634 = vadd.f32 %v2480, %v2633
    %v2635 = vpop.f32.mrf.mxu0
    %2636 = vmatprep.mubr.f32.mxu0 0.0
    %2637 = vmatmul.mubr.f32.gmra.mxu0 %v2394
    %v2638 = vpop.f32.mrf.mxu0
    %v2639 = vadd.f32 %v2480, %v2638
    %v2640 = vpop.f32.mrf.mxu0
    %2641 = vdwg.mxu0
    %v2643 = vlaneseq
    %v2644 = vshrl.u32 %v2643, 7
    %v2645 = vsub.s32 0, %v2644
    %v2646 = vrot.slane %v2160, %v2645
    %2648 = vmatprep.subr.mxu0 0.0
    %2649 = vmatpush1.msra.mxu0 0.0
    %2650 = vmatprep.subr.mxu0 0.0
    %2651 = vmatpush1.msra.mxu0 0.0
    %2652 = vmatprep.subr.mxu0 0.0
    %2653 = vmatpush1.msra.mxu0 0.0
    %2654 = vmatprep.subr.mxu0 0.0
    %2655 = vmatpush1.msra.mxu0 0.0
    %2656 = vmatprep.subr.mxu0 0.0
    %2657 = vmatpush1.msra.mxu0 0.0
    %2658 = vmatprep.subr.mxu0 0.0
    %2659 = vmatpush1.msra.mxu0 0.0
    %2660 = vmatprep.subr.mxu0 0.0
    %2661 = vmatpush1.msra.mxu0 0.0
    %2662 = vmatprep.subr.mxu0 0.0
    %2663 = vmatpush1.msra.mxu0 0.0
    %2664 = vmatprep.subr.mxu0 0.0
    %2665 = vmatpush1.msra.mxu0 0.0
    %2666 = vmatprep.subr.mxu0 0.0
    %2667 = vmatpush1.msra.mxu0 0.0
    %2668 = vmatprep.subr.mxu0 0.0
    %2669 = vmatpush1.msra.mxu0 0.0
    %2670 = vmatprep.subr.mxu0 0.0
    %2671 = vmatpush1.msra.mxu0 0.0
    %2672 = vmatprep.subr.mxu0 0.0
    %2673 = vmatpush1.msra.mxu0 %v2158
    %2674 = vmatprep.subr.mxu0 0.0
    %2675 = vmatpush1.msra.mxu0 %v2157
    %2676 = vmatprep.subr.mxu0 0.0
    %2677 = vmatpush1.msra.mxu0 %v2156
    %2678 = vmatprep.subr.mxu0 0.0
    %2679 = vmatpush1.msra.mxu0 %v2155
    %2680 = vmatprep.subr.mxu0 0.0
    %2681 = vmatpush2.msra.mxu0 0.0
    %2682 = vmatprep.subr.mxu0 0.0
    %2683 = vmatpush2.msra.mxu0 0.0
    %2684 = vmatprep.subr.mxu0 0.0
    %2685 = vmatpush2.msra.mxu0 0.0
    %2686 = vmatprep.subr.mxu0 0.0
    %2687 = vmatpush2.msra.mxu0 0.0
    %2688 = vmatprep.subr.mxu0 0.0
    %2689 = vmatpush2.msra.mxu0 0.0
    %2690 = vmatprep.subr.mxu0 0.0
    %2691 = vmatpush2.msra.mxu0 0.0
    %2692 = vmatprep.subr.mxu0 0.0
    %2693 = vmatpush2.msra.mxu0 0.0
    %2694 = vmatprep.subr.mxu0 0.0
    %2695 = vmatpush2.msra.mxu0 0.0
    %2696 = vmatprep.subr.mxu0 0.0
    %2697 = vmatpush2.msra.mxu0 0.0
    %2698 = vmatprep.subr.mxu0 0.0
    %2699 = vmatpush2.msra.mxu0 0.0
    %2700 = vmatprep.subr.mxu0 0.0
    %2701 = vmatpush2.msra.mxu0 0.0
    %2702 = vmatprep.subr.mxu0 0.0
    %2703 = vmatpush2.msra.mxu0 0.0
    %2704 = vmatprep.subr.mxu0 0.0
    %2705 = vmatpush2.msra.mxu0 0.0
    %2706 = vmatprep.subr.mxu0 0.0
    %2707 = vmatpush2.msra.mxu0 0.0
    %2708 = vmatprep.subr.mxu0 0.0
    %2709 = vmatpush2.msra.mxu0 0.0
    %2710 = vmatprep.subr.mxu0 0.0
    %2711 = vmatpush2.msra.mxu0 0.0
    %2712 = vmatprep.mubr.f32.mxu0 0.0
    %2713 = vmatmul.mubr.f32.gmra.mxu0 %v2299
    %v2714 = vpop.f32.mrf.mxu0
    %v2715 = vadd.f32 %v2646, %v2714
    %v2716 = vpop.f32.mrf.mxu0
    %2717 = vmatprep.mubr.f32.mxu0 0.0
    %2718 = vmatmul.mubr.f32.gmra.mxu0 %v2302
    %v2719 = vpop.f32.mrf.mxu0
    %v2720 = vadd.f32 %v2646, %v2719
    %v2721 = vpop.f32.mrf.mxu0
    %2722 = vmatprep.mubr.f32.mxu0 0.0
    %2723 = vmatmul.mubr.f32.gmra.mxu0 %v2305
    %v2724 = vpop.f32.mrf.mxu0
    %v2725 = vadd.f32 %v2646, %v2724
    %v2726 = vpop.f32.mrf.mxu0
    %2727 = vdwg.mxu0
    %2728 = vmatprep.subr.mxu0 0.0
    %2729 = vmatpush1.msra.mxu0 0.0
    %2730 = vmatprep.subr.mxu0 0.0
    %2731 = vmatpush1.msra.mxu0 0.0
    %2732 = vmatprep.subr.mxu0 0.0
    %2733 = vmatpush1.msra.mxu0 0.0
    %2734 = vmatprep.subr.mxu0 0.0
    %2735 = vmatpush1.msra.mxu0 0.0
    %2736 = vmatprep.subr.mxu0 0.0
    %2737 = vmatpush1.msra.mxu0 0.0
    %2738 = vmatprep.subr.mxu0 0.0
    %2739 = vmatpush1.msra.mxu0 0.0
    %2740 = vmatprep.subr.mxu0 0.0
    %2741 = vmatpush1.msra.mxu0 0.0
    %2742 = vmatprep.subr.mxu0 0.0
    %2743 = vmatpush1.msra.mxu0 0.0
    %2744 = vmatprep.subr.mxu0 0.0
    %2745 = vmatpush1.msra.mxu0 0.0
    %2746 = vmatprep.subr.mxu0 0.0
    %2747 = vmatpush1.msra.mxu0 0.0
    %2748 = vmatprep.subr.mxu0 0.0
    %2749 = vmatpush1.msra.mxu0 0.0
    %2750 = vmatprep.subr.mxu0 0.0
    %2751 = vmatpush1.msra.mxu0 0.0
    %2752 = vmatprep.subr.mxu0 0.0
    %2753 = vmatpush1.msra.mxu0 %v2158
    %2754 = vmatprep.subr.mxu0 0.0
    %2755 = vmatpush1.msra.mxu0 %v2157
    %2756 = vmatprep.subr.mxu0 0.0
    %2757 = vmatpush1.msra.mxu0 %v2156
    %2758 = vmatprep.subr.mxu0 0.0
    %2759 = vmatpush1.msra.mxu0 %v2155
    %2760 = vmatprep.subr.mxu0 0.0
    %2761 = vmatpush2.msra.mxu0 0.0
    %2762 = vmatprep.subr.mxu0 0.0
    %2763 = vmatpush2.msra.mxu0 0.0
    %2764 = vmatprep.subr.mxu0 0.0
    %2765 = vmatpush2.msra.mxu0 0.0
    %2766 = vmatprep.subr.mxu0 0.0
    %2767 = vmatpush2.msra.mxu0 0.0
    %2768 = vmatprep.subr.mxu0 0.0
    %2769 = vmatpush2.msra.mxu0 0.0
    %2770 = vmatprep.subr.mxu0 0.0
    %2771 = vmatpush2.msra.mxu0 0.0
    %2772 = vmatprep.subr.mxu0 0.0
    %2773 = vmatpush2.msra.mxu0 0.0
    %2774 = vmatprep.subr.mxu0 0.0
    %2775 = vmatpush2.msra.mxu0 0.0
    %2776 = vmatprep.subr.mxu0 0.0
    %2777 = vmatpush2.msra.mxu0 0.0
    %2778 = vmatprep.subr.mxu0 0.0
    %2779 = vmatpush2.msra.mxu0 0.0
    %2780 = vmatprep.subr.mxu0 0.0
    %2781 = vmatpush2.msra.mxu0 0.0
    %2782 = vmatprep.subr.mxu0 0.0
    %2783 = vmatpush2.msra.mxu0 0.0
    %2784 = vmatprep.subr.mxu0 0.0
    %2785 = vmatpush2.msra.mxu0 0.0
    %2786 = vmatprep.subr.mxu0 0.0
    %2787 = vmatpush2.msra.mxu0 0.0
    %2788 = vmatprep.subr.mxu0 0.0
    %2789 = vmatpush2.msra.mxu0 0.0
    %2790 = vmatprep.subr.mxu0 0.0
    %2791 = vmatpush2.msra.mxu0 0.0
    %2792 = vmatprep.mubr.f32.mxu0 0.0
    %2793 = vmatmul.mubr.f32.gmra.mxu0 %v2388
    %v2794 = vpop.f32.mrf.mxu0
    %v2795 = vadd.f32 %v2646, %v2794
    %v2796 = vpop.f32.mrf.mxu0
    %2797 = vmatprep.mubr.f32.mxu0 0.0
    %2798 = vmatmul.mubr.f32.gmra.mxu0 %v2391
    %v2799 = vpop.f32.mrf.mxu0
    %v2800 = vadd.f32 %v2646, %v2799
    %v2801 = vpop.f32.mrf.mxu0
    %2802 = vmatprep.mubr.f32.mxu0 0.0
    %2803 = vmatmul.mubr.f32.gmra.mxu0 %v2394
    %v2804 = vpop.f32.mrf.mxu0
    %v2805 = vadd.f32 %v2646, %v2804
    %v2806 = vpop.f32.mrf.mxu0
    %2807 = vdwg.mxu0
    %v2808 = vmul.f32 %v2374, %v2549
    %v2809 = vmul.f32 %v2379, %v2554
    %v2810 = vmul.f32 %v2384, %v2559
    %v2812 = vsel %vm342, %v2808, 0
    %v2815 = vsel %vm342, %v2809, 0
    %v2818 = vsel %vm342, %v2810, 0
    %2820 = vmatprep.subr.mxu0 0.0
    %2821 = vmatpush1.msra.mxu0 0.0
    %2822 = vmatprep.subr.mxu0 0.0
    %2823 = vmatpush1.msra.mxu0 0.0
    %2824 = vmatprep.subr.mxu0 0.0
    %2825 = vmatpush1.msra.mxu0 0.0
    %2826 = vmatprep.subr.mxu0 0.0
    %2827 = vmatpush1.msra.mxu0 0.0
    %2828 = vmatprep.subr.mxu0 0.0
    %2829 = vmatpush1.msra.mxu0 0.0
    %2830 = vmatprep.subr.mxu0 0.0
    %2831 = vmatpush1.msra.mxu0 0.0
    %2832 = vmatprep.subr.mxu0 0.0
    %2833 = vmatpush1.msra.mxu0 0.0
    %2834 = vmatprep.subr.mxu0 0.0
    %2835 = vmatpush1.msra.mxu0 0.0
    %2836 = vmatprep.subr.mxu0 0.0
    %2837 = vmatpush1.msra.mxu0 0.0
    %2838 = vmatprep.subr.mxu0 0.0
    %2839 = vmatpush1.msra.mxu0 0.0
    %2840 = vmatprep.subr.mxu0 0.0
    %2841 = vmatpush1.msra.mxu0 0.0
    %2842 = vmatprep.subr.mxu0 0.0
    %2843 = vmatpush1.msra.mxu0 0.0
    %2844 = vmatprep.subr.mxu0 0.0
    %2845 = vmatpush1.msra.mxu0 %v90
    %2846 = vmatprep.subr.mxu0 0.0
    %2847 = vmatpush1.msra.mxu0 %v89
    %2848 = vmatprep.subr.mxu0 0.0
    %2849 = vmatpush1.msra.mxu0 %v88
    %2850 = vmatprep.subr.mxu0 0.0
    %2851 = vmatpush1.msra.mxu0 %v87
    %2852 = vmatprep.subr.mxu0 0.0
    %2853 = vmatpush2.msra.mxu0 0.0
    %2854 = vmatprep.subr.mxu0 0.0
    %2855 = vmatpush2.msra.mxu0 0.0
    %2856 = vmatprep.subr.mxu0 0.0
    %2857 = vmatpush2.msra.mxu0 0.0
    %2858 = vmatprep.subr.mxu0 0.0
    %2859 = vmatpush2.msra.mxu0 0.0
    %2860 = vmatprep.subr.mxu0 0.0
    %2861 = vmatpush2.msra.mxu0 0.0
    %2862 = vmatprep.subr.mxu0 0.0
    %2863 = vmatpush2.msra.mxu0 0.0
    %2864 = vmatprep.subr.mxu0 0.0
    %2865 = vmatpush2.msra.mxu0 0.0
    %2866 = vmatprep.subr.mxu0 0.0
    %2867 = vmatpush2.msra.mxu0 0.0
    %2868 = vmatprep.subr.mxu0 0.0
    %2869 = vmatpush2.msra.mxu0 0.0
    %2870 = vmatprep.subr.mxu0 0.0
    %2871 = vmatpush2.msra.mxu0 0.0
    %2872 = vmatprep.subr.mxu0 0.0
    %2873 = vmatpush2.msra.mxu0 0.0
    %2874 = vmatprep.subr.mxu0 0.0
    %2875 = vmatpush2.msra.mxu0 0.0
    %2876 = vmatprep.subr.mxu0 0.0
    %2877 = vmatpush2.msra.mxu0 0.0
    %2878 = vmatprep.subr.mxu0 0.0
    %2879 = vmatpush2.msra.mxu0 0.0
    %2880 = vmatprep.subr.mxu0 0.0
    %2881 = vmatpush2.msra.mxu0 0.0
    %2882 = vmatprep.subr.mxu0 0.0
    %2883 = vmatpush2.msra.mxu0 0.0
    %2884 = vmatprep.mubr.f32.mxu0 0.0
    %2885 = vmatmul.mubr.f32.gmra.mxu0 %v2812
    %v2886 = vpop.f32.mrf.mxu0
    %v2887 = vadd.f32 0.0, %v2886
    %v2888 = vpop.f32.mrf.mxu0
    %2889 = vmatprep.mubr.f32.mxu0 0.0
    %2890 = vmatmul.mubr.f32.gmra.mxu0 %v2815
    %v2891 = vpop.f32.mrf.mxu0
    %v2892 = vadd.f32 0.0, %v2891
    %v2893 = vpop.f32.mrf.mxu0
    %2894 = vmatprep.mubr.f32.mxu0 0.0
    %2895 = vmatmul.mubr.f32.gmra.mxu0 %v2818
    %v2896 = vpop.f32.mrf.mxu0
    %v2897 = vadd.f32 0.0, %v2896
    %v2898 = vpop.f32.mrf.mxu0
    %2899 = vdwg.mxu0
    %v2900 = vmul.f32 %v2887, 0.35355338
    %v2901 = vmul.f32 %v2892, 0.35355338
    %v2902 = vmul.f32 %v2897, 0.35355338
    %v2903 = vmul.f32 %v2374, %v2629
    %v2904 = vmul.f32 %v2379, %v2634
    %v2905 = vmul.f32 %v2384, %v2639
    %v2907 = vsel %vm342, %v2903, 0
    %v2910 = vsel %vm342, %v2904, 0
    %v2913 = vsel %vm342, %v2905, 0
    %2915 = vmatprep.subr.mxu0 0.0
    %2916 = vmatpush1.msra.mxu0 0.0
    %2917 = vmatprep.subr.mxu0 0.0
    %2918 = vmatpush1.msra.mxu0 0.0
    %2919 = vmatprep.subr.mxu0 0.0
    %2920 = vmatpush1.msra.mxu0 0.0
    %2921 = vmatprep.subr.mxu0 0.0
    %2922 = vmatpush1.msra.mxu0 0.0
    %2923 = vmatprep.subr.mxu0 0.0
    %2924 = vmatpush1.msra.mxu0 0.0
    %2925 = vmatprep.subr.mxu0 0.0
    %2926 = vmatpush1.msra.mxu0 0.0
    %2927 = vmatprep.subr.mxu0 0.0
    %2928 = vmatpush1.msra.mxu0 0.0
    %2929 = vmatprep.subr.mxu0 0.0
    %2930 = vmatpush1.msra.mxu0 0.0
    %2931 = vmatprep.subr.mxu0 0.0
    %2932 = vmatpush1.msra.mxu0 0.0
    %2933 = vmatprep.subr.mxu0 0.0
    %2934 = vmatpush1.msra.mxu0 0.0
    %2935 = vmatprep.subr.mxu0 0.0
    %2936 = vmatpush1.msra.mxu0 0.0
    %2937 = vmatprep.subr.mxu0 0.0
    %2938 = vmatpush1.msra.mxu0 0.0
    %2939 = vmatprep.subr.mxu0 0.0
    %2940 = vmatpush1.msra.mxu0 %v90
    %2941 = vmatprep.subr.mxu0 0.0
    %2942 = vmatpush1.msra.mxu0 %v89
    %2943 = vmatprep.subr.mxu0 0.0
    %2944 = vmatpush1.msra.mxu0 %v88
    %2945 = vmatprep.subr.mxu0 0.0
    %2946 = vmatpush1.msra.mxu0 %v87
    %2947 = vmatprep.subr.mxu0 0.0
    %2948 = vmatpush2.msra.mxu0 0.0
    %2949 = vmatprep.subr.mxu0 0.0
    %2950 = vmatpush2.msra.mxu0 0.0
    %2951 = vmatprep.subr.mxu0 0.0
    %2952 = vmatpush2.msra.mxu0 0.0
    %2953 = vmatprep.subr.mxu0 0.0
    %2954 = vmatpush2.msra.mxu0 0.0
    %2955 = vmatprep.subr.mxu0 0.0
    %2956 = vmatpush2.msra.mxu0 0.0
    %2957 = vmatprep.subr.mxu0 0.0
    %2958 = vmatpush2.msra.mxu0 0.0
    %2959 = vmatprep.subr.mxu0 0.0
    %2960 = vmatpush2.msra.mxu0 0.0
    %2961 = vmatprep.subr.mxu0 0.0
    %2962 = vmatpush2.msra.mxu0 0.0
    %2963 = vmatprep.subr.mxu0 0.0
    %2964 = vmatpush2.msra.mxu0 0.0
    %2965 = vmatprep.subr.mxu0 0.0
    %2966 = vmatpush2.msra.mxu0 0.0
    %2967 = vmatprep.subr.mxu0 0.0
    %2968 = vmatpush2.msra.mxu0 0.0
    %2969 = vmatprep.subr.mxu0 0.0
    %2970 = vmatpush2.msra.mxu0 0.0
    %2971 = vmatprep.subr.mxu0 0.0
    %2972 = vmatpush2.msra.mxu0 0.0
    %2973 = vmatprep.subr.mxu0 0.0
    %2974 = vmatpush2.msra.mxu0 0.0
    %2975 = vmatprep.subr.mxu0 0.0
    %2976 = vmatpush2.msra.mxu0 0.0
    %2977 = vmatprep.subr.mxu0 0.0
    %2978 = vmatpush2.msra.mxu0 0.0
    %2979 = vmatprep.mubr.f32.mxu0 0.0
    %2980 = vmatmul.mubr.f32.gmra.mxu0 %v2907
    %v2981 = vpop.f32.mrf.mxu0
    %v2982 = vadd.f32 0.0, %v2981
    %v2983 = vpop.f32.mrf.mxu0
    %2984 = vmatprep.mubr.f32.mxu0 0.0
    %2985 = vmatmul.mubr.f32.gmra.mxu0 %v2910
    %v2986 = vpop.f32.mrf.mxu0
    %v2987 = vadd.f32 0.0, %v2986
    %v2988 = vpop.f32.mrf.mxu0
    %2989 = vmatprep.mubr.f32.mxu0 0.0
    %2990 = vmatmul.mubr.f32.gmra.mxu0 %v2913
    %v2991 = vpop.f32.mrf.mxu0
    %v2992 = vadd.f32 0.0, %v2991
    %v2993 = vpop.f32.mrf.mxu0
    %2994 = vdwg.mxu0
    %v2995 = vmul.f32 %v2982, 0.35355338
    %v2996 = vmul.f32 %v2987, 0.35355338
    %v2997 = vmul.f32 %v2992, 0.35355338
    %v2998 = vmul.f32 %v2463, %v2549
    %v2999 = vmul.f32 %v2468, %v2554
    %v3000 = vmul.f32 %v2473, %v2559
    %v3002 = vsel %vm342, %v2998, 0
    %v3005 = vsel %vm342, %v2999, 0
    %v3008 = vsel %vm342, %v3000, 0
    %3010 = vmatprep.subr.mxu0 0.0
    %3011 = vmatpush1.msra.mxu0 0.0
    %3012 = vmatprep.subr.mxu0 0.0
    %3013 = vmatpush1.msra.mxu0 0.0
    %3014 = vmatprep.subr.mxu0 0.0
    %3015 = vmatpush1.msra.mxu0 0.0
    %3016 = vmatprep.subr.mxu0 0.0
    %3017 = vmatpush1.msra.mxu0 0.0
    %3018 = vmatprep.subr.mxu0 0.0
    %3019 = vmatpush1.msra.mxu0 0.0
    %3020 = vmatprep.subr.mxu0 0.0
    %3021 = vmatpush1.msra.mxu0 0.0
    %3022 = vmatprep.subr.mxu0 0.0
    %3023 = vmatpush1.msra.mxu0 0.0
    %3024 = vmatprep.subr.mxu0 0.0
    %3025 = vmatpush1.msra.mxu0 0.0
    %3026 = vmatprep.subr.mxu0 0.0
    %3027 = vmatpush1.msra.mxu0 0.0
    %3028 = vmatprep.subr.mxu0 0.0
    %3029 = vmatpush1.msra.mxu0 0.0
    %3030 = vmatprep.subr.mxu0 0.0
    %3031 = vmatpush1.msra.mxu0 0.0
    %3032 = vmatprep.subr.mxu0 0.0
    %3033 = vmatpush1.msra.mxu0 0.0
    %3034 = vmatprep.subr.mxu0 0.0
    %3035 = vmatpush1.msra.mxu0 %v90
    %3036 = vmatprep.subr.mxu0 0.0
    %3037 = vmatpush1.msra.mxu0 %v89
    %3038 = vmatprep.subr.mxu0 0.0
    %3039 = vmatpush1.msra.mxu0 %v88
    %3040 = vmatprep.subr.mxu0 0.0
    %3041 = vmatpush1.msra.mxu0 %v87
    %3042 = vmatprep.subr.mxu0 0.0
    %3043 = vmatpush2.msra.mxu0 0.0
    %3044 = vmatprep.subr.mxu0 0.0
    %3045 = vmatpush2.msra.mxu0 0.0
    %3046 = vmatprep.subr.mxu0 0.0
    %3047 = vmatpush2.msra.mxu0 0.0
    %3048 = vmatprep.subr.mxu0 0.0
    %3049 = vmatpush2.msra.mxu0 0.0
    %3050 = vmatprep.subr.mxu0 0.0
    %3051 = vmatpush2.msra.mxu0 0.0
    %3052 = vmatprep.subr.mxu0 0.0
    %3053 = vmatpush2.msra.mxu0 0.0
    %3054 = vmatprep.subr.mxu0 0.0
    %3055 = vmatpush2.msra.mxu0 0.0
    %3056 = vmatprep.subr.mxu0 0.0
    %3057 = vmatpush2.msra.mxu0 0.0
    %3058 = vmatprep.subr.mxu0 0.0
    %3059 = vmatpush2.msra.mxu0 0.0
    %3060 = vmatprep.subr.mxu0 0.0
    %3061 = vmatpush2.msra.mxu0 0.0
    %3062 = vmatprep.subr.mxu0 0.0
    %3063 = vmatpush2.msra.mxu0 0.0
    %3064 = vmatprep.subr.mxu0 0.0
    %3065 = vmatpush2.msra.mxu0 0.0
    %3066 = vmatprep.subr.mxu0 0.0
    %3067 = vmatpush2.msra.mxu0 0.0
    %3068 = vmatprep.subr.mxu0 0.0
    %3069 = vmatpush2.msra.mxu0 0.0
    %3070 = vmatprep.subr.mxu0 0.0
    %3071 = vmatpush2.msra.mxu0 0.0
    %3072 = vmatprep.subr.mxu0 0.0
    %3073 = vmatpush2.msra.mxu0 0.0
    %3074 = vmatprep.mubr.f32.mxu0 0.0
    %3075 = vmatmul.mubr.f32.gmra.mxu0 %v3002
    %v3076 = vpop.f32.mrf.mxu0
    %v3077 = vadd.f32 0.0, %v3076
    %v3078 = vpop.f32.mrf.mxu0
    %3079 = vmatprep.mubr.f32.mxu0 0.0
    %3080 = vmatmul.mubr.f32.gmra.mxu0 %v3005
    %v3081 = vpop.f32.mrf.mxu0
    %v3082 = vadd.f32 0.0, %v3081
    %v3083 = vpop.f32.mrf.mxu0
    %3084 = vmatprep.mubr.f32.mxu0 0.0
    %3085 = vmatmul.mubr.f32.gmra.mxu0 %v3008
    %v3086 = vpop.f32.mrf.mxu0
    %v3087 = vadd.f32 0.0, %v3086
    %v3088 = vpop.f32.mrf.mxu0
    %3089 = vdwg.mxu0
    %v3090 = vmul.f32 %v3077, 0.35355338
    %v3091 = vmul.f32 %v3082, 0.35355338
    %v3092 = vmul.f32 %v3087, 0.35355338
    %v3093 = vmul.f32 %v2463, %v2629
    %v3094 = vmul.f32 %v2468, %v2634
    %v3095 = vmul.f32 %v2473, %v2639
    %v3097 = vsel %vm342, %v3093, 0
    %v3100 = vsel %vm342, %v3094, 0
    %v3103 = vsel %vm342, %v3095, 0
    %3105 = vmatprep.subr.mxu0 0.0
    %3106 = vmatpush1.msra.mxu0 0.0
    %3107 = vmatprep.subr.mxu0 0.0
    %3108 = vmatpush1.msra.mxu0 0.0
    %3109 = vmatprep.subr.mxu0 0.0
    %3110 = vmatpush1.msra.mxu0 0.0
    %3111 = vmatprep.subr.mxu0 0.0
    %3112 = vmatpush1.msra.mxu0 0.0
    %3113 = vmatprep.subr.mxu0 0.0
    %3114 = vmatpush1.msra.mxu0 0.0
    %3115 = vmatprep.subr.mxu0 0.0
    %3116 = vmatpush1.msra.mxu0 0.0
    %3117 = vmatprep.subr.mxu0 0.0
    %3118 = vmatpush1.msra.mxu0 0.0
    %3119 = vmatprep.subr.mxu0 0.0
    %3120 = vmatpush1.msra.mxu0 0.0
    %3121 = vmatprep.subr.mxu0 0.0
    %3122 = vmatpush1.msra.mxu0 0.0
    %3123 = vmatprep.subr.mxu0 0.0
    %3124 = vmatpush1.msra.mxu0 0.0
    %3125 = vmatprep.subr.mxu0 0.0
    %3126 = vmatpush1.msra.mxu0 0.0
    %3127 = vmatprep.subr.mxu0 0.0
    %3128 = vmatpush1.msra.mxu0 0.0
    %3129 = vmatprep.subr.mxu0 0.0
    %3130 = vmatpush1.msra.mxu0 %v90
    %3131 = vmatprep.subr.mxu0 0.0
    %3132 = vmatpush1.msra.mxu0 %v89
    %3133 = vmatprep.subr.mxu0 0.0
    %3134 = vmatpush1.msra.mxu0 %v88
    %3135 = vmatprep.subr.mxu0 0.0
    %3136 = vmatpush1.msra.mxu0 %v87
    %3137 = vmatprep.subr.mxu0 0.0
    %3138 = vmatpush2.msra.mxu0 0.0
    %3139 = vmatprep.subr.mxu0 0.0
    %3140 = vmatpush2.msra.mxu0 0.0
    %3141 = vmatprep.subr.mxu0 0.0
    %3142 = vmatpush2.msra.mxu0 0.0
    %3143 = vmatprep.subr.mxu0 0.0
    %3144 = vmatpush2.msra.mxu0 0.0
    %3145 = vmatprep.subr.mxu0 0.0
    %3146 = vmatpush2.msra.mxu0 0.0
    %3147 = vmatprep.subr.mxu0 0.0
    %3148 = vmatpush2.msra.mxu0 0.0
    %3149 = vmatprep.subr.mxu0 0.0
    %3150 = vmatpush2.msra.mxu0 0.0
    %3151 = vmatprep.subr.mxu0 0.0
    %3152 = vmatpush2.msra.mxu0 0.0
    %3153 = vmatprep.subr.mxu0 0.0
    %3154 = vmatpush2.msra.mxu0 0.0
    %3155 = vmatprep.subr.mxu0 0.0
    %3156 = vmatpush2.msra.mxu0 0.0
    %3157 = vmatprep.subr.mxu0 0.0
    %3158 = vmatpush2.msra.mxu0 0.0
    %3159 = vmatprep.subr.mxu0 0.0
    %3160 = vmatpush2.msra.mxu0 0.0
    %3161 = vmatprep.subr.mxu0 0.0
    %3162 = vmatpush2.msra.mxu0 0.0
    %3163 = vmatprep.subr.mxu0 0.0
    %3164 = vmatpush2.msra.mxu0 0.0
    %3165 = vmatprep.subr.mxu0 0.0
    %3166 = vmatpush2.msra.mxu0 0.0
    %3167 = vmatprep.subr.mxu0 0.0
    %3168 = vmatpush2.msra.mxu0 0.0
    %3169 = vmatprep.mubr.f32.mxu0 0.0
    %3170 = vmatmul.mubr.f32.gmra.mxu0 %v3097
    %v3171 = vpop.f32.mrf.mxu0
    %v3172 = vadd.f32 0.0, %v3171
    %v3173 = vpop.f32.mrf.mxu0
    %3174 = vmatprep.mubr.f32.mxu0 0.0
    %3175 = vmatmul.mubr.f32.gmra.mxu0 %v3100
    %v3176 = vpop.f32.mrf.mxu0
    %v3177 = vadd.f32 0.0, %v3176
    %v3178 = vpop.f32.mrf.mxu0
    %3179 = vmatprep.mubr.f32.mxu0 0.0
    %3180 = vmatmul.mubr.f32.gmra.mxu0 %v3103
    %v3181 = vpop.f32.mrf.mxu0
    %v3182 = vadd.f32 0.0, %v3181
    %v3183 = vpop.f32.mrf.mxu0
    %3184 = vdwg.mxu0
    %v3185 = vmul.f32 %v3172, 0.35355338
    %v3186 = vmul.f32 %v3177, 0.35355338
    %v3187 = vmul.f32 %v3182, 0.35355338
    %v3188 = vmax.f32 %v2900, %v2995
    %v3189 = vmax.f32 %v2901, %v2996
    %v3190 = vmax.f32 %v2902, %v2997
    %v3191 = vsub.f32 %v2900, %v3188
    %v3192 = vsub.f32 %v2901, %v3189
    %v3193 = vsub.f32 %v2902, %v3190
    %v3194 = vmul.f32 %v3191, 1.442695
    %v3195 = vpow.pop %v3194
    %v3196 = vmul.f32 %v3192, 1.442695
    %v3197 = vpow.pop %v3196
    %v3198 = vmul.f32 %v3193, 1.442695
    %v3199 = vpow.pop %v3198
    %v3200 = vsub.f32 %v2995, %v3188
    %v3201 = vsub.f32 %v2996, %v3189
    %v3202 = vsub.f32 %v2997, %v3190
    %v3203 = vmul.f32 %v3200, 1.442695
    %v3204 = vpow.pop %v3203
    %v3205 = vmul.f32 %v3201, 1.442695
    %v3206 = vpow.pop %v3205
    %v3207 = vmul.f32 %v3202, 1.442695
    %v3208 = vpow.pop %v3207
    %v3209 = vadd.f32 %v3195, %v3204
    %v3210 = vadd.f32 %v3197, %v3206
    %v3211 = vadd.f32 %v3199, %v3208
    %v3212 = vrcp.pop %v3209
    %v3213 = vrcp.pop %v3210
    %v3214 = vrcp.pop %v3211
    %v3215 = vmul.f32 %v3195, %v3212
    %v3216 = vmul.f32 %v3197, %v3213
    %v3217 = vmul.f32 %v3199, %v3214
    %v3218 = vmul.f32 %v3215, %v2715
    %v3219 = vmul.f32 %v3216, %v2720
    %v3220 = vmul.f32 %v3217, %v2725
    %v3221 = vmul.f32 %v3204, %v3212
    %v3222 = vmul.f32 %v3206, %v3213
    %v3223 = vmul.f32 %v3208, %v3214
    %v3224 = vmul.f32 %v3221, %v2795
    %v3225 = vmul.f32 %v3222, %v2800
    %v3226 = vmul.f32 %v3223, %v2805
    %v3227 = vadd.f32 %v3218, %v3224
    %v3228 = vadd.f32 %v3219, %v3225
    %v3229 = vadd.f32 %v3220, %v3226
    %v3230 = vmax.f32 %v3090, %v3185
    %v3231 = vmax.f32 %v3091, %v3186
    %v3232 = vmax.f32 %v3092, %v3187
    %v3233 = vsub.f32 %v3090, %v3230
    %v3234 = vsub.f32 %v3091, %v3231
    %v3235 = vsub.f32 %v3092, %v3232
    %v3236 = vmul.f32 %v3233, 1.442695
    %v3237 = vpow.pop %v3236
    %v3238 = vmul.f32 %v3234, 1.442695
    %v3239 = vpow.pop %v3238
    %v3240 = vmul.f32 %v3235, 1.442695
    %v3241 = vpow.pop %v3240
    %v3242 = vsub.f32 %v3185, %v3230
    %v3243 = vsub.f32 %v3186, %v3231
    %v3244 = vsub.f32 %v3187, %v3232
    %v3245 = vmul.f32 %v3242, 1.442695
    %v3246 = vpow.pop %v3245
    %v3247 = vmul.f32 %v3243, 1.442695
    %v3248 = vpow.pop %v3247
    %v3249 = vmul.f32 %v3244, 1.442695
    %v3250 = vpow.pop %v3249
    %v3251 = vadd.f32 %v3237, %v3246
    %v3252 = vadd.f32 %v3239, %v3248
    %v3253 = vadd.f32 %v3241, %v3250
    %v3254 = vrcp.pop %v3251
    %v3255 = vrcp.pop %v3252
    %v3256 = vrcp.pop %v3253
    %v3257 = vmul.f32 %v3237, %v3254
    %v3258 = vmul.f32 %v3239, %v3255
    %v3259 = vmul.f32 %v3241, %v3256
    %v3260 = vmul.f32 %v3257, %v2715
    %v3261 = vmul.f32 %v3258, %v2720
    %v3262 = vmul.f32 %v3259, %v2725
    %v3263 = vmul.f32 %v3246, %v3254
    %v3264 = vmul.f32 %v3248, %v3255
    %v3265 = vmul.f32 %v3250, %v3256
    %v3266 = vmul.f32 %v3263, %v2795
    %v3267 = vmul.f32 %v3264, %v2800
    %v3268 = vmul.f32 %v3265, %v2805
    %v3269 = vadd.f32 %v3260, %v3266
    %v3270 = vadd.f32 %v3261, %v3267
    %v3271 = vadd.f32 %v3262, %v3268
    %v3273 = vsel %vm342, %v3227, 0
    %v3276 = vsel %vm342, %v3228, 0
    %v3279 = vsel %vm342, %v3229, 0
    %3281 = vmatprep.subr.mxu0 0.0
    %3282 = vmatpush1.msra.mxu0 0.0
    %3283 = vmatprep.subr.mxu0 0.0
    %3284 = vmatpush1.msra.mxu0 0.0
    %3285 = vmatprep.subr.mxu0 0.0
    %3286 = vmatpush1.msra.mxu0 0.0
    %3287 = vmatprep.subr.mxu0 0.0
    %3288 = vmatpush1.msra.mxu0 0.0
    %3289 = vmatprep.subr.mxu0 0.0
    %3290 = vmatpush1.msra.mxu0 0.0
    %3291 = vmatprep.subr.mxu0 0.0
    %3292 = vmatpush1.msra.mxu0 0.0
    %3293 = vmatprep.subr.mxu0 0.0
    %3294 = vmatpush1.msra.mxu0 0.0
    %3295 = vmatprep.subr.mxu0 0.0
    %3296 = vmatpush1.msra.mxu0 0.0
    %3297 = vmatprep.subr.mxu0 0.0
    %3298 = vmatpush1.msra.mxu0 0.0
    %3299 = vmatprep.subr.mxu0 0.0
    %3300 = vmatpush1.msra.mxu0 0.0
    %3301 = vmatprep.subr.mxu0 0.0
    %3302 = vmatpush1.msra.mxu0 0.0
    %3303 = vmatprep.subr.mxu0 0.0
    %3304 = vmatpush1.msra.mxu0 0.0
    %3305 = vmatprep.subr.mxu0 0.0
    %3306 = vmatpush1.msra.mxu0 %v2165
    %3307 = vmatprep.subr.mxu0 0.0
    %3308 = vmatpush1.msra.mxu0 %v2164
    %3309 = vmatprep.subr.mxu0 0.0
    %3310 = vmatpush1.msra.mxu0 %v2163
    %3311 = vmatprep.subr.mxu0 0.0
    %3312 = vmatpush1.msra.mxu0 %v2162
    %3313 = vmatprep.subr.mxu0 0.0
    %3314 = vmatpush2.msra.mxu0 0.0
    %3315 = vmatprep.subr.mxu0 0.0
    %3316 = vmatpush2.msra.mxu0 0.0
    %3317 = vmatprep.subr.mxu0 0.0
    %3318 = vmatpush2.msra.mxu0 0.0
    %3319 = vmatprep.subr.mxu0 0.0
    %3320 = vmatpush2.msra.mxu0 0.0
    %3321 = vmatprep.subr.mxu0 0.0
    %3322 = vmatpush2.msra.mxu0 0.0
    %3323 = vmatprep.subr.mxu0 0.0
    %3324 = vmatpush2.msra.mxu0 0.0
    %3325 = vmatprep.subr.mxu0 0.0
    %3326 = vmatpush2.msra.mxu0 0.0
    %3327 = vmatprep.subr.mxu0 0.0
    %3328 = vmatpush2.msra.mxu0 0.0
    %3329 = vmatprep.subr.mxu0 0.0
    %3330 = vmatpush2.msra.mxu0 0.0
    %3331 = vmatprep.subr.mxu0 0.0
    %3332 = vmatpush2.msra.mxu0 0.0
    %3333 = vmatprep.subr.mxu0 0.0
    %3334 = vmatpush2.msra.mxu0 0.0
    %3335 = vmatprep.subr.mxu0 0.0
    %3336 = vmatpush2.msra.mxu0 0.0
    %3337 = vmatprep.subr.mxu0 0.0
    %3338 = vmatpush2.msra.mxu0 0.0
    %3339 = vmatprep.subr.mxu0 0.0
    %3340 = vmatpush2.msra.mxu0 0.0
    %3341 = vmatprep.subr.mxu0 0.0
    %3342 = vmatpush2.msra.mxu0 0.0
    %3343 = vmatprep.subr.mxu0 0.0
    %3344 = vmatpush2.msra.mxu0 0.0
    %3345 = vmatprep.mubr.f32.mxu0 0.0
    %3346 = vmatmul.mubr.f32.gmra.mxu0 %v3273
    %v3347 = vpop.f32.mrf.mxu0
    %v3348 = vadd.f32 0.0, %v3347
    %v3349 = vpop.f32.mrf.mxu0
    %3350 = vmatprep.mubr.f32.mxu0 0.0
    %3351 = vmatmul.mubr.f32.gmra.mxu0 %v3276
    %v3352 = vpop.f32.mrf.mxu0
    %v3353 = vadd.f32 0.0, %v3352
    %v3354 = vpop.f32.mrf.mxu0
    %3355 = vmatprep.mubr.f32.mxu0 0.0
    %3356 = vmatmul.mubr.f32.gmra.mxu0 %v3279
    %v3357 = vpop.f32.mrf.mxu0
    %v3358 = vadd.f32 0.0, %v3357
    %v3359 = vpop.f32.mrf.mxu0
    %3360 = vdwg.mxu0
    %v3361 = vadd.f32 %v2038, %v3348
    %v3362 = vadd.f32 %v2039, %v3353
    %v3363 = vadd.f32 %v2040, %v3358
    %v3365 = vlaneseq
    %v3366 = vshrl.u32 %v3365, 7
    %v3367 = vsub.s32 0, %v3366
    %v3368 = vrot.slane %v2167, %v3367
    %v3370 = vadd.f32 %v3361, %v3368
    %v3371 = vadd.f32 %v3362, %v3368
    %v3372 = vadd.f32 %v3363, %v3368
    %v3374 = vsel %vm342, %v3269, 0
    %v3377 = vsel %vm342, %v3270, 0
    %v3380 = vsel %vm342, %v3271, 0
    %3382 = vmatprep.subr.mxu0 0.0
    %3383 = vmatpush1.msra.mxu0 0.0
    %3384 = vmatprep.subr.mxu0 0.0
    %3385 = vmatpush1.msra.mxu0 0.0
    %3386 = vmatprep.subr.mxu0 0.0
    %3387 = vmatpush1.msra.mxu0 0.0
    %3388 = vmatprep.subr.mxu0 0.0
    %3389 = vmatpush1.msra.mxu0 0.0
    %3390 = vmatprep.subr.mxu0 0.0
    %3391 = vmatpush1.msra.mxu0 0.0
    %3392 = vmatprep.subr.mxu0 0.0
    %3393 = vmatpush1.msra.mxu0 0.0
    %3394 = vmatprep.subr.mxu0 0.0
    %3395 = vmatpush1.msra.mxu0 0.0
    %3396 = vmatprep.subr.mxu0 0.0
    %3397 = vmatpush1.msra.mxu0 0.0
    %3398 = vmatprep.subr.mxu0 0.0
    %3399 = vmatpush1.msra.mxu0 0.0
    %3400 = vmatprep.subr.mxu0 0.0
    %3401 = vmatpush1.msra.mxu0 0.0
    %3402 = vmatprep.subr.mxu0 0.0
    %3403 = vmatpush1.msra.mxu0 0.0
    %3404 = vmatprep.subr.mxu0 0.0
    %3405 = vmatpush1.msra.mxu0 0.0
    %3406 = vmatprep.subr.mxu0 0.0
    %3407 = vmatpush1.msra.mxu0 %v2165
    %3408 = vmatprep.subr.mxu0 0.0
    %3409 = vmatpush1.msra.mxu0 %v2164
    %3410 = vmatprep.subr.mxu0 0.0
    %3411 = vmatpush1.msra.mxu0 %v2163
    %3412 = vmatprep.subr.mxu0 0.0
    %3413 = vmatpush1.msra.mxu0 %v2162
    %3414 = vmatprep.subr.mxu0 0.0
    %3415 = vmatpush2.msra.mxu0 0.0
    %3416 = vmatprep.subr.mxu0 0.0
    %3417 = vmatpush2.msra.mxu0 0.0
    %3418 = vmatprep.subr.mxu0 0.0
    %3419 = vmatpush2.msra.mxu0 0.0
    %3420 = vmatprep.subr.mxu0 0.0
    %3421 = vmatpush2.msra.mxu0 0.0
    %3422 = vmatprep.subr.mxu0 0.0
    %3423 = vmatpush2.msra.mxu0 0.0
    %3424 = vmatprep.subr.mxu0 0.0
    %3425 = vmatpush2.msra.mxu0 0.0
    %3426 = vmatprep.subr.mxu0 0.0
    %3427 = vmatpush2.msra.mxu0 0.0
    %3428 = vmatprep.subr.mxu0 0.0
    %3429 = vmatpush2.msra.mxu0 0.0
    %3430 = vmatprep.subr.mxu0 0.0
    %3431 = vmatpush2.msra.mxu0 0.0
    %3432 = vmatprep.subr.mxu0 0.0
    %3433 = vmatpush2.msra.mxu0 0.0
    %3434 = vmatprep.subr.mxu0 0.0
    %3435 = vmatpush2.msra.mxu0 0.0
    %3436 = vmatprep.subr.mxu0 0.0
    %3437 = vmatpush2.msra.mxu0 0.0
    %3438 = vmatprep.subr.mxu0 0.0
    %3439 = vmatpush2.msra.mxu0 0.0
    %3440 = vmatprep.subr.mxu0 0.0
    %3441 = vmatpush2.msra.mxu0 0.0
    %3442 = vmatprep.subr.mxu0 0.0
    %3443 = vmatpush2.msra.mxu0 0.0
    %3444 = vmatprep.subr.mxu0 0.0
    %3445 = vmatpush2.msra.mxu0 0.0
    %3446 = vmatprep.mubr.f32.mxu0 0.0
    %3447 = vmatmul.mubr.f32.gmra.mxu0 %v3374
    %v3448 = vpop.f32.mrf.mxu0
    %v3449 = vadd.f32 0.0, %v3448
    %v3450 = vpop.f32.mrf.mxu0
    %3451 = vmatprep.mubr.f32.mxu0 0.0
    %3452 = vmatmul.mubr.f32.gmra.mxu0 %v3377
    %v3453 = vpop.f32.mrf.mxu0
    %v3454 = vadd.f32 0.0, %v3453
    %v3455 = vpop.f32.mrf.mxu0
    %3456 = vmatprep.mubr.f32.mxu0 0.0
    %3457 = vmatmul.mubr.f32.gmra.mxu0 %v3380
    %v3458 = vpop.f32.mrf.mxu0
    %v3459 = vadd.f32 0.0, %v3458
    %v3460 = vpop.f32.mrf.mxu0
    %3461 = vdwg.mxu0
    %v3462 = vadd.f32 %v2133, %v3449
    %v3463 = vadd.f32 %v2134, %v3454
    %v3464 = vadd.f32 %v2135, %v3459
    %v3465 = vadd.f32 %v3462, %v3368
    %v3466 = vadd.f32 %v3463, %v3368
    %v3467 = vadd.f32 %v3464, %v3368
    %v3468 = vsel %vm342, %v3370, 0.0
    %3469 = vadd.xlane.f32.xlu0 %v3468
    %v3470 = vpop.xlane.xlu0 %3469
    %v3471 = vsel %vm342, %v3371, 0.0
    %3472 = vadd.xlane.f32.xlu0 %v3471
    %v3473 = vpop.xlane.xlu0 %3472
    %v3474 = vsel %vm349, %v3372, 0.0
    %3475 = vadd.xlane.f32.xlu0 %v3474
    %v3476 = vpop.xlane.xlu0 %3475
    %v3477 = vmul.f32 %v3470, %v353
    %v3478 = vmul.f32 %v3473, %v353
    %v3479 = vmul.f32 %v3476, %v353
    %v3480 = vsub.f32 %v3370, %v3477
    %v3481 = vsub.f32 %v3371, %v3478
    %v3482 = vsub.f32 %v3372, %v3479
    %v3483 = vmul.f32 %v3480, %v3480
    %v3484 = vmul.f32 %v3481, %v3481
    %v3485 = vmul.f32 %v3482, %v3482
    %v3486 = vsel %vm342, %v3483, 0.0
    %3487 = vadd.xlane.f32.xlu0 %v3486
    %v3488 = vpop.xlane.xlu0 %3487
    %v3489 = vsel %vm342, %v3484, 0.0
    %3490 = vadd.xlane.f32.xlu0 %v3489
    %v3491 = vpop.xlane.xlu0 %3490
    %v3492 = vsel %vm349, %v3485, 0.0
    %3493 = vadd.xlane.f32.xlu0 %v3492
    %v3494 = vpop.xlane.xlu0 %3493
    %v3495 = vmul.f32 %v3488, %v353
    %v3496 = vmul.f32 %v3491, %v353
    %v3497 = vmul.f32 %v3494, %v353
    %v3498 = vadd.f32 %v3495, 1e-05
    %v3499 = vadd.f32 %v3496, 1e-05
    %v3500 = vadd.f32 %v3497, 1e-05
    %v3501 = vrsqrt.pop %v3498
    %v3502 = vrsqrt.pop %v3499
    %v3503 = vrsqrt.pop %v3500
    %v3504 = vmul.f32 %v3480, %v3501
    %v3505 = vmul.f32 %v3481, %v3502
    %v3506 = vmul.f32 %v3482, %v3503
    %v3508 = vlaneseq
    %v3509 = vshrl.u32 %v3508, 7
    %v3510 = vsub.s32 0, %v3509
    %v3511 = vrot.slane %v2169, %v3510
    %v3513 = vmul.f32 %v3504, %v3511
    %v3514 = vmul.f32 %v3505, %v3511
    %v3515 = vmul.f32 %v3506, %v3511
    %v3517 = vlaneseq
    %v3518 = vshrl.u32 %v3517, 7
    %v3519 = vsub.s32 0, %v3518
    %v3520 = vrot.slane %v2171, %v3519
    %v3522 = vadd.f32 %v3513, %v3520
    %v3523 = vadd.f32 %v3514, %v3520
    %v3524 = vadd.f32 %v3515, %v3520
    %v3525 = vsel %vm342, %v3465, 0.0
    %3526 = vadd.xlane.f32.xlu0 %v3525
    %v3527 = vpop.xlane.xlu0 %3526
    %v3528 = vsel %vm342, %v3466, 0.0
    %3529 = vadd.xlane.f32.xlu0 %v3528
    %v3530 = vpop.xlane.xlu0 %3529
    %v3531 = vsel %vm349, %v3467, 0.0
    %3532 = vadd.xlane.f32.xlu0 %v3531
    %v3533 = vpop.xlane.xlu0 %3532
    %v3534 = vmul.f32 %v3527, %v353
    %v3535 = vmul.f32 %v3530, %v353
    %v3536 = vmul.f32 %v3533, %v353
    %v3537 = vsub.f32 %v3465, %v3534
    %v3538 = vsub.f32 %v3466, %v3535
    %v3539 = vsub.f32 %v3467, %v3536
    %v3540 = vmul.f32 %v3537, %v3537
    %v3541 = vmul.f32 %v3538, %v3538
    %v3542 = vmul.f32 %v3539, %v3539
    %v3543 = vsel %vm342, %v3540, 0.0
    %3544 = vadd.xlane.f32.xlu0 %v3543
    %v3545 = vpop.xlane.xlu0 %3544
    %v3546 = vsel %vm342, %v3541, 0.0
    %3547 = vadd.xlane.f32.xlu0 %v3546
    %v3548 = vpop.xlane.xlu0 %3547
    %v3549 = vsel %vm349, %v3542, 0.0
    %3550 = vadd.xlane.f32.xlu0 %v3549
    %v3551 = vpop.xlane.xlu0 %3550
    %v3552 = vmul.f32 %v3545, %v353
    %v3553 = vmul.f32 %v3548, %v353
    %v3554 = vmul.f32 %v3551, %v353
    %v3555 = vadd.f32 %v3552, 1e-05
    %v3556 = vadd.f32 %v3553, 1e-05
    %v3557 = vadd.f32 %v3554, 1e-05
    %v3558 = vrsqrt.pop %v3555
    %v3559 = vrsqrt.pop %v3556
    %v3560 = vrsqrt.pop %v3557
    %v3561 = vmul.f32 %v3537, %v3558
    %v3562 = vmul.f32 %v3538, %v3559
    %v3563 = vmul.f32 %v3539, %v3560
    %v3564 = vmul.f32 %v3561, %v3511
    %v3565 = vmul.f32 %v3562, %v3511
    %v3566 = vmul.f32 %v3563, %v3511
    %v3567 = vadd.f32 %v3564, %v3520
    %v3568 = vadd.f32 %v3565, %v3520
    %v3569 = vadd.f32 %v3566, %v3520
    %v3571 = vlaneseq
    %v3572 = vshrl.u32 %v3571, 7
    %v3573 = vsub.s32 0, %v3572
    %v3574 = vrot.slane %v2178, %v3573
    %v3577 = vsel %vm342, %v3522, 0
    %v3580 = vsel %vm342, %v3523, 0
    %v3583 = vsel %vm342, %v3524, 0
    %3585 = vmatprep.subr.mxu0 0.0
    %3586 = vmatpush1.msra.mxu0 0.0
    %3587 = vmatprep.subr.mxu0 0.0
    %3588 = vmatpush1.msra.mxu0 0.0
    %3589 = vmatprep.subr.mxu0 0.0
    %3590 = vmatpush1.msra.mxu0 0.0
    %3591 = vmatprep.subr.mxu0 0.0
    %3592 = vmatpush1.msra.mxu0 0.0
    %3593 = vmatprep.subr.mxu0 0.0
    %3594 = vmatpush1.msra.mxu0 0.0
    %3595 = vmatprep.subr.mxu0 0.0
    %3596 = vmatpush1.msra.mxu0 0.0
    %3597 = vmatprep.subr.mxu0 0.0
    %3598 = vmatpush1.msra.mxu0 0.0
    %3599 = vmatprep.subr.mxu0 0.0
    %3600 = vmatpush1.msra.mxu0 0.0
    %3601 = vmatprep.subr.mxu0 0.0
    %3602 = vmatpush1.msra.mxu0 0.0
    %3603 = vmatprep.subr.mxu0 0.0
    %3604 = vmatpush1.msra.mxu0 0.0
    %3605 = vmatprep.subr.mxu0 0.0
    %3606 = vmatpush1.msra.mxu0 0.0
    %3607 = vmatprep.subr.mxu0 0.0
    %3608 = vmatpush1.msra.mxu0 0.0
    %3609 = vmatprep.subr.mxu0 0.0
    %3610 = vmatpush1.msra.mxu0 %v2176
    %3611 = vmatprep.subr.mxu0 0.0
    %3612 = vmatpush1.msra.mxu0 %v2175
    %3613 = vmatprep.subr.mxu0 0.0
    %3614 = vmatpush1.msra.mxu0 %v2174
    %3615 = vmatprep.subr.mxu0 0.0
    %3616 = vmatpush1.msra.mxu0 %v2173
    %3617 = vmatprep.subr.mxu0 0.0
    %3618 = vmatpush2.msra.mxu0 0.0
    %3619 = vmatprep.subr.mxu0 0.0
    %3620 = vmatpush2.msra.mxu0 0.0
    %3621 = vmatprep.subr.mxu0 0.0
    %3622 = vmatpush2.msra.mxu0 0.0
    %3623 = vmatprep.subr.mxu0 0.0
    %3624 = vmatpush2.msra.mxu0 0.0
    %3625 = vmatprep.subr.mxu0 0.0
    %3626 = vmatpush2.msra.mxu0 0.0
    %3627 = vmatprep.subr.mxu0 0.0
    %3628 = vmatpush2.msra.mxu0 0.0
    %3629 = vmatprep.subr.mxu0 0.0
    %3630 = vmatpush2.msra.mxu0 0.0
    %3631 = vmatprep.subr.mxu0 0.0
    %3632 = vmatpush2.msra.mxu0 0.0
    %3633 = vmatprep.subr.mxu0 0.0
    %3634 = vmatpush2.msra.mxu0 0.0
    %3635 = vmatprep.subr.mxu0 0.0
    %3636 = vmatpush2.msra.mxu0 0.0
    %3637 = vmatprep.subr.mxu0 0.0
    %3638 = vmatpush2.msra.mxu0 0.0
    %3639 = vmatprep.subr.mxu0 0.0
    %3640 = vmatpush2.msra.mxu0 0.0
    %3641 = vmatprep.subr.mxu0 0.0
    %3642 = vmatpush2.msra.mxu0 0.0
    %3643 = vmatprep.subr.mxu0 0.0
    %3644 = vmatpush2.msra.mxu0 0.0
    %3645 = vmatprep.subr.mxu0 0.0
    %3646 = vmatpush2.msra.mxu0 0.0
    %3647 = vmatprep.subr.mxu0 0.0
    %3648 = vmatpush2.msra.mxu0 0.0
    %3649 = vmatprep.mubr.f32.mxu0 0.0
    %3650 = vmatmul.mubr.f32.gmra.mxu0 %v3577
    %v3651 = vpop.f32.mrf.mxu0
    %v3652 = vadd.f32 %v3574, %v3651
    %v3653 = vpop.f32.mrf.mxu0
    %3654 = vmatprep.mubr.f32.mxu0 0.0
    %3655 = vmatmul.mubr.f32.gmra.mxu0 %v3580
    %v3656 = vpop.f32.mrf.mxu0
    %v3657 = vadd.f32 %v3574, %v3656
    %v3658 = vpop.f32.mrf.mxu0
    %3659 = vmatprep.mubr.f32.mxu0 0.0
    %3660 = vmatmul.mubr.f32.gmra.mxu0 %v3583
    %v3661 = vpop.f32.mrf.mxu0
    %v3662 = vadd.f32 %v3574, %v3661
    %v3663 = vpop.f32.mrf.mxu0
    %3664 = vdwg.mxu0
    %v3665 = vmul.f32 %v3652, 0.5
    %v3666 = vmul.f32 %v3657, 0.5
    %v3667 = vmul.f32 %v3662, 0.5
    %v3668 = vmul.f32 %v3652, 0.70710677
    %v3669 = vmul.f32 %v3657, 0.70710677
    %v3670 = vmul.f32 %v3662, 0.70710677
    %v3671 = verf.f32.pop %v3668
    %v3672 = verf.f32.pop %v3669
    %v3673 = verf.f32.pop %v3670
    %v3674 = vadd.f32 %v3671, 1.0
    %v3675 = vadd.f32 %v3672, 1.0
    %v3676 = vadd.f32 %v3673, 1.0
    %v3677 = vmul.f32 %v3665, %v3674
    %v3678 = vmul.f32 %v3666, %v3675
    %v3679 = vmul.f32 %v3667, %v3676
    %v3681 = vsel %vm342, %v3567, 0
    %v3684 = vsel %vm342, %v3568, 0
    %v3687 = vsel %vm342, %v3569, 0
    %3689 = vmatprep.subr.mxu0 0.0
    %3690 = vmatpush1.msra.mxu0 0.0
    %3691 = vmatprep.subr.mxu0 0.0
    %3692 = vmatpush1.msra.mxu0 0.0
    %3693 = vmatprep.subr.mxu0 0.0
    %3694 = vmatpush1.msra.mxu0 0.0
    %3695 = vmatprep.subr.mxu0 0.0
    %3696 = vmatpush1.msra.mxu0 0.0
    %3697 = vmatprep.subr.mxu0 0.0
    %3698 = vmatpush1.msra.mxu0 0.0
    %3699 = vmatprep.subr.mxu0 0.0
    %3700 = vmatpush1.msra.mxu0 0.0
    %3701 = vmatprep.subr.mxu0 0.0
    %3702 = vmatpush1.msra.mxu0 0.0
    %3703 = vmatprep.subr.mxu0 0.0
    %3704 = vmatpush1.msra.mxu0 0.0
    %3705 = vmatprep.subr.mxu0 0.0
    %3706 = vmatpush1.msra.mxu0 0.0
    %3707 = vmatprep.subr.mxu0 0.0
    %3708 = vmatpush1.msra.mxu0 0.0
    %3709 = vmatprep.subr.mxu0 0.0
    %3710 = vmatpush1.msra.mxu0 0.0
    %3711 = vmatprep.subr.mxu0 0.0
    %3712 = vmatpush1.msra.mxu0 0.0
    %3713 = vmatprep.subr.mxu0 0.0
    %3714 = vmatpush1.msra.mxu0 %v2176
    %3715 = vmatprep.subr.mxu0 0.0
    %3716 = vmatpush1.msra.mxu0 %v2175
    %3717 = vmatprep.subr.mxu0 0.0
    %3718 = vmatpush1.msra.mxu0 %v2174
    %3719 = vmatprep.subr.mxu0 0.0
    %3720 = vmatpush1.msra.mxu0 %v2173
    %3721 = vmatprep.subr.mxu0 0.0
    %3722 = vmatpush2.msra.mxu0 0.0
    %3723 = vmatprep.subr.mxu0 0.0
    %3724 = vmatpush2.msra.mxu0 0.0
    %3725 = vmatprep.subr.mxu0 0.0
    %3726 = vmatpush2.msra.mxu0 0.0
    %3727 = vmatprep.subr.mxu0 0.0
    %3728 = vmatpush2.msra.mxu0 0.0
    %3729 = vmatprep.subr.mxu0 0.0
    %3730 = vmatpush2.msra.mxu0 0.0
    %3731 = vmatprep.subr.mxu0 0.0
    %3732 = vmatpush2.msra.mxu0 0.0
    %3733 = vmatprep.subr.mxu0 0.0
    %3734 = vmatpush2.msra.mxu0 0.0
    %3735 = vmatprep.subr.mxu0 0.0
    %3736 = vmatpush2.msra.mxu0 0.0
    %3737 = vmatprep.subr.mxu0 0.0
    %3738 = vmatpush2.msra.mxu0 0.0
    %3739 = vmatprep.subr.mxu0 0.0
    %3740 = vmatpush2.msra.mxu0 0.0
    %3741 = vmatprep.subr.mxu0 0.0
    %3742 = vmatpush2.msra.mxu0 0.0
    %3743 = vmatprep.subr.mxu0 0.0
    %3744 = vmatpush2.msra.mxu0 0.0
    %3745 = vmatprep.subr.mxu0 0.0
    %3746 = vmatpush2.msra.mxu0 0.0
    %3747 = vmatprep.subr.mxu0 0.0
    %3748 = vmatpush2.msra.mxu0 0.0
    %3749 = vmatprep.subr.mxu0 0.0
    %3750 = vmatpush2.msra.mxu0 0.0
    %3751 = vmatprep.subr.mxu0 0.0
    %3752 = vmatpush2.msra.mxu0 0.0
    %3753 = vmatprep.mubr.f32.mxu0 0.0
    %3754 = vmatmul.mubr.f32.gmra.mxu0 %v3681
    %v3755 = vpop.f32.mrf.mxu0
    %v3756 = vadd.f32 %v3574, %v3755
    %v3757 = vpop.f32.mrf.mxu0
    %3758 = vmatprep.mubr.f32.mxu0 0.0
    %3759 = vmatmul.mubr.f32.gmra.mxu0 %v3684
    %v3760 = vpop.f32.mrf.mxu0
    %v3761 = vadd.f32 %v3574, %v3760
    %v3762 = vpop.f32.mrf.mxu0
    %3763 = vmatprep.mubr.f32.mxu0 0.0
    %3764 = vmatmul.mubr.f32.gmra.mxu0 %v3687
    %v3765 = vpop.f32.mrf.mxu0
    %v3766 = vadd.f32 %v3574, %v3765
    %v3767 = vpop.f32.mrf.mxu0
    %3768 = vdwg.mxu0
    %v3769 = vmul.f32 %v3756, 0.5
    %v3770 = vmul.f32 %v3761, 0.5
    %v3771 = vmul.f32 %v3766, 0.5
    %v3772 = vmul.f32 %v3756, 0.70710677
    %v3773 = vmul.f32 %v3761, 0.70710677
    %v3774 = vmul.f32 %v3766, 0.70710677
    %v3775 = verf.f32.pop %v3772
    %v3776 = verf.f32.pop %v3773
    %v3777 = verf.f32.pop %v3774
    %v3778 = vadd.f32 %v3775, 1.0
    %v3779 = vadd.f32 %v3776, 1.0
    %v3780 = vadd.f32 %v3777, 1.0
    %v3781 = vmul.f32 %v3769, %v3778
    %v3782 = vmul.f32 %v3770, %v3779
    %v3783 = vmul.f32 %v3771, %v3780
    %v3785 = vsel %vm1939, %v3677, 0
    %v3788 = vsel %vm1939, %v3678, 0
    %v3791 = vsel %vm1939, %v3679, 0
    %3793 = vmatprep.subr.mxu0 0.0
    %3794 = vmatpush1.msra.mxu0 0.0
    %3795 = vmatprep.subr.mxu0 0.0
    %3796 = vmatpush1.msra.mxu0 0.0
    %3797 = vmatprep.subr.mxu0 0.0
    %3798 = vmatpush1.msra.mxu0 0.0
    %3799 = vmatprep.subr.mxu0 0.0
    %3800 = vmatpush1.msra.mxu0 0.0
    %3801 = vmatprep.subr.mxu0 0.0
    %3802 = vmatpush1.msra.mxu0 0.0
    %3803 = vmatprep.subr.mxu0 0.0
    %3804 = vmatpush1.msra.mxu0 0.0
    %3805 = vmatprep.subr.mxu0 0.0
    %3806 = vmatpush1.msra.mxu0 0.0
    %3807 = vmatprep.subr.mxu0 0.0
    %3808 = vmatpush1.msra.mxu0 0.0
    %3809 = vmatprep.subr.mxu0 0.0
    %3810 = vmatpush1.msra.mxu0 %v2187
    %3811 = vmatprep.subr.mxu0 0.0
    %3812 = vmatpush1.msra.mxu0 %v2186
    %3813 = vmatprep.subr.mxu0 0.0
    %3814 = vmatpush1.msra.mxu0 %v2185
    %3815 = vmatprep.subr.mxu0 0.0
    %3816 = vmatpush1.msra.mxu0 %v2184
    %3817 = vmatprep.subr.mxu0 0.0
    %3818 = vmatpush1.msra.mxu0 %v2183
    %3819 = vmatprep.subr.mxu0 0.0
    %3820 = vmatpush1.msra.mxu0 %v2182
    %3821 = vmatprep.subr.mxu0 0.0
    %3822 = vmatpush1.msra.mxu0 %v2181
    %3823 = vmatprep.subr.mxu0 0.0
    %3824 = vmatpush1.msra.mxu0 %v2180
    %3825 = vmatprep.subr.mxu0 0.0
    %3826 = vmatpush2.msra.mxu0 0.0
    %3827 = vmatprep.subr.mxu0 0.0
    %3828 = vmatpush2.msra.mxu0 0.0
    %3829 = vmatprep.subr.mxu0 0.0
    %3830 = vmatpush2.msra.mxu0 0.0
    %3831 = vmatprep.subr.mxu0 0.0
    %3832 = vmatpush2.msra.mxu0 0.0
    %3833 = vmatprep.subr.mxu0 0.0
    %3834 = vmatpush2.msra.mxu0 0.0
    %3835 = vmatprep.subr.mxu0 0.0
    %3836 = vmatpush2.msra.mxu0 0.0
    %3837 = vmatprep.subr.mxu0 0.0
    %3838 = vmatpush2.msra.mxu0 0.0
    %3839 = vmatprep.subr.mxu0 0.0
    %3840 = vmatpush2.msra.mxu0 0.0
    %3841 = vmatprep.subr.mxu0 0.0
    %3842 = vmatpush2.msra.mxu0 0.0
    %3843 = vmatprep.subr.mxu0 0.0
    %3844 = vmatpush2.msra.mxu0 0.0
    %3845 = vmatprep.subr.mxu0 0.0
    %3846 = vmatpush2.msra.mxu0 0.0
    %3847 = vmatprep.subr.mxu0 0.0
    %3848 = vmatpush2.msra.mxu0 0.0
    %3849 = vmatprep.subr.mxu0 0.0
    %3850 = vmatpush2.msra.mxu0 0.0
    %3851 = vmatprep.subr.mxu0 0.0
    %3852 = vmatpush2.msra.mxu0 0.0
    %3853 = vmatprep.subr.mxu0 0.0
    %3854 = vmatpush2.msra.mxu0 0.0
    %3855 = vmatprep.subr.mxu0 0.0
    %3856 = vmatpush2.msra.mxu0 0.0
    %3857 = vmatprep.mubr.f32.mxu0 0.0
    %3858 = vmatmul.mubr.f32.gmra.mxu0 %v3785
    %v3859 = vpop.f32.mrf.mxu0
    %v3860 = vadd.f32 0.0, %v3859
    %v3861 = vpop.f32.mrf.mxu0
    %3862 = vmatprep.mubr.f32.mxu0 0.0
    %3863 = vmatmul.mubr.f32.gmra.mxu0 %v3788
    %v3864 = vpop.f32.mrf.mxu0
    %v3865 = vpop.f32.mrf.mxu0
    %3866 = vmatprep.mubr.f32.mxu0 0.0
    %3867 = vmatmul.mubr.f32.gmra.mxu0 %v3791
    %v3868 = vpop.f32.mrf.mxu0
    %v3869 = vpop.f32.mrf.mxu0
    %3870 = vdwg.mxu0
    %v3871 = vadd.f32 %v3370, %v3860
    %v3873 = vlaneseq
    %v3874 = vshrl.u32 %v3873, 7
    %v3875 = vsub.s32 0, %v3874
    %v3876 = vrot.slane %v2189, %v3875
    %v3878 = vadd.f32 %v3871, %v3876
    %v3880 = vsel %vm1939, %v3781, 0
    %v3883 = vsel %vm1939, %v3782, 0
    %v3886 = vsel %vm1939, %v3783, 0
    %3888 = vmatprep.subr.mxu0 0.0
    %3889 = vmatpush1.msra.mxu0 0.0
    %3890 = vmatprep.subr.mxu0 0.0
    %3891 = vmatpush1.msra.mxu0 0.0
    %3892 = vmatprep.subr.mxu0 0.0
    %3893 = vmatpush1.msra.mxu0 0.0
    %3894 = vmatprep.subr.mxu0 0.0
    %3895 = vmatpush1.msra.mxu0 0.0
    %3896 = vmatprep.subr.mxu0 0.0
    %3897 = vmatpush1.msra.mxu0 0.0
    %3898 = vmatprep.subr.mxu0 0.0
    %3899 = vmatpush1.msra.mxu0 0.0
    %3900 = vmatprep.subr.mxu0 0.0
    %3901 = vmatpush1.msra.mxu0 0.0
    %3902 = vmatprep.subr.mxu0 0.0
    %3903 = vmatpush1.msra.mxu0 0.0
    %3904 = vmatprep.subr.mxu0 0.0
    %3905 = vmatpush1.msra.mxu0 %v2187
    %3906 = vmatprep.subr.mxu0 0.0
    %3907 = vmatpush1.msra.mxu0 %v2186
    %3908 = vmatprep.subr.mxu0 0.0
    %3909 = vmatpush1.msra.mxu0 %v2185
    %3910 = vmatprep.subr.mxu0 0.0
    %3911 = vmatpush1.msra.mxu0 %v2184
    %3912 = vmatprep.subr.mxu0 0.0
    %3913 = vmatpush1.msra.mxu0 %v2183
    %3914 = vmatprep.subr.mxu0 0.0
    %3915 = vmatpush1.msra.mxu0 %v2182
    %3916 = vmatprep.subr.mxu0 0.0
    %3917 = vmatpush1.msra.mxu0 %v2181
    %3918 = vmatprep.subr.mxu0 0.0
    %3919 = vmatpush1.msra.mxu0 %v2180
    %3920 = vmatprep.subr.mxu0 0.0
    %3921 = vmatpush2.msra.mxu0 0.0
    %3922 = vmatprep.subr.mxu0 0.0
    %3923 = vmatpush2.msra.mxu0 0.0
    %3924 = vmatprep.subr.mxu0 0.0
    %3925 = vmatpush2.msra.mxu0 0.0
    %3926 = vmatprep.subr.mxu0 0.0
    %3927 = vmatpush2.msra.mxu0 0.0
    %3928 = vmatprep.subr.mxu0 0.0
    %3929 = vmatpush2.msra.mxu0 0.0
    %3930 = vmatprep.subr.mxu0 0.0
    %3931 = vmatpush2.msra.mxu0 0.0
    %3932 = vmatprep.subr.mxu0 0.0
    %3933 = vmatpush2.msra.mxu0 0.0
    %3934 = vmatprep.subr.mxu0 0.0
    %3935 = vmatpush2.msra.mxu0 0.0
    %3936 = vmatprep.subr.mxu0 0.0
    %3937 = vmatpush2.msra.mxu0 0.0
    %3938 = vmatprep.subr.mxu0 0.0
    %3939 = vmatpush2.msra.mxu0 0.0
    %3940 = vmatprep.subr.mxu0 0.0
    %3941 = vmatpush2.msra.mxu0 0.0
    %3942 = vmatprep.subr.mxu0 0.0
    %3943 = vmatpush2.msra.mxu0 0.0
    %3944 = vmatprep.subr.mxu0 0.0
    %3945 = vmatpush2.msra.mxu0 0.0
    %3946 = vmatprep.subr.mxu0 0.0
    %3947 = vmatpush2.msra.mxu0 0.0
    %3948 = vmatprep.subr.mxu0 0.0
    %3949 = vmatpush2.msra.mxu0 0.0
    %3950 = vmatprep.subr.mxu0 0.0
    %3951 = vmatpush2.msra.mxu0 0.0
    %3952 = vmatprep.mubr.f32.mxu0 0.0
    %3953 = vmatmul.mubr.f32.gmra.mxu0 %v3880
    %v3954 = vpop.f32.mrf.mxu0
    %v3955 = vadd.f32 0.0, %v3954
    %v3956 = vpop.f32.mrf.mxu0
    %3957 = vmatprep.mubr.f32.mxu0 0.0
    %3958 = vmatmul.mubr.f32.gmra.mxu0 %v3883
    %v3959 = vpop.f32.mrf.mxu0
    %v3960 = vpop.f32.mrf.mxu0
    %3961 = vmatprep.mubr.f32.mxu0 0.0
    %3962 = vmatmul.mubr.f32.gmra.mxu0 %v3886
    %v3963 = vpop.f32.mrf.mxu0
    %v3964 = vpop.f32.mrf.mxu0
    %3965 = vdwg.mxu0
    %v3966 = vadd.f32 %v3465, %v3955
    %v3967 = vadd.f32 %v3966, %v3876
    %v3968 = vld [vmem:[%s22] sm:$0x1]
    %v3969 = vld [vmem:[%s23] sm:$0x1]
    %v3970 = vsel %vm349, %v3878, 0.0
    %3971 = vadd.xlane.f32.xlu0 %v3970
    %v3972 = vpop.xlane.xlu0 %3971
    %v3973 = vmul.f32 %v3972, %v353
    %v3974 = vsub.f32 %v3878, %v3973
    %v3975 = vmul.f32 %v3974, %v3974
    %v3976 = vsel %vm349, %v3975, 0.0
    %3977 = vadd.xlane.f32.xlu0 %v3976
    %v3978 = vpop.xlane.xlu0 %3977
    %v3979 = vmul.f32 %v3978, %v353
    %v3980 = vadd.f32 %v3979, 1e-05
    %v3981 = vrsqrt.pop %v3980
    %v3982 = vmul.f32 %v3974, %v3981
    %v3983 = vmul.f32 %v3982, %v3968
    %v3984 = vadd.f32 %v3983, %v3969
    %3985 = vst.msk [vmem:[#allocation2] sm:$0x1] %vm349, %v3984
    %v3986 = vsel %vm349, %v3967, 0.0
    %3987 = vadd.xlane.f32.xlu0 %v3986
    %v3988 = vpop.xlane.xlu0 %3987
    %v3989 = vmul.f32 %v3988, %v353
    %v3990 = vsub.f32 %v3967, %v3989
    %v3991 = vmul.f32 %v3990, %v3990
    %v3992 = vsel %vm349, %v3991, 0.0
    %3993 = vadd.xlane.f32.xlu0 %v3992
    %v3994 = vpop.xlane.xlu0 %3993
    %v3995 = vmul.f32 %v3994, %v353
    %v3996 = vadd.f32 %v3995, 1e-05
    %v3997 = vrsqrt.pop %v3996
    %v3998 = vmul.f32 %v3990, %v3997
    %v3999 = vmul.f32 %v3998, %v3968
    %v4000 = vadd.f32 %v3999, %v3969
    %4001 = vst.msk [vmem:[#allocation2 + $0x1] sm:$0x1] %vm349, %v4000
    // Predicated region
    $region98: #{vit_forward.1} parent=1 // pred_check
      _
    $region99: #{vit_forward.1} parent=1 // pred_check_branch
      %4003 = sbr.rel (0) target = $region101
    $region100: #{vit_forward.1} parent=1 // pred_region
      %s4005 = ssub.s32 32, 32
      %4006 = vsyncadd [#allocation3], %s4005
      %s4008 = sshll.u32 [#allocation2], 4
      %s4009 = int_to_ptr.vmem [resolvable:$true] %s4008
      %4011 = dma.vmem_to_hbm [thread:$0]  %s4009, 32, %s24, [#allocation3]
    $region101: #{vit_forward.1} parent=1 // pred_fallthru
      _
    // Predicated region
    $region102: #{vit_forward.1} parent=1 // pred_check
      _
    $region103: #{vit_forward.1} parent=1 // pred_check_branch
      %4013 = sbr.rel (0) target = $region105
    $region104: #{vit_forward.1} parent=1 // pred_region
      %4014 = dma.done [#allocation3], 32
    $region105: #{vit_forward.1} parent=1 // pred_fallthru
      _
    %4015 = vsyncpa [#allocation3], 1

</llo_original>
